<compile_context>
chip_gen: v5e
topology: v5e:2x2
jax: 0.10.0
libtpu: 0.0.40
codegen_flags: <defaults>
</compile_context>

<pallas_src>
import jax
import jax.numpy as jnp
from jax.experimental import pallas as pl
from jax.experimental.pallas import tpu as pltpu

INPUT_DIM = 329   # dataset_name == 'all'
HIDDEN = 512
OUT_DIM = 10
OUT_PAD = 128     # lane-dense store floor (10 -> 128)


def mlp_kernel(x_ref,
               w1_ref, b1_ref,
               w2_ref, b2_ref,
               w3_ref, b3_ref,
               w4_ref, b4_ref,
               w5_ref, b5_ref,
               o_ref):
    # One batch tile of the full 5-layer MLP. Weights bf16, accumulation f32.
    # x arrives as raw f32 (no wrapper pad/cast pass); cast to bf16 on-chip.
    x = x_ref[...].astype(jnp.bfloat16)

    h = jnp.dot(x, w1_ref[...], preferred_element_type=jnp.float32) + b1_ref[...]
    h = jnp.maximum(h, 0.0).astype(jnp.bfloat16)

    h = jnp.dot(h, w2_ref[...], preferred_element_type=jnp.float32) + b2_ref[...]
    h = jnp.maximum(h, 0.0).astype(jnp.bfloat16)

    h = jnp.dot(h, w3_ref[...], preferred_element_type=jnp.float32) + b3_ref[...]
    h = jnp.maximum(h, 0.0).astype(jnp.bfloat16)

    h = jnp.dot(h, w4_ref[...], preferred_element_type=jnp.float32) + b4_ref[...]
    h = jnp.maximum(h, 0.0).astype(jnp.bfloat16)

    # final layer: no activation
    o = jnp.dot(h, w5_ref[...], preferred_element_type=jnp.float32) + b5_ref[...]
    o_ref[...] = o.astype(o_ref.dtype)


def prepare_params(params):
    """Setup-time casting/padding of (W, b) pairs (W stored as (in, out), f32).

    Returns the flat list [w1,b1,...,w5,b5] with:
      * W5/b5 columns zero-padded 10 -> 128 (lane-dense output)
      * weights cast to bf16; biases kept f32 and reshaped to (1, N)
      * W1 is kept UNPADDED (329, 512) — the kernel streams x unpadded too.
    """
    flat = []
    n = len(params)
    for idx, (w, b) in enumerate(params):
        if idx == n - 1:
            w = jnp.pad(w, ((0, 0), (0, OUT_PAD - w.shape[1])))
            b = jnp.pad(b, (0, OUT_PAD - b.shape[0]))
        flat.append(w.astype(jnp.bfloat16))
        flat.append(b.reshape(1, -1).astype(jnp.float32))
    return flat


def _round_up(x, m):
    return ((x + m - 1) // m) * m


def _choose_tm(B):
    """Batch-tile size.

    * B >= 1024: TM=512 (amortizes per-step overhead; grid >= 2 steps).
    * 256 <= B < 1024: ~B/2 rounded to 128 -> exactly 2 MXU-friendly tiles,
      so both v7x TensorCores are busy.
    * 32 <= B < 256: ~B/2 rounded to 16 -> 2 tiles, bf16 sublane-aligned.
    * B < 32: one tile, rounded to 16 (bf16 packing), not 8.
    """
    if B >= 1024:
        return 512
    if B >= 256:
        return min(512, _round_up((B + 1) // 2, 128))
    if B >= 32:
        return _round_up((B + 1) // 2, 16)
    return max(16, _round_up(B, 16))


@jax.jit
def neural_network_forward(x, flat_params):
    """x: (B, 329) (or (B, ...) to be flattened).  flat_params: from prepare_params."""
    B = x.shape[0]
    x = x.reshape(B, -1).astype(jnp.float32)      # nn.Flatten()
    K = x.shape[1]

    TM = _choose_tm(B)
    grid = (pl.cdiv(B, TM),)                      # non-divisible B: last tile masked

    in_specs = [pl.BlockSpec((TM, K), lambda i: (i, 0))]
    for p in flat_params:
        # Same block every grid step -> weights/biases stay VMEM-resident.
        in_specs.append(pl.BlockSpec(p.shape, lambda i: (0, 0)))

    out = pl.pallas_call(
        mlp_kernel,
        out_shape=jax.ShapeDtypeStruct((B, OUT_PAD), jnp.bfloat16),
        grid=grid,
        in_specs=in_specs,
        out_specs=pl.BlockSpec((TM, OUT_PAD), lambda i: (i, 0)),
        compiler_params=pltpu.CompilerParams(
            dimension_semantics=("parallel",),
            vmem_limit_bytes=32 << 20),
    )(x, *flat_params)

    return out[:, :OUT_DIM]


def init_linear(key, in_dim, out_dim):
    """Deterministic init mimicking torch.nn.Linear (uniform(-1/sqrt(in), 1/sqrt(in)))."""
    kw, kb = jax.random.split(key)
    bound = 1.0 / jnp.sqrt(jnp.float32(in_dim))
    w = jax.random.uniform(kw, (in_dim, out_dim), jnp.float32, -bound, bound)
    b = jax.random.uniform(kb, (out_dim,), jnp.float32, -bound, bound)
    return w, b


def build_params(key):
    dims = [(INPUT_DIM, HIDDEN), (HIDDEN, HIDDEN), (HIDDEN, HIDDEN),
            (HIDDEN, HIDDEN), (HIDDEN, OUT_DIM)]
    keys = jax.random.split(key, len(dims))
    return [init_linear(k, i, o) for k, (i, o) in zip(keys, dims)]


def reference_forward(x, params):
    """Pure-JAX reference with the same bf16 quantization points / f32 accumulation."""
    h = x.reshape(x.shape[0], -1)
    for idx, (w, b) in enumerate(params):
        h = jnp.dot(h.astype(jnp.bfloat16).astype(jnp.float32),
                    w.astype(jnp.bfloat16).astype(jnp.float32)) + b
        if idx < len(params) - 1:
            h = jnp.maximum(h, 0.0)
    return h


if __name__ == "__main__":
    key = jax.random.PRNGKey(0)
    kx, kp = jax.random.split(key)

    B = 16
    # nn.Flatten() on a (B, 329) input is the identity, so feed 2-D directly.
    x = jax.random.normal(kx, (B, INPUT_DIM), dtype=jnp.float32)
    params = build_params(kp)
    flat_params = prepare_params(params)

    out = neural_network_forward(x, flat_params)
    jax.block_until_ready(out)

    ref = reference_forward(x, params)
    assert out.shape == (B, OUT_DIM)
    # Kernel emits bf16 logits (lane-dense writeback); allow bf16 quantization error.
    err = float(jnp.max(jnp.abs(out.astype(jnp.float32) - ref)))
    assert jnp.allclose(out.astype(jnp.float32), ref, atol=1e-2, rtol=1e-2), err

    print("KERNEL_OK")
</pallas_src>

<mosaic_0001>
module attributes {stable_mosaic.version = 11 : i64} {
  func.func @mlp_kernel(%arg0: i32, %arg1: memref<16x329xf32, #tpu.memory_space<vmem>>, %arg2: memref<329x512xbf16, #tpu.memory_space<vmem>>, %arg3: memref<1x512xf32, #tpu.memory_space<vmem>>, %arg4: memref<512x512xbf16, #tpu.memory_space<vmem>>, %arg5: memref<1x512xf32, #tpu.memory_space<vmem>>, %arg6: memref<512x512xbf16, #tpu.memory_space<vmem>>, %arg7: memref<1x512xf32, #tpu.memory_space<vmem>>, %arg8: memref<512x512xbf16, #tpu.memory_space<vmem>>, %arg9: memref<1x512xf32, #tpu.memory_space<vmem>>, %arg10: memref<512x128xbf16, #tpu.memory_space<vmem>>, %arg11: memref<1x128xf32, #tpu.memory_space<vmem>>, %arg12: memref<16x128xbf16, #tpu.memory_space<vmem>>) attributes {dimension_semantics = [#tpu.dimension_semantics<parallel>], iteration_bounds = array<i64: 1>, scalar_prefetch = 0 : i64, scratch_operands = 0 : i64, tpu.core_type = #tpu.core_type<tc>, window_params = [{transform_indices = @transform_0, window_bounds = array<i64: 16, 329>}, {pipeline_mode = #tpu.pipeline_mode<synchronous>, transform_indices = @transform_1, window_bounds = array<i64: 329, 512>}, {pipeline_mode = #tpu.pipeline_mode<synchronous>, transform_indices = @transform_2, window_bounds = array<i64: 1, 512>}, {pipeline_mode = #tpu.pipeline_mode<synchronous>, transform_indices = @transform_3, window_bounds = array<i64: 512, 512>}, {pipeline_mode = #tpu.pipeline_mode<synchronous>, transform_indices = @transform_4, window_bounds = array<i64: 1, 512>}, {pipeline_mode = #tpu.pipeline_mode<synchronous>, transform_indices = @transform_5, window_bounds = array<i64: 512, 512>}, {pipeline_mode = #tpu.pipeline_mode<synchronous>, transform_indices = @transform_6, window_bounds = array<i64: 1, 512>}, {pipeline_mode = #tpu.pipeline_mode<synchronous>, transform_indices = @transform_7, window_bounds = array<i64: 512, 512>}, {pipeline_mode = #tpu.pipeline_mode<synchronous>, transform_indices = @transform_8, window_bounds = array<i64: 1, 512>}, {pipeline_mode = #tpu.pipeline_mode<synchronous>, transform_indices = @transform_9, window_bounds = array<i64: 512, 128>}, {pipeline_mode = #tpu.pipeline_mode<synchronous>, transform_indices = @transform_10, window_bounds = array<i64: 1, 128>}, {transform_indices = @transform_11, window_bounds = array<i64: 16, 128>}]} {
    %c0 = arith.constant 0 : index
    %c0_0 = arith.constant 0 : index
    %0 = vector.load %arg1[%c0, %c0_0] : memref<16x329xf32, #tpu.memory_space<vmem>>, vector<16x329xf32>
    %1 = arith.truncf %0 : vector<16x329xf32> to vector<16x329xbf16>
    %c0_1 = arith.constant 0 : index
    %c0_2 = arith.constant 0 : index
    %2 = vector.load %arg2[%c0_1, %c0_2] : memref<329x512xbf16, #tpu.memory_space<vmem>>, vector<329x512xbf16>
    %cst = arith.constant dense<0.000000e+00> : vector<16x512xf32>
    %3 = tpu.matmul %1, %2, %cst {dimension_numbers = #tpu.dot_dimension_numbers<[1], [0], [0], [1], [0, 0, 1, 1], [], []>} : vector<16x329xbf16>, vector<329x512xbf16>, vector<16x512xf32> -> vector<16x512xf32>
    %c0_3 = arith.constant 0 : index
    %c0_4 = arith.constant 0 : index
    %4 = vector.load %arg3[%c0_3, %c0_4] : memref<1x512xf32, #tpu.memory_space<vmem>>, vector<1x512xf32>
    %5 = vector.broadcast %4 : vector<1x512xf32> to vector<16x512xf32>
    %6 = arith.addf %3, %5 : vector<16x512xf32>
    %cst_5 = arith.constant 0.000000e+00 : f32
    %7 = vector.broadcast %cst_5 : f32 to vector<16x512xf32>
    %8 = arith.maximumf %6, %7 : vector<16x512xf32>
    %9 = arith.truncf %8 : vector<16x512xf32> to vector<16x512xbf16>
    %c0_6 = arith.constant 0 : index
    %c0_7 = arith.constant 0 : index
    %10 = vector.load %arg4[%c0_6, %c0_7] : memref<512x512xbf16, #tpu.memory_space<vmem>>, vector<512x512xbf16>
    %cst_8 = arith.constant dense<0.000000e+00> : vector<16x512xf32>
    %11 = tpu.matmul %9, %10, %cst_8 {dimension_numbers = #tpu.dot_dimension_numbers<[1], [0], [0], [1], [0, 0, 1, 1], [], []>} : vector<16x512xbf16>, vector<512x512xbf16>, vector<16x512xf32> -> vector<16x512xf32>
    %c0_9 = arith.constant 0 : index
    %c0_10 = arith.constant 0 : index
    %12 = vector.load %arg5[%c0_9, %c0_10] : memref<1x512xf32, #tpu.memory_space<vmem>>, vector<1x512xf32>
    %13 = vector.broadcast %12 : vector<1x512xf32> to vector<16x512xf32>
    %14 = arith.addf %11, %13 : vector<16x512xf32>
    %cst_11 = arith.constant 0.000000e+00 : f32
    %15 = vector.broadcast %cst_11 : f32 to vector<16x512xf32>
    %16 = arith.maximumf %14, %15 : vector<16x512xf32>
    %17 = arith.truncf %16 : vector<16x512xf32> to vector<16x512xbf16>
    %c0_12 = arith.constant 0 : index
    %c0_13 = arith.constant 0 : index
    %18 = vector.load %arg6[%c0_12, %c0_13] : memref<512x512xbf16, #tpu.memory_space<vmem>>, vector<512x512xbf16>
    %cst_14 = arith.constant dense<0.000000e+00> : vector<16x512xf32>
    %19 = tpu.matmul %17, %18, %cst_14 {dimension_numbers = #tpu.dot_dimension_numbers<[1], [0], [0], [1], [0, 0, 1, 1], [], []>} : vector<16x512xbf16>, vector<512x512xbf16>, vector<16x512xf32> -> vector<16x512xf32>
    %c0_15 = arith.constant 0 : index
    %c0_16 = arith.constant 0 : index
    %20 = vector.load %arg7[%c0_15, %c0_16] : memref<1x512xf32, #tpu.memory_space<vmem>>, vector<1x512xf32>
    %21 = vector.broadcast %20 : vector<1x512xf32> to vector<16x512xf32>
    %22 = arith.addf %19, %21 : vector<16x512xf32>
    %cst_17 = arith.constant 0.000000e+00 : f32
    %23 = vector.broadcast %cst_17 : f32 to vector<16x512xf32>
    %24 = arith.maximumf %22, %23 : vector<16x512xf32>
    %25 = arith.truncf %24 : vector<16x512xf32> to vector<16x512xbf16>
    %c0_18 = arith.constant 0 : index
    %c0_19 = arith.constant 0 : index
    %26 = vector.load %arg8[%c0_18, %c0_19] : memref<512x512xbf16, #tpu.memory_space<vmem>>, vector<512x512xbf16>
    %cst_20 = arith.constant dense<0.000000e+00> : vector<16x512xf32>
    %27 = tpu.matmul %25, %26, %cst_20 {dimension_numbers = #tpu.dot_dimension_numbers<[1], [0], [0], [1], [0, 0, 1, 1], [], []>} : vector<16x512xbf16>, vector<512x512xbf16>, vector<16x512xf32> -> vector<16x512xf32>
    %c0_21 = arith.constant 0 : index
    %c0_22 = arith.constant 0 : index
    %28 = vector.load %arg9[%c0_21, %c0_22] : memref<1x512xf32, #tpu.memory_space<vmem>>, vector<1x512xf32>
    %29 = vector.broadcast %28 : vector<1x512xf32> to vector<16x512xf32>
    %30 = arith.addf %27, %29 : vector<16x512xf32>
    %cst_23 = arith.constant 0.000000e+00 : f32
    %31 = vector.broadcast %cst_23 : f32 to vector<16x512xf32>
    %32 = arith.maximumf %30, %31 : vector<16x512xf32>
    %33 = arith.truncf %32 : vector<16x512xf32> to vector<16x512xbf16>
    %c0_24 = arith.constant 0 : index
    %c0_25 = arith.constant 0 : index
    %34 = vector.load %arg10[%c0_24, %c0_25] : memref<512x128xbf16, #tpu.memory_space<vmem>>, vector<512x128xbf16>
    %cst_26 = arith.constant dense<0.000000e+00> : vector<16x128xf32>
    %35 = tpu.matmul %33, %34, %cst_26 {dimension_numbers = #tpu.dot_dimension_numbers<[1], [0], [0], [1], [0, 0, 1, 1], [], []>} : vector<16x512xbf16>, vector<512x128xbf16>, vector<16x128xf32> -> vector<16x128xf32>
    %c0_27 = arith.constant 0 : index
    %c0_28 = arith.constant 0 : index
    %36 = vector.load %arg11[%c0_27, %c0_28] : memref<1x128xf32, #tpu.memory_space<vmem>>, vector<1x128xf32>
    %37 = vector.broadcast %36 : vector<1x128xf32> to vector<16x128xf32>
    %38 = arith.addf %35, %37 : vector<16x128xf32>
    %39 = arith.truncf %38 : vector<16x128xf32> to vector<16x128xbf16>
    %c0_29 = arith.constant 0 : index
    %c0_30 = arith.constant 0 : index
    %40 = vector.load %arg12[%c0_29, %c0_30] : memref<16x128xbf16, #tpu.memory_space<vmem>>, vector<16x128xbf16>
    tpu.vector_store %arg12[%c0_29, %c0_30], %39 {strides = array<i32>} : memref<16x128xbf16, #tpu.memory_space<vmem>>, vector<16x128xbf16>,
    return
  }
  func.func @transform_0(%arg0: i32) -> (i32, i32) {
    %c0_i32 = arith.constant 0 : i32
    %c0_i32_0 = arith.constant 0 : i32
    return %arg0, %c0_i32 : i32, i32
  }
  func.func @transform_1(%arg0: i32) -> (i32, i32) {
    %c0_i32 = arith.constant 0 : i32
    %c0_i32_0 = arith.constant 0 : i32
    %c0_i32_1 = arith.constant 0 : i32
    return %c0_i32, %c0_i32_0 : i32, i32
  }
  func.func @transform_2(%arg0: i32) -> (i32, i32) {
    %c0_i32 = arith.constant 0 : i32
    %c0_i32_0 = arith.constant 0 : i32
    %c0_i32_1 = arith.constant 0 : i32
    return %c0_i32, %c0_i32_0 : i32, i32
  }
  func.func @transform_3(%arg0: i32) -> (i32, i32) {
    %c0_i32 = arith.constant 0 : i32
    %c0_i32_0 = arith.constant 0 : i32
    %c0_i32_1 = arith.constant 0 : i32
    return %c0_i32, %c0_i32_0 : i32, i32
  }
  func.func @transform_4(%arg0: i32) -> (i32, i32) {
    %c0_i32 = arith.constant 0 : i32
    %c0_i32_0 = arith.constant 0 : i32
    %c0_i32_1 = arith.constant 0 : i32
    return %c0_i32, %c0_i32_0 : i32, i32
  }
  func.func @transform_5(%arg0: i32) -> (i32, i32) {
    %c0_i32 = arith.constant 0 : i32
    %c0_i32_0 = arith.constant 0 : i32
    %c0_i32_1 = arith.constant 0 : i32
    return %c0_i32, %c0_i32_0 : i32, i32
  }
  func.func @transform_6(%arg0: i32) -> (i32, i32) {
    %c0_i32 = arith.constant 0 : i32
    %c0_i32_0 = arith.constant 0 : i32
    %c0_i32_1 = arith.constant 0 : i32
    return %c0_i32, %c0_i32_0 : i32, i32
  }
  func.func @transform_7(%arg0: i32) -> (i32, i32) {
    %c0_i32 = arith.constant 0 : i32
    %c0_i32_0 = arith.constant 0 : i32
    %c0_i32_1 = arith.constant 0 : i32
    return %c0_i32, %c0_i32_0 : i32, i32
  }
  func.func @transform_8(%arg0: i32) -> (i32, i32) {
    %c0_i32 = arith.constant 0 : i32
    %c0_i32_0 = arith.constant 0 : i32
    %c0_i32_1 = arith.constant 0 : i32
    return %c0_i32, %c0_i32_0 : i32, i32
  }
  func.func @transform_9(%arg0: i32) -> (i32, i32) {
    %c0_i32 = arith.constant 0 : i32
    %c0_i32_0 = arith.constant 0 : i32
    %c0_i32_1 = arith.constant 0 : i32
    return %c0_i32, %c0_i32_0 : i32, i32
  }
  func.func @transform_10(%arg0: i32) -> (i32, i32) {
    %c0_i32 = arith.constant 0 : i32
    %c0_i32_0 = arith.constant 0 : i32
    %c0_i32_1 = arith.constant 0 : i32
    return %c0_i32, %c0_i32_0 : i32, i32
  }
  func.func @transform_11(%arg0: i32) -> (i32, i32) {
    %c0_i32 = arith.constant 0 : i32
    %c0_i32_0 = arith.constant 0 : i32
    return %arg0, %c0_i32 : i32, i32
  }
}

</mosaic_0001>

<llo_original>
// kernel: neural_network_forward.1
$region0: #{neural_network_forward.1}
  #allocation0 [shape = 'u32[]', space=smem, size = 0x4, offset = 0x4, fixed_abs, tag = 'smem constant byte address 0x4 - core index']
  #allocation1 [shape = 'u32[72,128]{1,0:T(1,128)}', space=vmem, size = 0x9000, scoped, tag = 'internal scratch']
  %s0 = inlined_call_operand.hbm [shape: f32[16,329], index: 0, kind: input, shape index: {}]
  %s1 = inlined_call_operand.hbm [shape: bf16[329,512], index: 1, kind: input, shape index: {}]
  %s2 = inlined_call_operand.hbm [shape: f32[1,512], index: 2, kind: input, shape index: {}]
  %s3 = inlined_call_operand.hbm [shape: bf16[512,512], index: 3, kind: input, shape index: {}]
  %s4 = inlined_call_operand.hbm [shape: f32[1,512], index: 4, kind: input, shape index: {}]
  %s5 = inlined_call_operand.hbm [shape: bf16[512,512], index: 5, kind: input, shape index: {}]
  %s6 = inlined_call_operand.vmem [shape: f32[1,512], index: 6, kind: input, shape index: {}]
  %s7 = inlined_call_operand.hbm [shape: bf16[512,512], index: 7, kind: input, shape index: {}]
  %s8 = inlined_call_operand.hbm [shape: f32[1,512], index: 8, kind: input, shape index: {}]
  %s9 = inlined_call_operand.hbm [shape: bf16[512,128], index: 9, kind: input, shape index: {}]
  %s10 = inlined_call_operand.vmem [shape: f32[1,128], index: 10, kind: input, shape index: {}]
  %s11 = inlined_call_operand.hbm [shape: bf16[16,128], index: 11, kind: output, shape index: {}]
  %s12 = sld [smem:[#allocation0]]
  $region90: #{neural_network_forward.1} parent=0
    _
  %s14 = ssub.s32 1, %s12
  %s15 = scalar_select 0, %s14, %s12
  $region1: #{neural_network_forward.1} parent=0
    #allocation2 [shape = 'u8[24576]{0}', space=vmem, size = 0x6000, scoped, tag = 'input window, operand 0, single buffered']
    #allocation3 [shape = 's32[1]{0}', space=sflag, size = 0x4, scoped, tag = 'scoped memory for neural_network_forward.1']
    #allocation4 [shape = 's32[1]{0}', space=sflag, size = 0x4, scoped, tag = 'scoped memory for neural_network_forward.1']
    #allocation5 [shape = 'u8[344064]{0}', space=vmem, size = 0x54000, scoped, tag = 'input window, operand 1, single buffered']
    #allocation6 [shape = 's32[1]{0}', space=sflag, size = 0x4, scoped, tag = 'scoped memory for neural_network_forward.1']
    #allocation7 [shape = 'u8[2048]{0}', space=vmem, size = 0x800, scoped, tag = 'input window, operand 2, single buffered']
    #allocation8 [shape = 'u8[524288]{0}', space=vmem, size = 0x80000, scoped, tag = 'input window, operand 3, single buffered']
    #allocation9 [shape = 's32[1]{0}', space=sflag, size = 0x4, scoped, tag = 'scoped memory for neural_network_forward.1']
    #allocation10 [shape = 'u8[2048]{0}', space=vmem, size = 0x800, scoped, tag = 'input window, operand 4, single buffered']
    #allocation11 [shape = 'u8[524288]{0}', space=vmem, size = 0x80000, scoped, tag = 'input window, operand 5, single buffered']
    #allocation12 [shape = 's32[1]{0}', space=sflag, size = 0x4, scoped, tag = 'scoped memory for neural_network_forward.1']
    #allocation13 [shape = 'u8[524288]{0}', space=vmem, size = 0x80000, scoped, tag = 'input window, operand 7, single buffered']
    #allocation14 [shape = 'u8[2048]{0}', space=vmem, size = 0x800, scoped, tag = 'input window, operand 8, single buffered']
    #allocation15 [shape = 's32[1]{0}', space=sflag, size = 0x4, scoped, tag = 'scoped memory for neural_network_forward.1']
    #allocation16 [shape = 'u8[131072]{0}', space=vmem, size = 0x20000, scoped, tag = 'input window, operand 9, single buffered']
    #allocation17 [shape = 'u8[4096]{0}', space=vmem, size = 0x1000, scoped, tag = 'output window, operand 0, single buffered']
    %16 = vsyncpa [#allocation3], 0
    %17 = vsyncpa [#allocation6], 0
    %18 = vsyncpa [#allocation9], 0
    %19 = vsyncpa [#allocation12], 0
    %20 = vsyncpa [#allocation15], 0
    %21 = vsyncpa [#allocation4], 0
    // Predicated region
    $region2: #{neural_network_forward.1} parent=1 // pred_check
      _
    $region3: #{neural_network_forward.1} parent=1 // pred_check_branch
      %23 = sbr.rel (0) target = $region5
    $region4: #{neural_network_forward.1} parent=1 // pred_region
      %25 = vsyncadd [#allocation3], 0
      %s26 = sshll.u32 %s0, 4
      %s27 = int_to_ptr.hbm [resolvable:$true] %s26
      %s28 = sshll.u32 [#allocation2], 4
      %s29 = int_to_ptr.vmem [resolvable:$true] %s28
      %34 = dma.hbm_to_vmem [thread:$0]  %s27, 768, %s29, [#allocation3], 384, 384, 24
    $region5: #{neural_network_forward.1} parent=1 // pred_fallthru
      _
    // Predicated region
    $region6: #{neural_network_forward.1} parent=1 // pred_check
      _
    $region7: #{neural_network_forward.1} parent=1 // pred_check_branch
      %36 = sbr.rel (0) target = $region9
    $region8: #{neural_network_forward.1} parent=1 // pred_region
      %38 = vsyncadd [#allocation6], 0
      %s39 = sshll.u32 %s1, 4
      %s40 = int_to_ptr.hbm [resolvable:$true] %s39
      %s41 = sshll.u32 [#allocation5], 4
      %s42 = int_to_ptr.vmem [resolvable:$true] %s41
      %47 = dma.hbm_to_vmem [thread:$0]  %s40, 10752, %s42, [#allocation6], 256, 256, 16
    $region9: #{neural_network_forward.1} parent=1 // pred_fallthru
      _
    // Predicated region
    $region10: #{neural_network_forward.1} parent=1 // pred_check
      _
    $region11: #{neural_network_forward.1} parent=1 // pred_check_branch
      %49 = sbr.rel (0) target = $region13
    $region12: #{neural_network_forward.1} parent=1 // pred_region
      %51 = vsyncadd [#allocation6], 0
      %s53 = sshll.u32 %s2, 4
      %s54 = int_to_ptr.hbm [resolvable:$true] %s53
      %s55 = sshll.u32 [#allocation7], 4
      %s56 = int_to_ptr.vmem [resolvable:$true] %s55
      %58 = dma.hbm_to_vmem [thread:$0]  %s54, 64, %s56, [#allocation6]
    $region13: #{neural_network_forward.1} parent=1 // pred_fallthru
      _
    // Predicated region
    $region14: #{neural_network_forward.1} parent=1 // pred_check
      _
    $region15: #{neural_network_forward.1} parent=1 // pred_check_branch
      %60 = sbr.rel (0) target = $region17
    $region16: #{neural_network_forward.1} parent=1 // pred_region
      %62 = vsyncadd [#allocation9], 0
      %s63 = sshll.u32 %s3, 4
      %s64 = int_to_ptr.hbm [resolvable:$true] %s63
      %s65 = sshll.u32 [#allocation8], 4
      %s66 = int_to_ptr.vmem [resolvable:$true] %s65
      %71 = dma.hbm_to_vmem [thread:$0]  %s64, 16384, %s66, [#allocation9], 256, 256, 16
    $region17: #{neural_network_forward.1} parent=1 // pred_fallthru
      _
    // Predicated region
    $region18: #{neural_network_forward.1} parent=1 // pred_check
      _
    $region19: #{neural_network_forward.1} parent=1 // pred_check_branch
      %73 = sbr.rel (0) target = $region21
    $region20: #{neural_network_forward.1} parent=1 // pred_region
      %75 = vsyncadd [#allocation9], 0
      %s77 = sshll.u32 %s4, 4
      %s78 = int_to_ptr.hbm [resolvable:$true] %s77
      %s79 = sshll.u32 [#allocation10], 4
      %s80 = int_to_ptr.vmem [resolvable:$true] %s79
      %82 = dma.hbm_to_vmem [thread:$0]  %s78, 64, %s80, [#allocation9]
    $region21: #{neural_network_forward.1} parent=1 // pred_fallthru
      _
    // Predicated region
    $region22: #{neural_network_forward.1} parent=1 // pred_check
      _
    $region23: #{neural_network_forward.1} parent=1 // pred_check_branch
      %84 = sbr.rel (0) target = $region25
    $region24: #{neural_network_forward.1} parent=1 // pred_region
      %86 = vsyncadd [#allocation12], 0
      %s87 = sshll.u32 %s5, 4
      %s88 = int_to_ptr.hbm [resolvable:$true] %s87
      %s89 = sshll.u32 [#allocation11], 4
      %s90 = int_to_ptr.vmem [resolvable:$true] %s89
      %95 = dma.hbm_to_vmem [thread:$0]  %s88, 16384, %s90, [#allocation12], 256, 256, 16
    $region25: #{neural_network_forward.1} parent=1 // pred_fallthru
      _
    // Predicated region
    $region26: #{neural_network_forward.1} parent=1 // pred_check
      _
    $region27: #{neural_network_forward.1} parent=1 // pred_check_branch
      %97 = sbr.rel (0) target = $region29
    $region28: #{neural_network_forward.1} parent=1 // pred_region
      _
    $region29: #{neural_network_forward.1} parent=1 // pred_fallthru
      _
    // Predicated region
    $region30: #{neural_network_forward.1} parent=1 // pred_check
      _
    $region31: #{neural_network_forward.1} parent=1 // pred_check_branch
      %99 = sbr.rel (0) target = $region33
    $region32: #{neural_network_forward.1} parent=1 // pred_region
      %101 = vsyncadd [#allocation12], 0
      %s102 = sshll.u32 %s7, 4
      %s103 = int_to_ptr.hbm [resolvable:$true] %s102
      %s104 = sshll.u32 [#allocation13], 4
      %s105 = int_to_ptr.vmem [resolvable:$true] %s104
      %110 = dma.hbm_to_vmem [thread:$0]  %s103, 16384, %s105, [#allocation12], 256, 256, 16
    $region33: #{neural_network_forward.1} parent=1 // pred_fallthru
      _
    // Predicated region
    $region34: #{neural_network_forward.1} parent=1 // pred_check
      _
    $region35: #{neural_network_forward.1} parent=1 // pred_check_branch
      %112 = sbr.rel (0) target = $region37
    $region36: #{neural_network_forward.1} parent=1 // pred_region
      %114 = vsyncadd [#allocation15], 0
      %s116 = sshll.u32 %s8, 4
      %s117 = int_to_ptr.hbm [resolvable:$true] %s116
      %s118 = sshll.u32 [#allocation14], 4
      %s119 = int_to_ptr.vmem [resolvable:$true] %s118
      %121 = dma.hbm_to_vmem [thread:$0]  %s117, 64, %s119, [#allocation15]
    $region37: #{neural_network_forward.1} parent=1 // pred_fallthru
      _
    // Predicated region
    $region38: #{neural_network_forward.1} parent=1 // pred_check
      _
    $region39: #{neural_network_forward.1} parent=1 // pred_check_branch
      %123 = sbr.rel (0) target = $region41
    $region40: #{neural_network_forward.1} parent=1 // pred_region
      %125 = vsyncadd [#allocation15], 0
      %s126 = sshll.u32 %s9, 4
      %s127 = int_to_ptr.hbm [resolvable:$true] %s126
      %s128 = sshll.u32 [#allocation16], 4
      %s129 = int_to_ptr.vmem [resolvable:$true] %s128
      %134 = dma.hbm_to_vmem [thread:$0]  %s127, 4096, %s129, [#allocation15], 64, 64, 4
    $region41: #{neural_network_forward.1} parent=1 // pred_fallthru
      _
    // Predicated region
    $region42: #{neural_network_forward.1} parent=1 // pred_check
      _
    $region43: #{neural_network_forward.1} parent=1 // pred_check_branch
      %136 = sbr.rel (0) target = $region45
    $region44: #{neural_network_forward.1} parent=1 // pred_region
      _
    $region45: #{neural_network_forward.1} parent=1 // pred_fallthru
      _
    // Predicated region
    $region46: #{neural_network_forward.1} parent=1 // pred_check
      _
    $region47: #{neural_network_forward.1} parent=1 // pred_check_branch
      %138 = sbr.rel (0) target = $region49
    $region48: #{neural_network_forward.1} parent=1 // pred_region
      %140 = dma.done [#allocation3], 768
    $region49: #{neural_network_forward.1} parent=1 // pred_fallthru
      _
    // Predicated region
    $region50: #{neural_network_forward.1} parent=1 // pred_check
      _
    $region51: #{neural_network_forward.1} parent=1 // pred_check_branch
      %142 = sbr.rel (0) target = $region53
    $region52: #{neural_network_forward.1} parent=1 // pred_region
      %144 = dma.done [#allocation6], 10752
    $region53: #{neural_network_forward.1} parent=1 // pred_fallthru
      _
    // Predicated region
    $region54: #{neural_network_forward.1} parent=1 // pred_check
      _
    $region55: #{neural_network_forward.1} parent=1 // pred_check_branch
      %146 = sbr.rel (0) target = $region57
    $region56: #{neural_network_forward.1} parent=1 // pred_region
      %148 = dma.done [#allocation6], 64
    $region57: #{neural_network_forward.1} parent=1 // pred_fallthru
      _
    // Predicated region
    $region58: #{neural_network_forward.1} parent=1 // pred_check
      _
    $region59: #{neural_network_forward.1} parent=1 // pred_check_branch
      %150 = sbr.rel (0) target = $region61
    $region60: #{neural_network_forward.1} parent=1 // pred_region
      %152 = dma.done [#allocation9], 16384
    $region61: #{neural_network_forward.1} parent=1 // pred_fallthru
      _
    // Predicated region
    $region62: #{neural_network_forward.1} parent=1 // pred_check
      _
    $region63: #{neural_network_forward.1} parent=1 // pred_check_branch
      %154 = sbr.rel (0) target = $region65
    $region64: #{neural_network_forward.1} parent=1 // pred_region
      %156 = dma.done [#allocation9], 64
    $region65: #{neural_network_forward.1} parent=1 // pred_fallthru
      _
    // Predicated region
    $region66: #{neural_network_forward.1} parent=1 // pred_check
      _
    $region67: #{neural_network_forward.1} parent=1 // pred_check_branch
      %158 = sbr.rel (0) target = $region69
    $region68: #{neural_network_forward.1} parent=1 // pred_region
      %160 = dma.done [#allocation12], 16384
    $region69: #{neural_network_forward.1} parent=1 // pred_fallthru
      _
    // Predicated region
    $region70: #{neural_network_forward.1} parent=1 // pred_check
      _
    $region71: #{neural_network_forward.1} parent=1 // pred_check_branch
      %162 = sbr.rel (0) target = $region73
    $region72: #{neural_network_forward.1} parent=1 // pred_region
      %164 = dma.done [#allocation12], 16384
    $region73: #{neural_network_forward.1} parent=1 // pred_fallthru
      _
    // Predicated region
    $region74: #{neural_network_forward.1} parent=1 // pred_check
      _
    $region75: #{neural_network_forward.1} parent=1 // pred_check_branch
      %166 = sbr.rel (0) target = $region77
    $region76: #{neural_network_forward.1} parent=1 // pred_region
      %168 = dma.done [#allocation15], 64
    $region77: #{neural_network_forward.1} parent=1 // pred_fallthru
      _
    // Predicated region
    $region78: #{neural_network_forward.1} parent=1 // pred_check
      _
    $region79: #{neural_network_forward.1} parent=1 // pred_check_branch
      %170 = sbr.rel (0) target = $region81
    $region80: #{neural_network_forward.1} parent=1 // pred_region
      %172 = dma.done [#allocation15], 4096
    $region81: #{neural_network_forward.1} parent=1 // pred_fallthru
      _
    %v174 = vld [vmem:[#allocation2] sm:$0xff]
    %v175 = vld [vmem:[#allocation2 + $0x8] sm:$0xff]
    %v176 = vld [vmem:[#allocation2 + $0x10] sm:$0xff]
    %v177 = vld [vmem:[#allocation2 + $0x18] sm:$0xff]
    %v178 = vld [vmem:[#allocation2 + $0x20] sm:$0xff]
    %v179 = vld [vmem:[#allocation2 + $0x28] sm:$0xff]
    %v180 = vpack.c.bf16 %v177, %v174
    %v181 = vpack.c.bf16 %v178, %v175
    %v182 = vpack.c.bf16 %v179, %v176
    %v183 = vld [vmem:[#allocation5] sm:$0xff]
    %v184 = vld [vmem:[#allocation5 + $0x8] sm:$0xff]
    %v185 = vld [vmem:[#allocation5 + $0x10] sm:$0xff]
    %v186 = vld [vmem:[#allocation5 + $0x18] sm:$0xff]
    %v187 = vld [vmem:[#allocation5 + $0x20] sm:$0xff]
    %v188 = vld [vmem:[#allocation5 + $0x28] sm:$0xff]
    %v189 = vld [vmem:[#allocation5 + $0x30] sm:$0xff]
    %v190 = vld [vmem:[#allocation5 + $0x38] sm:$0xff]
    %v191 = vld [vmem:[#allocation5 + $0x40] sm:$0xff]
    %v192 = vld [vmem:[#allocation5 + $0x48] sm:$0xff]
    %v193 = vld [vmem:[#allocation5 + $0x50] sm:$0xff]
    %v194 = vld [vmem:[#allocation5 + $0x58] sm:$0xff]
    %v195 = vld [vmem:[#allocation5 + $0x60] sm:$0xff]
    %v196 = vld [vmem:[#allocation5 + $0x68] sm:$0xff]
    %v197 = vld [vmem:[#allocation5 + $0x70] sm:$0xff]
    %v198 = vld [vmem:[#allocation5 + $0x78] sm:$0xff]
    %v199 = vld [vmem:[#allocation5 + $0x80] sm:$0xff]
    %v200 = vld [vmem:[#allocation5 + $0x88] sm:$0xff]
    %v201 = vld [vmem:[#allocation5 + $0x90] sm:$0xff]
    %v202 = vld [vmem:[#allocation5 + $0x98] sm:$0xff]
    %v203 = vld [vmem:[#allocation5 + $0xa0] sm:$0xff]
    %v204 = vld [vmem:[#allocation5 + $0xa8] sm:$0xff]
    %v205 = vld [vmem:[#allocation5 + $0xb0] sm:$0xff]
    %v206 = vld [vmem:[#allocation5 + $0xb8] sm:$0xff]
    %v207 = vld [vmem:[#allocation5 + $0xc0] sm:$0xff]
    %v208 = vld [vmem:[#allocation5 + $0xc8] sm:$0xff]
    %v209 = vld [vmem:[#allocation5 + $0xd0] sm:$0xff]
    %v210 = vld [vmem:[#allocation5 + $0xd8] sm:$0xff]
    %v211 = vld [vmem:[#allocation5 + $0xe0] sm:$0xff]
    %v212 = vld [vmem:[#allocation5 + $0xe8] sm:$0xff]
    %v213 = vld [vmem:[#allocation5 + $0xf0] sm:$0xff]
    %v214 = vld [vmem:[#allocation5 + $0xf8] sm:$0xff]
    %v215 = vld [vmem:[#allocation5 + $0x100] sm:$0xff]
    %v216 = vld [vmem:[#allocation5 + $0x108] sm:$0xff]
    %v217 = vld [vmem:[#allocation5 + $0x110] sm:$0xff]
    %v218 = vld [vmem:[#allocation5 + $0x118] sm:$0xff]
    %v219 = vld [vmem:[#allocation5 + $0x120] sm:$0xff]
    %v220 = vld [vmem:[#allocation5 + $0x128] sm:$0xff]
    %v221 = vld [vmem:[#allocation5 + $0x130] sm:$0xff]
    %v222 = vld [vmem:[#allocation5 + $0x138] sm:$0xff]
    %v223 = vld [vmem:[#allocation5 + $0x140] sm:$0xff]
    %v224 = vld [vmem:[#allocation5 + $0x148] sm:$0xff]
    %v225 = vld [vmem:[#allocation5 + $0x150] sm:$0xff]
    %v226 = vld [vmem:[#allocation5 + $0x158] sm:$0xff]
    %v227 = vld [vmem:[#allocation5 + $0x160] sm:$0xff]
    %v228 = vld [vmem:[#allocation5 + $0x168] sm:$0xff]
    %v229 = vld [vmem:[#allocation5 + $0x170] sm:$0xff]
    %v230 = vld [vmem:[#allocation5 + $0x178] sm:$0xff]
    %v231 = vld [vmem:[#allocation5 + $0x180] sm:$0xff]
    %v232 = vld [vmem:[#allocation5 + $0x188] sm:$0xff]
    %v233 = vld [vmem:[#allocation5 + $0x190] sm:$0xff]
    %v234 = vld [vmem:[#allocation5 + $0x198] sm:$0xff]
    %v235 = vld [vmem:[#allocation5 + $0x1a0] sm:$0xff]
    %v236 = vld [vmem:[#allocation5 + $0x1a8] sm:$0xff]
    %v237 = vld [vmem:[#allocation5 + $0x1b0] sm:$0xff]
    %v238 = vld [vmem:[#allocation5 + $0x1b8] sm:$0xff]
    %v239 = vld [vmem:[#allocation5 + $0x1c0] sm:$0xff]
    %v240 = vld [vmem:[#allocation5 + $0x1c8] sm:$0xff]
    %v241 = vld [vmem:[#allocation5 + $0x1d0] sm:$0xff]
    %v242 = vld [vmem:[#allocation5 + $0x1d8] sm:$0xff]
    %v243 = vld [vmem:[#allocation5 + $0x1e0] sm:$0xff]
    %v244 = vld [vmem:[#allocation5 + $0x1e8] sm:$0xff]
    %v245 = vld [vmem:[#allocation5 + $0x1f0] sm:$0xff]
    %v246 = vld [vmem:[#allocation5 + $0x1f8] sm:$0xff]
    %v247 = vld [vmem:[#allocation5 + $0x200] sm:$0xff]
    %v248 = vld [vmem:[#allocation5 + $0x208] sm:$0xff]
    %v249 = vld [vmem:[#allocation5 + $0x210] sm:$0xff]
    %v250 = vld [vmem:[#allocation5 + $0x218] sm:$0xff]
    %v251 = vld [vmem:[#allocation5 + $0x220] sm:$0xff]
    %v252 = vld [vmem:[#allocation5 + $0x228] sm:$0xff]
    %v253 = vld [vmem:[#allocation5 + $0x230] sm:$0xff]
    %v254 = vld [vmem:[#allocation5 + $0x238] sm:$0xff]
    %v255 = vld [vmem:[#allocation5 + $0x240] sm:$0xff]
    %v256 = vld [vmem:[#allocation5 + $0x248] sm:$0xff]
    %v257 = vld [vmem:[#allocation5 + $0x250] sm:$0xff]
    %v258 = vld [vmem:[#allocation5 + $0x258] sm:$0xff]
    %v259 = vld [vmem:[#allocation5 + $0x260] sm:$0xff]
    %v260 = vld [vmem:[#allocation5 + $0x268] sm:$0xff]
    %v261 = vld [vmem:[#allocation5 + $0x270] sm:$0xff]
    %v262 = vld [vmem:[#allocation5 + $0x278] sm:$0xff]
    %v263 = vld [vmem:[#allocation5 + $0x280] sm:$0xff]
    %v264 = vld [vmem:[#allocation5 + $0x288] sm:$0xff]
    %v265 = vld [vmem:[#allocation5 + $0x290] sm:$0x11]
    %v266 = vld [vmem:[#allocation5 + $0x298] sm:$0x11]
    %v267 = vld [vmem:[#allocation7] sm:$0xf]
    %v269 = vperm.slane %v267, 0
    %v270 = vperm.slane %v267, 1
    %v271 = vperm.slane %v267, 2
    %v272 = vperm.slane %v267, 3
    %v361 = vunpack.c.l.b16 %v183
    %v362 = vunpack.c.h.b16 %v183
    %v363 = vunpack.c.l.b16 %v184
    %v364 = vunpack.c.h.b16 %v184
    %v365 = vunpack.c.l.b16 %v185
    %v366 = vunpack.c.h.b16 %v185
    %v367 = vunpack.c.l.b16 %v186
    %v368 = vunpack.c.h.b16 %v186
    %v369 = vunpack.c.l.b16 %v187
    %v370 = vunpack.c.h.b16 %v187
    %v371 = vunpack.c.l.b16 %v188
    %v372 = vunpack.c.h.b16 %v188
    %v373 = vunpack.c.l.b16 %v189
    %v374 = vunpack.c.h.b16 %v189
    %v375 = vunpack.c.l.b16 %v190
    %v376 = vunpack.c.h.b16 %v190
    %v377 = vunpack.c.l.b16 %v191
    %v378 = vunpack.c.h.b16 %v191
    %v379 = vunpack.c.l.b16 %v192
    %v380 = vunpack.c.h.b16 %v192
    %v381 = vunpack.c.l.b16 %v193
    %v382 = vunpack.c.h.b16 %v193
    %v383 = vunpack.c.l.b16 %v194
    %v384 = vunpack.c.h.b16 %v194
    %v385 = vunpack.c.l.b16 %v195
    %v386 = vunpack.c.h.b16 %v195
    %v387 = vunpack.c.l.b16 %v196
    %v388 = vunpack.c.h.b16 %v196
    %v389 = vunpack.c.l.b16 %v197
    %v390 = vunpack.c.h.b16 %v197
    %v391 = vunpack.c.l.b16 %v198
    %v392 = vunpack.c.h.b16 %v198
    %v393 = vunpack.c.l.b16 %v199
    %v394 = vunpack.c.h.b16 %v199
    %v395 = vunpack.c.l.b16 %v200
    %v396 = vunpack.c.h.b16 %v200
    %v397 = vunpack.c.l.b16 %v201
    %v398 = vunpack.c.h.b16 %v201
    %v399 = vunpack.c.l.b16 %v202
    %v400 = vunpack.c.h.b16 %v202
    %v401 = vunpack.c.l.b16 %v203
    %v402 = vunpack.c.h.b16 %v203
    %v403 = vunpack.c.l.b16 %v204
    %v404 = vunpack.c.h.b16 %v204
    %v405 = vunpack.c.l.b16 %v205
    %v406 = vunpack.c.h.b16 %v205
    %v407 = vunpack.c.l.b16 %v206
    %v408 = vunpack.c.h.b16 %v206
    %v409 = vunpack.c.l.b16 %v207
    %v410 = vunpack.c.h.b16 %v207
    %v411 = vunpack.c.l.b16 %v208
    %v412 = vunpack.c.h.b16 %v208
    %v413 = vunpack.c.l.b16 %v209
    %v414 = vunpack.c.h.b16 %v209
    %v415 = vunpack.c.l.b16 %v210
    %v416 = vunpack.c.h.b16 %v210
    %v417 = vunpack.c.l.b16 %v211
    %v418 = vunpack.c.h.b16 %v211
    %v419 = vunpack.c.l.b16 %v212
    %v420 = vunpack.c.h.b16 %v212
    %v421 = vunpack.c.l.b16 %v213
    %v422 = vunpack.c.h.b16 %v213
    %v423 = vunpack.c.l.b16 %v214
    %v424 = vunpack.c.h.b16 %v214
    %v425 = vunpack.c.l.b16 %v215
    %v426 = vunpack.c.h.b16 %v215
    %v427 = vunpack.c.l.b16 %v216
    %v428 = vunpack.c.h.b16 %v216
    %v429 = vunpack.c.l.b16 %v217
    %v430 = vunpack.c.h.b16 %v217
    %v431 = vunpack.c.l.b16 %v218
    %v432 = vunpack.c.h.b16 %v218
    %v433 = vunpack.c.l.b16 %v219
    %v434 = vunpack.c.h.b16 %v219
    %v435 = vunpack.c.l.b16 %v220
    %v436 = vunpack.c.h.b16 %v220
    %v437 = vunpack.c.l.b16 %v221
    %v438 = vunpack.c.h.b16 %v221
    %v439 = vunpack.c.l.b16 %v222
    %v440 = vunpack.c.h.b16 %v222
    %v441 = vunpack.c.l.b16 %v223
    %v442 = vunpack.c.h.b16 %v223
    %v443 = vunpack.c.l.b16 %v224
    %v444 = vunpack.c.h.b16 %v224
    %v445 = vunpack.c.l.b16 %v225
    %v446 = vunpack.c.h.b16 %v225
    %v447 = vunpack.c.l.b16 %v226
    %v448 = vunpack.c.h.b16 %v226
    %v449 = vunpack.c.l.b16 %v227
    %v450 = vunpack.c.h.b16 %v227
    %v451 = vunpack.c.l.b16 %v228
    %v452 = vunpack.c.h.b16 %v228
    %v453 = vunpack.c.l.b16 %v229
    %v454 = vunpack.c.h.b16 %v229
    %v455 = vunpack.c.l.b16 %v230
    %v456 = vunpack.c.h.b16 %v230
    %v457 = vunpack.c.l.b16 %v231
    %v458 = vunpack.c.h.b16 %v231
    %v459 = vunpack.c.l.b16 %v232
    %v460 = vunpack.c.h.b16 %v232
    %v461 = vunpack.c.l.b16 %v233
    %v462 = vunpack.c.h.b16 %v233
    %v463 = vunpack.c.l.b16 %v234
    %v464 = vunpack.c.h.b16 %v234
    %v465 = vunpack.c.l.b16 %v235
    %v466 = vunpack.c.h.b16 %v235
    %v467 = vunpack.c.l.b16 %v236
    %v468 = vunpack.c.h.b16 %v236
    %v469 = vunpack.c.l.b16 %v237
    %v470 = vunpack.c.h.b16 %v237
    %v471 = vunpack.c.l.b16 %v238
    %v472 = vunpack.c.h.b16 %v238
    %v473 = vunpack.c.l.b16 %v239
    %v474 = vunpack.c.h.b16 %v239
    %v475 = vunpack.c.l.b16 %v240
    %v476 = vunpack.c.h.b16 %v240
    %v477 = vunpack.c.l.b16 %v241
    %v478 = vunpack.c.h.b16 %v241
    %v479 = vunpack.c.l.b16 %v242
    %v480 = vunpack.c.h.b16 %v242
    %v481 = vunpack.c.l.b16 %v243
    %v482 = vunpack.c.h.b16 %v243
    %v483 = vunpack.c.l.b16 %v244
    %v484 = vunpack.c.h.b16 %v244
    %v485 = vunpack.c.l.b16 %v245
    %v486 = vunpack.c.h.b16 %v245
    %v487 = vunpack.c.l.b16 %v246
    %v488 = vunpack.c.h.b16 %v246
    %v489 = vunpack.c.l.b16 %v247
    %v490 = vunpack.c.h.b16 %v247
    %v491 = vunpack.c.l.b16 %v248
    %v492 = vunpack.c.h.b16 %v248
    %v493 = vunpack.c.l.b16 %v249
    %v494 = vunpack.c.h.b16 %v249
    %v495 = vunpack.c.l.b16 %v250
    %v496 = vunpack.c.h.b16 %v250
    %v497 = vunpack.c.l.b16 %v251
    %v498 = vunpack.c.h.b16 %v251
    %v499 = vunpack.c.l.b16 %v252
    %v500 = vunpack.c.h.b16 %v252
    %v501 = vunpack.c.l.b16 %v253
    %v502 = vunpack.c.h.b16 %v253
    %v503 = vunpack.c.l.b16 %v254
    %v504 = vunpack.c.h.b16 %v254
    %v505 = vunpack.c.l.b16 %v255
    %v506 = vunpack.c.h.b16 %v255
    %v507 = vunpack.c.l.b16 %v256
    %v508 = vunpack.c.h.b16 %v256
    %v509 = vunpack.c.l.b16 %v257
    %v510 = vunpack.c.h.b16 %v257
    %v511 = vunpack.c.l.b16 %v258
    %v512 = vunpack.c.h.b16 %v258
    %v513 = vunpack.c.l.b16 %v259
    %v514 = vunpack.c.h.b16 %v259
    %v515 = vunpack.c.l.b16 %v260
    %v516 = vunpack.c.h.b16 %v260
    %v517 = vunpack.c.l.b16 %v261
    %v518 = vunpack.c.h.b16 %v261
    %v519 = vunpack.c.l.b16 %v262
    %v520 = vunpack.c.h.b16 %v262
    %v521 = vunpack.c.l.b16 %v263
    %v522 = vunpack.c.h.b16 %v263
    %v523 = vunpack.c.l.b16 %v264
    %v524 = vunpack.c.h.b16 %v264
    %v525 = vunpack.c.l.b16 %v265
    %v526 = vunpack.c.h.b16 %v265
    %v527 = vunpack.c.l.b16 %v266
    %v528 = vunpack.c.h.b16 %v266
    %v529 = vpack.c.b16 %v365, %v361
    %v530 = vpack.c.b16 %v366, %v362
    %v531 = vpack.c.b16 %v367, %v363
    %v532 = vpack.c.b16 %v368, %v364
    %v533 = vpack.c.b16 %v373, %v369
    %v534 = vpack.c.b16 %v374, %v370
    %v535 = vpack.c.b16 %v375, %v371
    %v536 = vpack.c.b16 %v376, %v372
    %v537 = vpack.c.b16 %v381, %v377
    %v538 = vpack.c.b16 %v382, %v378
    %v539 = vpack.c.b16 %v383, %v379
    %v540 = vpack.c.b16 %v384, %v380
    %v541 = vpack.c.b16 %v389, %v385
    %v542 = vpack.c.b16 %v390, %v386
    %v543 = vpack.c.b16 %v391, %v387
    %v544 = vpack.c.b16 %v392, %v388
    %v545 = vpack.c.b16 %v397, %v393
    %v546 = vpack.c.b16 %v398, %v394
    %v547 = vpack.c.b16 %v399, %v395
    %v548 = vpack.c.b16 %v400, %v396
    %v549 = vpack.c.b16 %v405, %v401
    %v550 = vpack.c.b16 %v406, %v402
    %v551 = vpack.c.b16 %v407, %v403
    %v552 = vpack.c.b16 %v408, %v404
    %v553 = vpack.c.b16 %v413, %v409
    %v554 = vpack.c.b16 %v414, %v410
    %v555 = vpack.c.b16 %v415, %v411
    %v556 = vpack.c.b16 %v416, %v412
    %v557 = vpack.c.b16 %v421, %v417
    %v558 = vpack.c.b16 %v422, %v418
    %v559 = vpack.c.b16 %v423, %v419
    %v560 = vpack.c.b16 %v424, %v420
    %v561 = vpack.c.b16 %v429, %v425
    %v562 = vpack.c.b16 %v430, %v426
    %v563 = vpack.c.b16 %v431, %v427
    %v564 = vpack.c.b16 %v432, %v428
    %v565 = vpack.c.b16 %v437, %v433
    %v566 = vpack.c.b16 %v438, %v434
    %v567 = vpack.c.b16 %v439, %v435
    %v568 = vpack.c.b16 %v440, %v436
    %v569 = vpack.c.b16 %v445, %v441
    %v570 = vpack.c.b16 %v446, %v442
    %v571 = vpack.c.b16 %v447, %v443
    %v572 = vpack.c.b16 %v448, %v444
    %v573 = vpack.c.b16 %v453, %v449
    %v574 = vpack.c.b16 %v454, %v450
    %v575 = vpack.c.b16 %v455, %v451
    %v576 = vpack.c.b16 %v456, %v452
    %v577 = vpack.c.b16 %v461, %v457
    %v578 = vpack.c.b16 %v462, %v458
    %v579 = vpack.c.b16 %v463, %v459
    %v580 = vpack.c.b16 %v464, %v460
    %v581 = vpack.c.b16 %v469, %v465
    %v582 = vpack.c.b16 %v470, %v466
    %v583 = vpack.c.b16 %v471, %v467
    %v584 = vpack.c.b16 %v472, %v468
    %v585 = vpack.c.b16 %v477, %v473
    %v586 = vpack.c.b16 %v478, %v474
    %v587 = vpack.c.b16 %v479, %v475
    %v588 = vpack.c.b16 %v480, %v476
    %v589 = vpack.c.b16 %v485, %v481
    %v590 = vpack.c.b16 %v486, %v482
    %v591 = vpack.c.b16 %v487, %v483
    %v592 = vpack.c.b16 %v488, %v484
    %v593 = vpack.c.b16 %v493, %v489
    %v594 = vpack.c.b16 %v494, %v490
    %v595 = vpack.c.b16 %v495, %v491
    %v596 = vpack.c.b16 %v496, %v492
    %v597 = vpack.c.b16 %v501, %v497
    %v598 = vpack.c.b16 %v502, %v498
    %v599 = vpack.c.b16 %v503, %v499
    %v600 = vpack.c.b16 %v504, %v500
    %v601 = vpack.c.b16 %v509, %v505
    %v602 = vpack.c.b16 %v510, %v506
    %v603 = vpack.c.b16 %v511, %v507
    %v604 = vpack.c.b16 %v512, %v508
    %v605 = vpack.c.b16 %v517, %v513
    %v606 = vpack.c.b16 %v518, %v514
    %v607 = vpack.c.b16 %v519, %v515
    %v608 = vpack.c.b16 %v520, %v516
    %v609 = vpack.c.b16 %v525, %v521
    %v610 = vpack.c.b16 %v526, %v522
    %v611 = vpack.c.b16 %v527, %v523
    %v612 = vpack.c.b16 %v528, %v524
    %vm693 = vcmask 596992
    %v695 = vsel %vm693, %v182, 0
    %vm697 = vcmask 1043456
    %vm698 = vcmask 1044480
    %v699 = vsel %vm697, 4294967295, 65535
    %v700 = vsel %vm698, %v699, 0
    %v702 = vand.u32 %v609, %v700
    %v705 = vand.u32 %v610, %v700
    %v708 = vand.u32 %v611, %v700
    %v711 = vand.u32 %v612, %v700
    %713 = vmatpush.bf16.msra.mxu0 %v557
    %714 = vmatpush.bf16.msra.mxu0 %v553
    %715 = vmatpush.bf16.msra.mxu0 %v549
    %716 = vmatpush.bf16.msra.mxu0 %v545
    %717 = vmatpush.bf16.msra.mxu0 %v541
    %718 = vmatpush.bf16.msra.mxu0 %v537
    %719 = vmatpush.bf16.msra.mxu0 %v533
    %720 = vmatpush.bf16.msra.mxu0 %v529
    %721 = vmatmul.bf16.gmra.mxu0 %v180
    %v722 = vpop.f32.mrf.mxu0
    %v723 = vadd.f32 %v269, %v722
    %v724 = vpop.f32.mrf.mxu0
    %v725 = vadd.f32 %v269, %v724
    %726 = vdwg.mxu0
    %727 = vmatpush.bf16.msra.mxu0 %v589
    %728 = vmatpush.bf16.msra.mxu0 %v585
    %729 = vmatpush.bf16.msra.mxu0 %v581
    %730 = vmatpush.bf16.msra.mxu0 %v577
    %731 = vmatpush.bf16.msra.mxu0 %v573
    %732 = vmatpush.bf16.msra.mxu0 %v569
    %733 = vmatpush.bf16.msra.mxu0 %v565
    %734 = vmatpush.bf16.msra.mxu0 %v561
    %735 = vmatmul.bf16.gmra.mxu0 %v181
    %v736 = vpop.f32.mrf.mxu0
    %v737 = vadd.f32 %v723, %v736
    %v738 = vpop.f32.mrf.mxu0
    %v739 = vadd.f32 %v725, %v738
    %740 = vdwg.mxu0
    %741 = vmatpush.bf16.msra.mxu0 0
    %742 = vmatpush.bf16.msra.mxu0 0
    %743 = vmatpush.bf16.msra.mxu0 0
    %744 = vmatpush.bf16.msra.mxu0 %v702
    %745 = vmatpush.bf16.msra.mxu0 %v605
    %746 = vmatpush.bf16.msra.mxu0 %v601
    %747 = vmatpush.bf16.msra.mxu0 %v597
    %748 = vmatpush.bf16.msra.mxu0 %v593
    %749 = vmatmul.bf16.gmra.mxu0 %v695
    %v750 = vpop.f32.mrf.mxu0
    %v751 = vadd.f32 %v737, %v750
    %v752 = vpop.f32.mrf.mxu0
    %v753 = vadd.f32 %v739, %v752
    %754 = vdwg.mxu0
    %755 = vmatpush.bf16.msra.mxu0 %v558
    %756 = vmatpush.bf16.msra.mxu0 %v554
    %757 = vmatpush.bf16.msra.mxu0 %v550
    %758 = vmatpush.bf16.msra.mxu0 %v546
    %759 = vmatpush.bf16.msra.mxu0 %v542
    %760 = vmatpush.bf16.msra.mxu0 %v538
    %761 = vmatpush.bf16.msra.mxu0 %v534
    %762 = vmatpush.bf16.msra.mxu0 %v530
    %763 = vmatmul.bf16.gmra.mxu0 %v180
    %v764 = vpop.f32.mrf.mxu0
    %v765 = vadd.f32 %v270, %v764
    %v766 = vpop.f32.mrf.mxu0
    %v767 = vadd.f32 %v270, %v766
    %768 = vdwg.mxu0
    %769 = vmatpush.bf16.msra.mxu0 %v590
    %770 = vmatpush.bf16.msra.mxu0 %v586
    %771 = vmatpush.bf16.msra.mxu0 %v582
    %772 = vmatpush.bf16.msra.mxu0 %v578
    %773 = vmatpush.bf16.msra.mxu0 %v574
    %774 = vmatpush.bf16.msra.mxu0 %v570
    %775 = vmatpush.bf16.msra.mxu0 %v566
    %776 = vmatpush.bf16.msra.mxu0 %v562
    %777 = vmatmul.bf16.gmra.mxu0 %v181
    %v778 = vpop.f32.mrf.mxu0
    %v779 = vadd.f32 %v765, %v778
    %v780 = vpop.f32.mrf.mxu0
    %v781 = vadd.f32 %v767, %v780
    %782 = vdwg.mxu0
    %783 = vmatpush.bf16.msra.mxu0 0
    %784 = vmatpush.bf16.msra.mxu0 0
    %785 = vmatpush.bf16.msra.mxu0 0
    %786 = vmatpush.bf16.msra.mxu0 %v705
    %787 = vmatpush.bf16.msra.mxu0 %v606
    %788 = vmatpush.bf16.msra.mxu0 %v602
    %789 = vmatpush.bf16.msra.mxu0 %v598
    %790 = vmatpush.bf16.msra.mxu0 %v594
    %791 = vmatmul.bf16.gmra.mxu0 %v695
    %v792 = vpop.f32.mrf.mxu0
    %v793 = vadd.f32 %v779, %v792
    %v794 = vpop.f32.mrf.mxu0
    %v795 = vadd.f32 %v781, %v794
    %796 = vdwg.mxu0
    %797 = vmatpush.bf16.msra.mxu0 %v559
    %798 = vmatpush.bf16.msra.mxu0 %v555
    %799 = vmatpush.bf16.msra.mxu0 %v551
    %800 = vmatpush.bf16.msra.mxu0 %v547
    %801 = vmatpush.bf16.msra.mxu0 %v543
    %802 = vmatpush.bf16.msra.mxu0 %v539
    %803 = vmatpush.bf16.msra.mxu0 %v535
    %804 = vmatpush.bf16.msra.mxu0 %v531
    %805 = vmatmul.bf16.gmra.mxu0 %v180
    %v806 = vpop.f32.mrf.mxu0
    %v807 = vadd.f32 %v271, %v806
    %v808 = vpop.f32.mrf.mxu0
    %v809 = vadd.f32 %v271, %v808
    %810 = vdwg.mxu0
    %811 = vmatpush.bf16.msra.mxu0 %v591
    %812 = vmatpush.bf16.msra.mxu0 %v587
    %813 = vmatpush.bf16.msra.mxu0 %v583
    %814 = vmatpush.bf16.msra.mxu0 %v579
    %815 = vmatpush.bf16.msra.mxu0 %v575
    %816 = vmatpush.bf16.msra.mxu0 %v571
    %817 = vmatpush.bf16.msra.mxu0 %v567
    %818 = vmatpush.bf16.msra.mxu0 %v563
    %819 = vmatmul.bf16.gmra.mxu0 %v181
    %v820 = vpop.f32.mrf.mxu0
    %v821 = vadd.f32 %v807, %v820
    %v822 = vpop.f32.mrf.mxu0
    %v823 = vadd.f32 %v809, %v822
    %824 = vdwg.mxu0
    %825 = vmatpush.bf16.msra.mxu0 0
    %826 = vmatpush.bf16.msra.mxu0 0
    %827 = vmatpush.bf16.msra.mxu0 0
    %828 = vmatpush.bf16.msra.mxu0 %v708
    %829 = vmatpush.bf16.msra.mxu0 %v607
    %830 = vmatpush.bf16.msra.mxu0 %v603
    %831 = vmatpush.bf16.msra.mxu0 %v599
    %832 = vmatpush.bf16.msra.mxu0 %v595
    %833 = vmatmul.bf16.gmra.mxu0 %v695
    %v834 = vpop.f32.mrf.mxu0
    %v835 = vadd.f32 %v821, %v834
    %v836 = vpop.f32.mrf.mxu0
    %v837 = vadd.f32 %v823, %v836
    %838 = vdwg.mxu0
    %839 = vmatpush.bf16.msra.mxu0 %v560
    %840 = vmatpush.bf16.msra.mxu0 %v556
    %841 = vmatpush.bf16.msra.mxu0 %v552
    %842 = vmatpush.bf16.msra.mxu0 %v548
    %843 = vmatpush.bf16.msra.mxu0 %v544
    %844 = vmatpush.bf16.msra.mxu0 %v540
    %845 = vmatpush.bf16.msra.mxu0 %v536
    %846 = vmatpush.bf16.msra.mxu0 %v532
    %847 = vmatmul.bf16.gmra.mxu0 %v180
    %v848 = vpop.f32.mrf.mxu0
    %v849 = vadd.f32 %v272, %v848
    %v850 = vpop.f32.mrf.mxu0
    %v851 = vadd.f32 %v272, %v850
    %852 = vdwg.mxu0
    %853 = vmatpush.bf16.msra.mxu0 %v592
    %854 = vmatpush.bf16.msra.mxu0 %v588
    %855 = vmatpush.bf16.msra.mxu0 %v584
    %856 = vmatpush.bf16.msra.mxu0 %v580
    %857 = vmatpush.bf16.msra.mxu0 %v576
    %858 = vmatpush.bf16.msra.mxu0 %v572
    %859 = vmatpush.bf16.msra.mxu0 %v568
    %860 = vmatpush.bf16.msra.mxu0 %v564
    %861 = vmatmul.bf16.gmra.mxu0 %v181
    %v862 = vpop.f32.mrf.mxu0
    %v863 = vadd.f32 %v849, %v862
    %v864 = vpop.f32.mrf.mxu0
    %v865 = vadd.f32 %v851, %v864
    %866 = vdwg.mxu0
    %867 = vmatpush.bf16.msra.mxu0 0
    %868 = vmatpush.bf16.msra.mxu0 0
    %869 = vmatpush.bf16.msra.mxu0 0
    %870 = vmatpush.bf16.msra.mxu0 %v711
    %871 = vmatpush.bf16.msra.mxu0 %v608
    %872 = vmatpush.bf16.msra.mxu0 %v604
    %873 = vmatpush.bf16.msra.mxu0 %v600
    %874 = vmatpush.bf16.msra.mxu0 %v596
    %875 = vmatmul.bf16.gmra.mxu0 %v695
    %v876 = vpop.f32.mrf.mxu0
    %v877 = vadd.f32 %v863, %v876
    %v878 = vpop.f32.mrf.mxu0
    %v879 = vadd.f32 %v865, %v878
    %880 = vdwg.mxu0
    %v881 = vmax.f32 %v751, 0.0
    %v882 = vmax.f32 %v793, 0.0
    %v883 = vmax.f32 %v835, 0.0
    %v884 = vmax.f32 %v877, 0.0
    %v885 = vmax.f32 %v753, 0.0
    %v886 = vmax.f32 %v795, 0.0
    %v887 = vmax.f32 %v837, 0.0
    %v888 = vmax.f32 %v879, 0.0
    %v889 = vpack.c.bf16 %v885, %v881
    %v890 = vpack.c.bf16 %v886, %v882
    %v891 = vpack.c.bf16 %v887, %v883
    %v892 = vpack.c.bf16 %v888, %v884
    %v893 = vld [vmem:[#allocation8] sm:$0xff]
    %v894 = vld [vmem:[#allocation8 + $0x8] sm:$0xff]
    %v895 = vld [vmem:[#allocation8 + $0x10] sm:$0xff]
    %v896 = vld [vmem:[#allocation8 + $0x18] sm:$0xff]
    %v897 = vld [vmem:[#allocation8 + $0x20] sm:$0xff]
    %v898 = vld [vmem:[#allocation8 + $0x28] sm:$0xff]
    %v899 = vld [vmem:[#allocation8 + $0x30] sm:$0xff]
    %v900 = vld [vmem:[#allocation8 + $0x38] sm:$0xff]
    %v901 = vld [vmem:[#allocation8 + $0x40] sm:$0xff]
    %v902 = vld [vmem:[#allocation8 + $0x48] sm:$0xff]
    %v903 = vld [vmem:[#allocation8 + $0x50] sm:$0xff]
    %v904 = vld [vmem:[#allocation8 + $0x58] sm:$0xff]
    %v905 = vld [vmem:[#allocation8 + $0x60] sm:$0xff]
    %v906 = vld [vmem:[#allocation8 + $0x68] sm:$0xff]
    %v907 = vld [vmem:[#allocation8 + $0x70] sm:$0xff]
    %v908 = vld [vmem:[#allocation8 + $0x78] sm:$0xff]
    %v909 = vld [vmem:[#allocation8 + $0x80] sm:$0xff]
    %v910 = vld [vmem:[#allocation8 + $0x88] sm:$0xff]
    %v911 = vld [vmem:[#allocation8 + $0x90] sm:$0xff]
    %v912 = vld [vmem:[#allocation8 + $0x98] sm:$0xff]
    %v913 = vld [vmem:[#allocation8 + $0xa0] sm:$0xff]
    %v914 = vld [vmem:[#allocation8 + $0xa8] sm:$0xff]
    %v915 = vld [vmem:[#allocation8 + $0xb0] sm:$0xff]
    %v916 = vld [vmem:[#allocation8 + $0xb8] sm:$0xff]
    %v917 = vld [vmem:[#allocation8 + $0xc0] sm:$0xff]
    %v918 = vld [vmem:[#allocation8 + $0xc8] sm:$0xff]
    %v919 = vld [vmem:[#allocation8 + $0xd0] sm:$0xff]
    %v920 = vld [vmem:[#allocation8 + $0xd8] sm:$0xff]
    %v921 = vld [vmem:[#allocation8 + $0xe0] sm:$0xff]
    %v922 = vld [vmem:[#allocation8 + $0xe8] sm:$0xff]
    %v923 = vld [vmem:[#allocation8 + $0xf0] sm:$0xff]
    %v924 = vld [vmem:[#allocation8 + $0xf8] sm:$0xff]
    %v925 = vld [vmem:[#allocation8 + $0x100] sm:$0xff]
    %v926 = vld [vmem:[#allocation8 + $0x108] sm:$0xff]
    %v927 = vld [vmem:[#allocation8 + $0x110] sm:$0xff]
    %v928 = vld [vmem:[#allocation8 + $0x118] sm:$0xff]
    %v929 = vld [vmem:[#allocation8 + $0x120] sm:$0xff]
    %v930 = vld [vmem:[#allocation8 + $0x128] sm:$0xff]
    %v931 = vld [vmem:[#allocation8 + $0x130] sm:$0xff]
    %v932 = vld [vmem:[#allocation8 + $0x138] sm:$0xff]
    %v933 = vld [vmem:[#allocation8 + $0x140] sm:$0xff]
    %v934 = vld [vmem:[#allocation8 + $0x148] sm:$0xff]
    %v935 = vld [vmem:[#allocation8 + $0x150] sm:$0xff]
    %v936 = vld [vmem:[#allocation8 + $0x158] sm:$0xff]
    %v937 = vld [vmem:[#allocation8 + $0x160] sm:$0xff]
    %v938 = vld [vmem:[#allocation8 + $0x168] sm:$0xff]
    %v939 = vld [vmem:[#allocation8 + $0x170] sm:$0xff]
    %v940 = vld [vmem:[#allocation8 + $0x178] sm:$0xff]
    %v941 = vld [vmem:[#allocation8 + $0x180] sm:$0xff]
    %v942 = vld [vmem:[#allocation8 + $0x188] sm:$0xff]
    %v943 = vld [vmem:[#allocation8 + $0x190] sm:$0xff]
    %v944 = vld [vmem:[#allocation8 + $0x198] sm:$0xff]
    %v945 = vld [vmem:[#allocation8 + $0x1a0] sm:$0xff]
    %v946 = vld [vmem:[#allocation8 + $0x1a8] sm:$0xff]
    %v947 = vld [vmem:[#allocation8 + $0x1b0] sm:$0xff]
    %v948 = vld [vmem:[#allocation8 + $0x1b8] sm:$0xff]
    %v949 = vld [vmem:[#allocation8 + $0x1c0] sm:$0xff]
    %v950 = vld [vmem:[#allocation8 + $0x1c8] sm:$0xff]
    %v951 = vld [vmem:[#allocation8 + $0x1d0] sm:$0xff]
    %v952 = vld [vmem:[#allocation8 + $0x1d8] sm:$0xff]
    %v953 = vld [vmem:[#allocation8 + $0x1e0] sm:$0xff]
    %v954 = vld [vmem:[#allocation8 + $0x1e8] sm:$0xff]
    %v955 = vld [vmem:[#allocation8 + $0x1f0] sm:$0xff]
    %v956 = vld [vmem:[#allocation8 + $0x1f8] sm:$0xff]
    %v957 = vld [vmem:[#allocation8 + $0x200] sm:$0xff]
    %v958 = vld [vmem:[#allocation8 + $0x208] sm:$0xff]
    %v959 = vld [vmem:[#allocation8 + $0x210] sm:$0xff]
    %v960 = vld [vmem:[#allocation8 + $0x218] sm:$0xff]
    %v961 = vld [vmem:[#allocation8 + $0x220] sm:$0xff]
    %v962 = vld [vmem:[#allocation8 + $0x228] sm:$0xff]
    %v963 = vld [vmem:[#allocation8 + $0x230] sm:$0xff]
    %v964 = vld [vmem:[#allocation8 + $0x238] sm:$0xff]
    %v965 = vld [vmem:[#allocation8 + $0x240] sm:$0xff]
    %v966 = vld [vmem:[#allocation8 + $0x248] sm:$0xff]
    %v967 = vld [vmem:[#allocation8 + $0x250] sm:$0xff]
    %v968 = vld [vmem:[#allocation8 + $0x258] sm:$0xff]
    %v969 = vld [vmem:[#allocation8 + $0x260] sm:$0xff]
    %v970 = vld [vmem:[#allocation8 + $0x268] sm:$0xff]
    %v971 = vld [vmem:[#allocation8 + $0x270] sm:$0xff]
    %v972 = vld [vmem:[#allocation8 + $0x278] sm:$0xff]
    %v973 = vld [vmem:[#allocation8 + $0x280] sm:$0xff]
    %v974 = vld [vmem:[#allocation8 + $0x288] sm:$0xff]
    %v975 = vld [vmem:[#allocation8 + $0x290] sm:$0xff]
    %v976 = vld [vmem:[#allocation8 + $0x298] sm:$0xff]
    %v977 = vld [vmem:[#allocation8 + $0x2a0] sm:$0xff]
    %v978 = vld [vmem:[#allocation8 + $0x2a8] sm:$0xff]
    %v979 = vld [vmem:[#allocation8 + $0x2b0] sm:$0xff]
    %v980 = vld [vmem:[#allocation8 + $0x2b8] sm:$0xff]
    %v981 = vld [vmem:[#allocation8 + $0x2c0] sm:$0xff]
    %v982 = vld [vmem:[#allocation8 + $0x2c8] sm:$0xff]
    %v983 = vld [vmem:[#allocation8 + $0x2d0] sm:$0xff]
    %v984 = vld [vmem:[#allocation8 + $0x2d8] sm:$0xff]
    %v985 = vld [vmem:[#allocation8 + $0x2e0] sm:$0xff]
    %v986 = vld [vmem:[#allocation8 + $0x2e8] sm:$0xff]
    %v987 = vld [vmem:[#allocation8 + $0x2f0] sm:$0xff]
    %v988 = vld [vmem:[#allocation8 + $0x2f8] sm:$0xff]
    %v989 = vld [vmem:[#allocation8 + $0x300] sm:$0xff]
    %v990 = vld [vmem:[#allocation8 + $0x308] sm:$0xff]
    %v991 = vld [vmem:[#allocation8 + $0x310] sm:$0xff]
    %v992 = vld [vmem:[#allocation8 + $0x318] sm:$0xff]
    %v993 = vld [vmem:[#allocation8 + $0x320] sm:$0xff]
    %v994 = vld [vmem:[#allocation8 + $0x328] sm:$0xff]
    %v995 = vld [vmem:[#allocation8 + $0x330] sm:$0xff]
    %v996 = vld [vmem:[#allocation8 + $0x338] sm:$0xff]
    %v997 = vld [vmem:[#allocation8 + $0x340] sm:$0xff]
    %v998 = vld [vmem:[#allocation8 + $0x348] sm:$0xff]
    %v999 = vld [vmem:[#allocation8 + $0x350] sm:$0xff]
    %v1000 = vld [vmem:[#allocation8 + $0x358] sm:$0xff]
    %v1001 = vld [vmem:[#allocation8 + $0x360] sm:$0xff]
    %v1002 = vld [vmem:[#allocation8 + $0x368] sm:$0xff]
    %v1003 = vld [vmem:[#allocation8 + $0x370] sm:$0xff]
    %v1004 = vld [vmem:[#allocation8 + $0x378] sm:$0xff]
    %v1005 = vld [vmem:[#allocation8 + $0x380] sm:$0xff]
    %v1006 = vld [vmem:[#allocation8 + $0x388] sm:$0xff]
    %v1007 = vld [vmem:[#allocation8 + $0x390] sm:$0xff]
    %v1008 = vld [vmem:[#allocation8 + $0x398] sm:$0xff]
    %v1009 = vld [vmem:[#allocation8 + $0x3a0] sm:$0xff]
    %v1010 = vld [vmem:[#allocation8 + $0x3a8] sm:$0xff]
    %v1011 = vld [vmem:[#allocation8 + $0x3b0] sm:$0xff]
    %v1012 = vld [vmem:[#allocation8 + $0x3b8] sm:$0xff]
    %v1013 = vld [vmem:[#allocation8 + $0x3c0] sm:$0xff]
    %v1014 = vld [vmem:[#allocation8 + $0x3c8] sm:$0xff]
    %v1015 = vld [vmem:[#allocation8 + $0x3d0] sm:$0xff]
    %v1016 = vld [vmem:[#allocation8 + $0x3d8] sm:$0xff]
    %v1017 = vld [vmem:[#allocation8 + $0x3e0] sm:$0xff]
    %v1018 = vld [vmem:[#allocation8 + $0x3e8] sm:$0xff]
    %v1019 = vld [vmem:[#allocation8 + $0x3f0] sm:$0xff]
    %v1020 = vld [vmem:[#allocation8 + $0x3f8] sm:$0xff]
    %v1021 = vld [vmem:[#allocation10] sm:$0xf]
    %v1023 = vperm.slane %v1021, 0
    %v1024 = vperm.slane %v1021, 1
    %v1025 = vperm.slane %v1021, 2
    %v1026 = vperm.slane %v1021, 3
    %v1159 = vunpack.c.l.b16 %v893
    %v1160 = vunpack.c.h.b16 %v893
    %v1161 = vunpack.c.l.b16 %v894
    %v1162 = vunpack.c.h.b16 %v894
    %v1163 = vunpack.c.l.b16 %v895
    %v1164 = vunpack.c.h.b16 %v895
    %v1165 = vunpack.c.l.b16 %v896
    %v1166 = vunpack.c.h.b16 %v896
    %v1167 = vunpack.c.l.b16 %v897
    %v1168 = vunpack.c.h.b16 %v897
    %v1169 = vunpack.c.l.b16 %v898
    %v1170 = vunpack.c.h.b16 %v898
    %v1171 = vunpack.c.l.b16 %v899
    %v1172 = vunpack.c.h.b16 %v899
    %v1173 = vunpack.c.l.b16 %v900
    %v1174 = vunpack.c.h.b16 %v900
    %v1175 = vunpack.c.l.b16 %v901
    %v1176 = vunpack.c.h.b16 %v901
    %v1177 = vunpack.c.l.b16 %v902
    %v1178 = vunpack.c.h.b16 %v902
    %v1179 = vunpack.c.l.b16 %v903
    %v1180 = vunpack.c.h.b16 %v903
    %v1181 = vunpack.c.l.b16 %v904
    %v1182 = vunpack.c.h.b16 %v904
    %v1183 = vunpack.c.l.b16 %v905
    %v1184 = vunpack.c.h.b16 %v905
    %v1185 = vunpack.c.l.b16 %v906
    %v1186 = vunpack.c.h.b16 %v906
    %v1187 = vunpack.c.l.b16 %v907
    %v1188 = vunpack.c.h.b16 %v907
    %v1189 = vunpack.c.l.b16 %v908
    %v1190 = vunpack.c.h.b16 %v908
    %v1191 = vunpack.c.l.b16 %v909
    %v1192 = vunpack.c.h.b16 %v909
    %v1193 = vunpack.c.l.b16 %v910
    %v1194 = vunpack.c.h.b16 %v910
    %v1195 = vunpack.c.l.b16 %v911
    %v1196 = vunpack.c.h.b16 %v911
    %v1197 = vunpack.c.l.b16 %v912
    %v1198 = vunpack.c.h.b16 %v912
    %v1199 = vunpack.c.l.b16 %v913
    %v1200 = vunpack.c.h.b16 %v913
    %v1201 = vunpack.c.l.b16 %v914
    %v1202 = vunpack.c.h.b16 %v914
    %v1203 = vunpack.c.l.b16 %v915
    %v1204 = vunpack.c.h.b16 %v915
    %v1205 = vunpack.c.l.b16 %v916
    %v1206 = vunpack.c.h.b16 %v916
    %v1207 = vunpack.c.l.b16 %v917
    %v1208 = vunpack.c.h.b16 %v917
    %v1209 = vunpack.c.l.b16 %v918
    %v1210 = vunpack.c.h.b16 %v918
    %v1211 = vunpack.c.l.b16 %v919
    %v1212 = vunpack.c.h.b16 %v919
    %v1213 = vunpack.c.l.b16 %v920
    %v1214 = vunpack.c.h.b16 %v920
    %v1215 = vunpack.c.l.b16 %v921
    %v1216 = vunpack.c.h.b16 %v921
    %v1217 = vunpack.c.l.b16 %v922
    %v1218 = vunpack.c.h.b16 %v922
    %v1219 = vunpack.c.l.b16 %v923
    %v1220 = vunpack.c.h.b16 %v923
    %v1221 = vunpack.c.l.b16 %v924
    %v1222 = vunpack.c.h.b16 %v924
    %v1223 = vunpack.c.l.b16 %v925
    %v1224 = vunpack.c.h.b16 %v925
    %v1225 = vunpack.c.l.b16 %v926
    %v1226 = vunpack.c.h.b16 %v926
    %v1227 = vunpack.c.l.b16 %v927
    %v1228 = vunpack.c.h.b16 %v927
    %v1229 = vunpack.c.l.b16 %v928
    %v1230 = vunpack.c.h.b16 %v928
    %v1231 = vunpack.c.l.b16 %v929
    %v1232 = vunpack.c.h.b16 %v929
    %v1233 = vunpack.c.l.b16 %v930
    %v1234 = vunpack.c.h.b16 %v930
    %v1235 = vunpack.c.l.b16 %v931
    %v1236 = vunpack.c.h.b16 %v931
    %v1237 = vunpack.c.l.b16 %v932
    %v1238 = vunpack.c.h.b16 %v932
    %v1239 = vunpack.c.l.b16 %v933
    %v1240 = vunpack.c.h.b16 %v933
    %v1241 = vunpack.c.l.b16 %v934
    %v1242 = vunpack.c.h.b16 %v934
    %v1243 = vunpack.c.l.b16 %v935
    %v1244 = vunpack.c.h.b16 %v935
    %v1245 = vunpack.c.l.b16 %v936
    %v1246 = vunpack.c.h.b16 %v936
    %v1247 = vunpack.c.l.b16 %v937
    %v1248 = vunpack.c.h.b16 %v937
    %v1249 = vunpack.c.l.b16 %v938
    %v1250 = vunpack.c.h.b16 %v938
    %v1251 = vunpack.c.l.b16 %v939
    %v1252 = vunpack.c.h.b16 %v939
    %v1253 = vunpack.c.l.b16 %v940
    %v1254 = vunpack.c.h.b16 %v940
    %v1255 = vunpack.c.l.b16 %v941
    %v1256 = vunpack.c.h.b16 %v941
    %v1257 = vunpack.c.l.b16 %v942
    %v1258 = vunpack.c.h.b16 %v942
    %v1259 = vunpack.c.l.b16 %v943
    %v1260 = vunpack.c.h.b16 %v943
    %v1261 = vunpack.c.l.b16 %v944
    %v1262 = vunpack.c.h.b16 %v944
    %v1263 = vunpack.c.l.b16 %v945
    %v1264 = vunpack.c.h.b16 %v945
    %v1265 = vunpack.c.l.b16 %v946
    %v1266 = vunpack.c.h.b16 %v946
    %v1267 = vunpack.c.l.b16 %v947
    %v1268 = vunpack.c.h.b16 %v947
    %v1269 = vunpack.c.l.b16 %v948
    %v1270 = vunpack.c.h.b16 %v948
    %v1271 = vunpack.c.l.b16 %v949
    %v1272 = vunpack.c.h.b16 %v949
    %v1273 = vunpack.c.l.b16 %v950
    %v1274 = vunpack.c.h.b16 %v950
    %v1275 = vunpack.c.l.b16 %v951
    %v1276 = vunpack.c.h.b16 %v951
    %v1277 = vunpack.c.l.b16 %v952
    %v1278 = vunpack.c.h.b16 %v952
    %v1279 = vunpack.c.l.b16 %v953
    %v1280 = vunpack.c.h.b16 %v953
    %v1281 = vunpack.c.l.b16 %v954
    %v1282 = vunpack.c.h.b16 %v954
    %v1283 = vunpack.c.l.b16 %v955
    %v1284 = vunpack.c.h.b16 %v955
    %v1285 = vunpack.c.l.b16 %v956
    %v1286 = vunpack.c.h.b16 %v956
    %v1287 = vunpack.c.l.b16 %v957
    %v1288 = vunpack.c.h.b16 %v957
    %v1289 = vunpack.c.l.b16 %v958
    %v1290 = vunpack.c.h.b16 %v958
    %v1291 = vunpack.c.l.b16 %v959
    %v1292 = vunpack.c.h.b16 %v959
    %v1293 = vunpack.c.l.b16 %v960
    %v1294 = vunpack.c.h.b16 %v960
    %v1295 = vunpack.c.l.b16 %v961
    %v1296 = vunpack.c.h.b16 %v961
    %v1297 = vunpack.c.l.b16 %v962
    %v1298 = vunpack.c.h.b16 %v962
    %v1299 = vunpack.c.l.b16 %v963
    %v1300 = vunpack.c.h.b16 %v963
    %v1301 = vunpack.c.l.b16 %v964
    %v1302 = vunpack.c.h.b16 %v964
    %v1303 = vunpack.c.l.b16 %v965
    %v1304 = vunpack.c.h.b16 %v965
    %v1305 = vunpack.c.l.b16 %v966
    %v1306 = vunpack.c.h.b16 %v966
    %v1307 = vunpack.c.l.b16 %v967
    %v1308 = vunpack.c.h.b16 %v967
    %v1309 = vunpack.c.l.b16 %v968
    %v1310 = vunpack.c.h.b16 %v968
    %v1311 = vunpack.c.l.b16 %v969
    %v1312 = vunpack.c.h.b16 %v969
    %v1313 = vunpack.c.l.b16 %v970
    %v1314 = vunpack.c.h.b16 %v970
    %v1315 = vunpack.c.l.b16 %v971
    %v1316 = vunpack.c.h.b16 %v971
    %v1317 = vunpack.c.l.b16 %v972
    %v1318 = vunpack.c.h.b16 %v972
    %v1319 = vunpack.c.l.b16 %v973
    %v1320 = vunpack.c.h.b16 %v973
    %v1321 = vunpack.c.l.b16 %v974
    %v1322 = vunpack.c.h.b16 %v974
    %v1323 = vunpack.c.l.b16 %v975
    %v1324 = vunpack.c.h.b16 %v975
    %v1325 = vunpack.c.l.b16 %v976
    %v1326 = vunpack.c.h.b16 %v976
    %v1327 = vunpack.c.l.b16 %v977
    %v1328 = vunpack.c.h.b16 %v977
    %v1329 = vunpack.c.l.b16 %v978
    %v1330 = vunpack.c.h.b16 %v978
    %v1331 = vunpack.c.l.b16 %v979
    %v1332 = vunpack.c.h.b16 %v979
    %v1333 = vunpack.c.l.b16 %v980
    %v1334 = vunpack.c.h.b16 %v980
    %v1335 = vunpack.c.l.b16 %v981
    %v1336 = vunpack.c.h.b16 %v981
    %v1337 = vunpack.c.l.b16 %v982
    %v1338 = vunpack.c.h.b16 %v982
    %v1339 = vunpack.c.l.b16 %v983
    %v1340 = vunpack.c.h.b16 %v983
    %v1341 = vunpack.c.l.b16 %v984
    %v1342 = vunpack.c.h.b16 %v984
    %v1343 = vunpack.c.l.b16 %v985
    %v1344 = vunpack.c.h.b16 %v985
    %v1345 = vunpack.c.l.b16 %v986
    %v1346 = vunpack.c.h.b16 %v986
    %v1347 = vunpack.c.l.b16 %v987
    %v1348 = vunpack.c.h.b16 %v987
    %v1349 = vunpack.c.l.b16 %v988
    %v1350 = vunpack.c.h.b16 %v988
    %v1351 = vunpack.c.l.b16 %v989
    %v1352 = vunpack.c.h.b16 %v989
    %v1353 = vunpack.c.l.b16 %v990
    %v1354 = vunpack.c.h.b16 %v990
    %v1355 = vunpack.c.l.b16 %v991
    %v1356 = vunpack.c.h.b16 %v991
    %v1357 = vunpack.c.l.b16 %v992
    %v1358 = vunpack.c.h.b16 %v992
    %v1359 = vunpack.c.l.b16 %v993
    %v1360 = vunpack.c.h.b16 %v993
    %v1361 = vunpack.c.l.b16 %v994
    %v1362 = vunpack.c.h.b16 %v994
    %v1363 = vunpack.c.l.b16 %v995
    %v1364 = vunpack.c.h.b16 %v995
    %v1365 = vunpack.c.l.b16 %v996
    %v1366 = vunpack.c.h.b16 %v996
    %v1367 = vunpack.c.l.b16 %v997
    %v1368 = vunpack.c.h.b16 %v997
    %v1369 = vunpack.c.l.b16 %v998
    %v1370 = vunpack.c.h.b16 %v998
    %v1371 = vunpack.c.l.b16 %v999
    %v1372 = vunpack.c.h.b16 %v999
    %v1373 = vunpack.c.l.b16 %v1000
    %v1374 = vunpack.c.h.b16 %v1000
    %v1375 = vunpack.c.l.b16 %v1001
    %v1376 = vunpack.c.h.b16 %v1001
    %v1377 = vunpack.c.l.b16 %v1002
    %v1378 = vunpack.c.h.b16 %v1002
    %v1379 = vunpack.c.l.b16 %v1003
    %v1380 = vunpack.c.h.b16 %v1003
    %v1381 = vunpack.c.l.b16 %v1004
    %v1382 = vunpack.c.h.b16 %v1004
    %v1383 = vunpack.c.l.b16 %v1005
    %v1384 = vunpack.c.h.b16 %v1005
    %v1385 = vunpack.c.l.b16 %v1006
    %v1386 = vunpack.c.h.b16 %v1006
    %v1387 = vunpack.c.l.b16 %v1007
    %v1388 = vunpack.c.h.b16 %v1007
    %v1389 = vunpack.c.l.b16 %v1008
    %v1390 = vunpack.c.h.b16 %v1008
    %v1391 = vunpack.c.l.b16 %v1009
    %v1392 = vunpack.c.h.b16 %v1009
    %v1393 = vunpack.c.l.b16 %v1010
    %v1394 = vunpack.c.h.b16 %v1010
    %v1395 = vunpack.c.l.b16 %v1011
    %v1396 = vunpack.c.h.b16 %v1011
    %v1397 = vunpack.c.l.b16 %v1012
    %v1398 = vunpack.c.h.b16 %v1012
    %v1399 = vunpack.c.l.b16 %v1013
    %v1400 = vunpack.c.h.b16 %v1013
    %v1401 = vunpack.c.l.b16 %v1014
    %v1402 = vunpack.c.h.b16 %v1014
    %v1403 = vunpack.c.l.b16 %v1015
    %v1404 = vunpack.c.h.b16 %v1015
    %v1405 = vunpack.c.l.b16 %v1016
    %v1406 = vunpack.c.h.b16 %v1016
    %v1407 = vunpack.c.l.b16 %v1017
    %v1408 = vunpack.c.h.b16 %v1017
    %v1409 = vunpack.c.l.b16 %v1018
    %v1410 = vunpack.c.h.b16 %v1018
    %v1411 = vunpack.c.l.b16 %v1019
    %v1412 = vunpack.c.h.b16 %v1019
    %v1413 = vunpack.c.l.b16 %v1020
    %v1414 = vunpack.c.h.b16 %v1020
    %v1415 = vpack.c.b16 %v1163, %v1159
    %v1416 = vpack.c.b16 %v1164, %v1160
    %v1417 = vpack.c.b16 %v1165, %v1161
    %v1418 = vpack.c.b16 %v1166, %v1162
    %v1419 = vpack.c.b16 %v1171, %v1167
    %v1420 = vpack.c.b16 %v1172, %v1168
    %v1421 = vpack.c.b16 %v1173, %v1169
    %v1422 = vpack.c.b16 %v1174, %v1170
    %v1423 = vpack.c.b16 %v1179, %v1175
    %v1424 = vpack.c.b16 %v1180, %v1176
    %v1425 = vpack.c.b16 %v1181, %v1177
    %v1426 = vpack.c.b16 %v1182, %v1178
    %v1427 = vpack.c.b16 %v1187, %v1183
    %v1428 = vpack.c.b16 %v1188, %v1184
    %v1429 = vpack.c.b16 %v1189, %v1185
    %v1430 = vpack.c.b16 %v1190, %v1186
    %v1431 = vpack.c.b16 %v1195, %v1191
    %v1432 = vpack.c.b16 %v1196, %v1192
    %v1433 = vpack.c.b16 %v1197, %v1193
    %v1434 = vpack.c.b16 %v1198, %v1194
    %v1435 = vpack.c.b16 %v1203, %v1199
    %v1436 = vpack.c.b16 %v1204, %v1200
    %v1437 = vpack.c.b16 %v1205, %v1201
    %v1438 = vpack.c.b16 %v1206, %v1202
    %v1439 = vpack.c.b16 %v1211, %v1207
    %v1440 = vpack.c.b16 %v1212, %v1208
    %v1441 = vpack.c.b16 %v1213, %v1209
    %v1442 = vpack.c.b16 %v1214, %v1210
    %v1443 = vpack.c.b16 %v1219, %v1215
    %v1444 = vpack.c.b16 %v1220, %v1216
    %v1445 = vpack.c.b16 %v1221, %v1217
    %v1446 = vpack.c.b16 %v1222, %v1218
    %v1447 = vpack.c.b16 %v1227, %v1223
    %v1448 = vpack.c.b16 %v1228, %v1224
    %v1449 = vpack.c.b16 %v1229, %v1225
    %v1450 = vpack.c.b16 %v1230, %v1226
    %v1451 = vpack.c.b16 %v1235, %v1231
    %v1452 = vpack.c.b16 %v1236, %v1232
    %v1453 = vpack.c.b16 %v1237, %v1233
    %v1454 = vpack.c.b16 %v1238, %v1234
    %v1455 = vpack.c.b16 %v1243, %v1239
    %v1456 = vpack.c.b16 %v1244, %v1240
    %v1457 = vpack.c.b16 %v1245, %v1241
    %v1458 = vpack.c.b16 %v1246, %v1242
    %v1459 = vpack.c.b16 %v1251, %v1247
    %v1460 = vpack.c.b16 %v1252, %v1248
    %v1461 = vpack.c.b16 %v1253, %v1249
    %v1462 = vpack.c.b16 %v1254, %v1250
    %v1463 = vpack.c.b16 %v1259, %v1255
    %v1464 = vpack.c.b16 %v1260, %v1256
    %v1465 = vpack.c.b16 %v1261, %v1257
    %v1466 = vpack.c.b16 %v1262, %v1258
    %v1467 = vpack.c.b16 %v1267, %v1263
    %v1468 = vpack.c.b16 %v1268, %v1264
    %v1469 = vpack.c.b16 %v1269, %v1265
    %v1470 = vpack.c.b16 %v1270, %v1266
    %v1471 = vpack.c.b16 %v1275, %v1271
    %v1472 = vpack.c.b16 %v1276, %v1272
    %v1473 = vpack.c.b16 %v1277, %v1273
    %v1474 = vpack.c.b16 %v1278, %v1274
    %v1475 = vpack.c.b16 %v1283, %v1279
    %v1476 = vpack.c.b16 %v1284, %v1280
    %v1477 = vpack.c.b16 %v1285, %v1281
    %v1478 = vpack.c.b16 %v1286, %v1282
    %v1479 = vpack.c.b16 %v1291, %v1287
    %v1480 = vpack.c.b16 %v1292, %v1288
    %v1481 = vpack.c.b16 %v1293, %v1289
    %v1482 = vpack.c.b16 %v1294, %v1290
    %v1483 = vpack.c.b16 %v1299, %v1295
    %v1484 = vpack.c.b16 %v1300, %v1296
    %v1485 = vpack.c.b16 %v1301, %v1297
    %v1486 = vpack.c.b16 %v1302, %v1298
    %v1487 = vpack.c.b16 %v1307, %v1303
    %v1488 = vpack.c.b16 %v1308, %v1304
    %v1489 = vpack.c.b16 %v1309, %v1305
    %v1490 = vpack.c.b16 %v1310, %v1306
    %v1491 = vpack.c.b16 %v1315, %v1311
    %v1492 = vpack.c.b16 %v1316, %v1312
    %v1493 = vpack.c.b16 %v1317, %v1313
    %v1494 = vpack.c.b16 %v1318, %v1314
    %v1495 = vpack.c.b16 %v1323, %v1319
    %v1496 = vpack.c.b16 %v1324, %v1320
    %v1497 = vpack.c.b16 %v1325, %v1321
    %v1498 = vpack.c.b16 %v1326, %v1322
    %v1499 = vpack.c.b16 %v1331, %v1327
    %v1500 = vpack.c.b16 %v1332, %v1328
    %v1501 = vpack.c.b16 %v1333, %v1329
    %v1502 = vpack.c.b16 %v1334, %v1330
    %v1503 = vpack.c.b16 %v1339, %v1335
    %v1504 = vpack.c.b16 %v1340, %v1336
    %v1505 = vpack.c.b16 %v1341, %v1337
    %v1506 = vpack.c.b16 %v1342, %v1338
    %v1507 = vpack.c.b16 %v1347, %v1343
    %v1508 = vpack.c.b16 %v1348, %v1344
    %v1509 = vpack.c.b16 %v1349, %v1345
    %v1510 = vpack.c.b16 %v1350, %v1346
    %v1511 = vpack.c.b16 %v1355, %v1351
    %v1512 = vpack.c.b16 %v1356, %v1352
    %v1513 = vpack.c.b16 %v1357, %v1353
    %v1514 = vpack.c.b16 %v1358, %v1354
    %v1515 = vpack.c.b16 %v1363, %v1359
    %v1516 = vpack.c.b16 %v1364, %v1360
    %v1517 = vpack.c.b16 %v1365, %v1361
    %v1518 = vpack.c.b16 %v1366, %v1362
    %v1519 = vpack.c.b16 %v1371, %v1367
    %v1520 = vpack.c.b16 %v1372, %v1368
    %v1521 = vpack.c.b16 %v1373, %v1369
    %v1522 = vpack.c.b16 %v1374, %v1370
    %v1523 = vpack.c.b16 %v1379, %v1375
    %v1524 = vpack.c.b16 %v1380, %v1376
    %v1525 = vpack.c.b16 %v1381, %v1377
    %v1526 = vpack.c.b16 %v1382, %v1378
    %v1527 = vpack.c.b16 %v1387, %v1383
    %v1528 = vpack.c.b16 %v1388, %v1384
    %v1529 = vpack.c.b16 %v1389, %v1385
    %v1530 = vpack.c.b16 %v1390, %v1386
    %v1531 = vpack.c.b16 %v1395, %v1391
    %v1532 = vpack.c.b16 %v1396, %v1392
    %v1533 = vpack.c.b16 %v1397, %v1393
    %v1534 = vpack.c.b16 %v1398, %v1394
    %v1535 = vpack.c.b16 %v1403, %v1399
    %v1536 = vpack.c.b16 %v1404, %v1400
    %v1537 = vpack.c.b16 %v1405, %v1401
    %v1538 = vpack.c.b16 %v1406, %v1402
    %v1539 = vpack.c.b16 %v1411, %v1407
    %v1540 = vpack.c.b16 %v1412, %v1408
    %v1541 = vpack.c.b16 %v1413, %v1409
    %v1542 = vpack.c.b16 %v1414, %v1410
    %1671 = vmatpush.bf16.msra.mxu0 %v1443
    %1672 = vmatpush.bf16.msra.mxu0 %v1439
    %1673 = vmatpush.bf16.msra.mxu0 %v1435
    %1674 = vmatpush.bf16.msra.mxu0 %v1431
    %1675 = vmatpush.bf16.msra.mxu0 %v1427
    %1676 = vmatpush.bf16.msra.mxu0 %v1423
    %1677 = vmatpush.bf16.msra.mxu0 %v1419
    %1678 = vmatpush.bf16.msra.mxu0 %v1415
    %1679 = vmatmul.bf16.gmra.mxu0 %v889
    %v1680 = vpop.f32.mrf.mxu0
    %v1681 = vadd.f32 %v1023, %v1680
    %v1682 = vpop.f32.mrf.mxu0
    %v1683 = vadd.f32 %v1023, %v1682
    %1684 = vdwg.mxu0
    %1685 = vmatpush.bf16.msra.mxu0 %v1475
    %1686 = vmatpush.bf16.msra.mxu0 %v1471
    %1687 = vmatpush.bf16.msra.mxu0 %v1467
    %1688 = vmatpush.bf16.msra.mxu0 %v1463
    %1689 = vmatpush.bf16.msra.mxu0 %v1459
    %1690 = vmatpush.bf16.msra.mxu0 %v1455
    %1691 = vmatpush.bf16.msra.mxu0 %v1451
    %1692 = vmatpush.bf16.msra.mxu0 %v1447
    %1693 = vmatmul.bf16.gmra.mxu0 %v890
    %v1694 = vpop.f32.mrf.mxu0
    %v1695 = vadd.f32 %v1681, %v1694
    %v1696 = vpop.f32.mrf.mxu0
    %v1697 = vadd.f32 %v1683, %v1696
    %1698 = vdwg.mxu0
    %1699 = vmatpush.bf16.msra.mxu0 %v1507
    %1700 = vmatpush.bf16.msra.mxu0 %v1503
    %1701 = vmatpush.bf16.msra.mxu0 %v1499
    %1702 = vmatpush.bf16.msra.mxu0 %v1495
    %1703 = vmatpush.bf16.msra.mxu0 %v1491
    %1704 = vmatpush.bf16.msra.mxu0 %v1487
    %1705 = vmatpush.bf16.msra.mxu0 %v1483
    %1706 = vmatpush.bf16.msra.mxu0 %v1479
    %1707 = vmatmul.bf16.gmra.mxu0 %v891
    %v1708 = vpop.f32.mrf.mxu0
    %v1709 = vadd.f32 %v1695, %v1708
    %v1710 = vpop.f32.mrf.mxu0
    %v1711 = vadd.f32 %v1697, %v1710
    %1712 = vdwg.mxu0
    %1713 = vmatpush.bf16.msra.mxu0 %v1539
    %1714 = vmatpush.bf16.msra.mxu0 %v1535
    %1715 = vmatpush.bf16.msra.mxu0 %v1531
    %1716 = vmatpush.bf16.msra.mxu0 %v1527
    %1717 = vmatpush.bf16.msra.mxu0 %v1523
    %1718 = vmatpush.bf16.msra.mxu0 %v1519
    %1719 = vmatpush.bf16.msra.mxu0 %v1515
    %1720 = vmatpush.bf16.msra.mxu0 %v1511
    %1721 = vmatmul.bf16.gmra.mxu0 %v892
    %v1722 = vpop.f32.mrf.mxu0
    %v1723 = vadd.f32 %v1709, %v1722
    %v1724 = vpop.f32.mrf.mxu0
    %v1725 = vadd.f32 %v1711, %v1724
    %1726 = vdwg.mxu0
    %1727 = vmatpush.bf16.msra.mxu0 %v1444
    %1728 = vmatpush.bf16.msra.mxu0 %v1440
    %1729 = vmatpush.bf16.msra.mxu0 %v1436
    %1730 = vmatpush.bf16.msra.mxu0 %v1432
    %1731 = vmatpush.bf16.msra.mxu0 %v1428
    %1732 = vmatpush.bf16.msra.mxu0 %v1424
    %1733 = vmatpush.bf16.msra.mxu0 %v1420
    %1734 = vmatpush.bf16.msra.mxu0 %v1416
    %1735 = vmatmul.bf16.gmra.mxu0 %v889
    %v1736 = vpop.f32.mrf.mxu0
    %v1737 = vadd.f32 %v1024, %v1736
    %v1738 = vpop.f32.mrf.mxu0
    %v1739 = vadd.f32 %v1024, %v1738
    %1740 = vdwg.mxu0
    %1741 = vmatpush.bf16.msra.mxu0 %v1476
    %1742 = vmatpush.bf16.msra.mxu0 %v1472
    %1743 = vmatpush.bf16.msra.mxu0 %v1468
    %1744 = vmatpush.bf16.msra.mxu0 %v1464
    %1745 = vmatpush.bf16.msra.mxu0 %v1460
    %1746 = vmatpush.bf16.msra.mxu0 %v1456
    %1747 = vmatpush.bf16.msra.mxu0 %v1452
    %1748 = vmatpush.bf16.msra.mxu0 %v1448
    %1749 = vmatmul.bf16.gmra.mxu0 %v890
    %v1750 = vpop.f32.mrf.mxu0
    %v1751 = vadd.f32 %v1737, %v1750
    %v1752 = vpop.f32.mrf.mxu0
    %v1753 = vadd.f32 %v1739, %v1752
    %1754 = vdwg.mxu0
    %1755 = vmatpush.bf16.msra.mxu0 %v1508
    %1756 = vmatpush.bf16.msra.mxu0 %v1504
    %1757 = vmatpush.bf16.msra.mxu0 %v1500
    %1758 = vmatpush.bf16.msra.mxu0 %v1496
    %1759 = vmatpush.bf16.msra.mxu0 %v1492
    %1760 = vmatpush.bf16.msra.mxu0 %v1488
    %1761 = vmatpush.bf16.msra.mxu0 %v1484
    %1762 = vmatpush.bf16.msra.mxu0 %v1480
    %1763 = vmatmul.bf16.gmra.mxu0 %v891
    %v1764 = vpop.f32.mrf.mxu0
    %v1765 = vadd.f32 %v1751, %v1764
    %v1766 = vpop.f32.mrf.mxu0
    %v1767 = vadd.f32 %v1753, %v1766
    %1768 = vdwg.mxu0
    %1769 = vmatpush.bf16.msra.mxu0 %v1540
    %1770 = vmatpush.bf16.msra.mxu0 %v1536
    %1771 = vmatpush.bf16.msra.mxu0 %v1532
    %1772 = vmatpush.bf16.msra.mxu0 %v1528
    %1773 = vmatpush.bf16.msra.mxu0 %v1524
    %1774 = vmatpush.bf16.msra.mxu0 %v1520
    %1775 = vmatpush.bf16.msra.mxu0 %v1516
    %1776 = vmatpush.bf16.msra.mxu0 %v1512
    %1777 = vmatmul.bf16.gmra.mxu0 %v892
    %v1778 = vpop.f32.mrf.mxu0
    %v1779 = vadd.f32 %v1765, %v1778
    %v1780 = vpop.f32.mrf.mxu0
    %v1781 = vadd.f32 %v1767, %v1780
    %1782 = vdwg.mxu0
    %1783 = vmatpush.bf16.msra.mxu0 %v1445
    %1784 = vmatpush.bf16.msra.mxu0 %v1441
    %1785 = vmatpush.bf16.msra.mxu0 %v1437
    %1786 = vmatpush.bf16.msra.mxu0 %v1433
    %1787 = vmatpush.bf16.msra.mxu0 %v1429
    %1788 = vmatpush.bf16.msra.mxu0 %v1425
    %1789 = vmatpush.bf16.msra.mxu0 %v1421
    %1790 = vmatpush.bf16.msra.mxu0 %v1417
    %1791 = vmatmul.bf16.gmra.mxu0 %v889
    %v1792 = vpop.f32.mrf.mxu0
    %v1793 = vadd.f32 %v1025, %v1792
    %v1794 = vpop.f32.mrf.mxu0
    %v1795 = vadd.f32 %v1025, %v1794
    %1796 = vdwg.mxu0
    %1797 = vmatpush.bf16.msra.mxu0 %v1477
    %1798 = vmatpush.bf16.msra.mxu0 %v1473
    %1799 = vmatpush.bf16.msra.mxu0 %v1469
    %1800 = vmatpush.bf16.msra.mxu0 %v1465
    %1801 = vmatpush.bf16.msra.mxu0 %v1461
    %1802 = vmatpush.bf16.msra.mxu0 %v1457
    %1803 = vmatpush.bf16.msra.mxu0 %v1453
    %1804 = vmatpush.bf16.msra.mxu0 %v1449
    %1805 = vmatmul.bf16.gmra.mxu0 %v890
    %v1806 = vpop.f32.mrf.mxu0
    %v1807 = vadd.f32 %v1793, %v1806
    %v1808 = vpop.f32.mrf.mxu0
    %v1809 = vadd.f32 %v1795, %v1808
    %1810 = vdwg.mxu0
    %1811 = vmatpush.bf16.msra.mxu0 %v1509
    %1812 = vmatpush.bf16.msra.mxu0 %v1505
    %1813 = vmatpush.bf16.msra.mxu0 %v1501
    %1814 = vmatpush.bf16.msra.mxu0 %v1497
    %1815 = vmatpush.bf16.msra.mxu0 %v1493
    %1816 = vmatpush.bf16.msra.mxu0 %v1489
    %1817 = vmatpush.bf16.msra.mxu0 %v1485
    %1818 = vmatpush.bf16.msra.mxu0 %v1481
    %1819 = vmatmul.bf16.gmra.mxu0 %v891
    %v1820 = vpop.f32.mrf.mxu0
    %v1821 = vadd.f32 %v1807, %v1820
    %v1822 = vpop.f32.mrf.mxu0
    %v1823 = vadd.f32 %v1809, %v1822
    %1824 = vdwg.mxu0
    %1825 = vmatpush.bf16.msra.mxu0 %v1541
    %1826 = vmatpush.bf16.msra.mxu0 %v1537
    %1827 = vmatpush.bf16.msra.mxu0 %v1533
    %1828 = vmatpush.bf16.msra.mxu0 %v1529
    %1829 = vmatpush.bf16.msra.mxu0 %v1525
    %1830 = vmatpush.bf16.msra.mxu0 %v1521
    %1831 = vmatpush.bf16.msra.mxu0 %v1517
    %1832 = vmatpush.bf16.msra.mxu0 %v1513
    %1833 = vmatmul.bf16.gmra.mxu0 %v892
    %v1834 = vpop.f32.mrf.mxu0
    %v1835 = vadd.f32 %v1821, %v1834
    %v1836 = vpop.f32.mrf.mxu0
    %v1837 = vadd.f32 %v1823, %v1836
    %1838 = vdwg.mxu0
    %1839 = vmatpush.bf16.msra.mxu0 %v1446
    %1840 = vmatpush.bf16.msra.mxu0 %v1442
    %1841 = vmatpush.bf16.msra.mxu0 %v1438
    %1842 = vmatpush.bf16.msra.mxu0 %v1434
    %1843 = vmatpush.bf16.msra.mxu0 %v1430
    %1844 = vmatpush.bf16.msra.mxu0 %v1426
    %1845 = vmatpush.bf16.msra.mxu0 %v1422
    %1846 = vmatpush.bf16.msra.mxu0 %v1418
    %1847 = vmatmul.bf16.gmra.mxu0 %v889
    %v1848 = vpop.f32.mrf.mxu0
    %v1849 = vadd.f32 %v1026, %v1848
    %v1850 = vpop.f32.mrf.mxu0
    %v1851 = vadd.f32 %v1026, %v1850
    %1852 = vdwg.mxu0
    %1853 = vmatpush.bf16.msra.mxu0 %v1478
    %1854 = vmatpush.bf16.msra.mxu0 %v1474
    %1855 = vmatpush.bf16.msra.mxu0 %v1470
    %1856 = vmatpush.bf16.msra.mxu0 %v1466
    %1857 = vmatpush.bf16.msra.mxu0 %v1462
    %1858 = vmatpush.bf16.msra.mxu0 %v1458
    %1859 = vmatpush.bf16.msra.mxu0 %v1454
    %1860 = vmatpush.bf16.msra.mxu0 %v1450
    %1861 = vmatmul.bf16.gmra.mxu0 %v890
    %v1862 = vpop.f32.mrf.mxu0
    %v1863 = vadd.f32 %v1849, %v1862
    %v1864 = vpop.f32.mrf.mxu0
    %v1865 = vadd.f32 %v1851, %v1864
    %1866 = vdwg.mxu0
    %1867 = vmatpush.bf16.msra.mxu0 %v1510
    %1868 = vmatpush.bf16.msra.mxu0 %v1506
    %1869 = vmatpush.bf16.msra.mxu0 %v1502
    %1870 = vmatpush.bf16.msra.mxu0 %v1498
    %1871 = vmatpush.bf16.msra.mxu0 %v1494
    %1872 = vmatpush.bf16.msra.mxu0 %v1490
    %1873 = vmatpush.bf16.msra.mxu0 %v1486
    %1874 = vmatpush.bf16.msra.mxu0 %v1482
    %1875 = vmatmul.bf16.gmra.mxu0 %v891
    %v1876 = vpop.f32.mrf.mxu0
    %v1877 = vadd.f32 %v1863, %v1876
    %v1878 = vpop.f32.mrf.mxu0
    %v1879 = vadd.f32 %v1865, %v1878
    %1880 = vdwg.mxu0
    %1881 = vmatpush.bf16.msra.mxu0 %v1542
    %1882 = vmatpush.bf16.msra.mxu0 %v1538
    %1883 = vmatpush.bf16.msra.mxu0 %v1534
    %1884 = vmatpush.bf16.msra.mxu0 %v1530
    %1885 = vmatpush.bf16.msra.mxu0 %v1526
    %1886 = vmatpush.bf16.msra.mxu0 %v1522
    %1887 = vmatpush.bf16.msra.mxu0 %v1518
    %1888 = vmatpush.bf16.msra.mxu0 %v1514
    %1889 = vmatmul.bf16.gmra.mxu0 %v892
    %v1890 = vpop.f32.mrf.mxu0
    %v1891 = vadd.f32 %v1877, %v1890
    %v1892 = vpop.f32.mrf.mxu0
    %v1893 = vadd.f32 %v1879, %v1892
    %1894 = vdwg.mxu0
    %v1895 = vmax.f32 %v1723, 0.0
    %v1896 = vmax.f32 %v1779, 0.0
    %v1897 = vmax.f32 %v1835, 0.0
    %v1898 = vmax.f32 %v1891, 0.0
    %v1899 = vmax.f32 %v1725, 0.0
    %v1900 = vmax.f32 %v1781, 0.0
    %v1901 = vmax.f32 %v1837, 0.0
    %v1902 = vmax.f32 %v1893, 0.0
    %v1903 = vpack.c.bf16 %v1899, %v1895
    %v1904 = vpack.c.bf16 %v1900, %v1896
    %v1905 = vpack.c.bf16 %v1901, %v1897
    %v1906 = vpack.c.bf16 %v1902, %v1898
    %v1907 = vld [vmem:[#allocation11] sm:$0xff]
    %v1908 = vld [vmem:[#allocation11 + $0x8] sm:$0xff]
    %v1909 = vld [vmem:[#allocation11 + $0x10] sm:$0xff]
    %v1910 = vld [vmem:[#allocation11 + $0x18] sm:$0xff]
    %v1911 = vld [vmem:[#allocation11 + $0x20] sm:$0xff]
    %v1912 = vld [vmem:[#allocation11 + $0x28] sm:$0xff]
    %v1913 = vld [vmem:[#allocation11 + $0x30] sm:$0xff]
    %v1914 = vld [vmem:[#allocation11 + $0x38] sm:$0xff]
    %v1915 = vld [vmem:[#allocation11 + $0x40] sm:$0xff]
    %v1916 = vld [vmem:[#allocation11 + $0x48] sm:$0xff]
    %v1917 = vld [vmem:[#allocation11 + $0x50] sm:$0xff]
    %v1918 = vld [vmem:[#allocation11 + $0x58] sm:$0xff]
    %v1919 = vld [vmem:[#allocation11 + $0x60] sm:$0xff]
    %v1920 = vld [vmem:[#allocation11 + $0x68] sm:$0xff]
    %v1921 = vld [vmem:[#allocation11 + $0x70] sm:$0xff]
    %v1922 = vld [vmem:[#allocation11 + $0x78] sm:$0xff]
    %v1923 = vld [vmem:[#allocation11 + $0x80] sm:$0xff]
    %v1924 = vld [vmem:[#allocation11 + $0x88] sm:$0xff]
    %v1925 = vld [vmem:[#allocation11 + $0x90] sm:$0xff]
    %v1926 = vld [vmem:[#allocation11 + $0x98] sm:$0xff]
    %v1927 = vld [vmem:[#allocation11 + $0xa0] sm:$0xff]
    %v1928 = vld [vmem:[#allocation11 + $0xa8] sm:$0xff]
    %v1929 = vld [vmem:[#allocation11 + $0xb0] sm:$0xff]
    %v1930 = vld [vmem:[#allocation11 + $0xb8] sm:$0xff]
    %v1931 = vld [vmem:[#allocation11 + $0xc0] sm:$0xff]
    %v1932 = vld [vmem:[#allocation11 + $0xc8] sm:$0xff]
    %v1933 = vld [vmem:[#allocation11 + $0xd0] sm:$0xff]
    %v1934 = vld [vmem:[#allocation11 + $0xd8] sm:$0xff]
    %v1935 = vld [vmem:[#allocation11 + $0xe0] sm:$0xff]
    %v1936 = vld [vmem:[#allocation11 + $0xe8] sm:$0xff]
    %v1937 = vld [vmem:[#allocation11 + $0xf0] sm:$0xff]
    %v1938 = vld [vmem:[#allocation11 + $0xf8] sm:$0xff]
    %v1939 = vld [vmem:[#allocation11 + $0x100] sm:$0xff]
    %v1940 = vld [vmem:[#allocation11 + $0x108] sm:$0xff]
    %v1941 = vld [vmem:[#allocation11 + $0x110] sm:$0xff]
    %v1942 = vld [vmem:[#allocation11 + $0x118] sm:$0xff]
    %v1943 = vld [vmem:[#allocation11 + $0x120] sm:$0xff]
    %v1944 = vld [vmem:[#allocation11 + $0x128] sm:$0xff]
    %v1945 = vld [vmem:[#allocation11 + $0x130] sm:$0xff]
    %v1946 = vld [vmem:[#allocation11 + $0x138] sm:$0xff]
    %v1947 = vld [vmem:[#allocation11 + $0x140] sm:$0xff]
    %v1948 = vld [vmem:[#allocation11 + $0x148] sm:$0xff]
    %v1949 = vld [vmem:[#allocation11 + $0x150] sm:$0xff]
    %v1950 = vld [vmem:[#allocation11 + $0x158] sm:$0xff]
    %v1951 = vld [vmem:[#allocation11 + $0x160] sm:$0xff]
    %v1952 = vld [vmem:[#allocation11 + $0x168] sm:$0xff]
    %v1953 = vld [vmem:[#allocation11 + $0x170] sm:$0xff]
    %v1954 = vld [vmem:[#allocation11 + $0x178] sm:$0xff]
    %v1955 = vld [vmem:[#allocation11 + $0x180] sm:$0xff]
    %v1956 = vld [vmem:[#allocation11 + $0x188] sm:$0xff]
    %v1957 = vld [vmem:[#allocation11 + $0x190] sm:$0xff]
    %v1958 = vld [vmem:[#allocation11 + $0x198] sm:$0xff]
    %v1959 = vld [vmem:[#allocation11 + $0x1a0] sm:$0xff]
    %v1960 = vld [vmem:[#allocation11 + $0x1a8] sm:$0xff]
    %v1961 = vld [vmem:[#allocation11 + $0x1b0] sm:$0xff]
    %v1962 = vld [vmem:[#allocation11 + $0x1b8] sm:$0xff]
    %v1963 = vld [vmem:[#allocation11 + $0x1c0] sm:$0xff]
    %v1964 = vld [vmem:[#allocation11 + $0x1c8] sm:$0xff]
    %v1965 = vld [vmem:[#allocation11 + $0x1d0] sm:$0xff]
    %v1966 = vld [vmem:[#allocation11 + $0x1d8] sm:$0xff]
    %v1967 = vld [vmem:[#allocation11 + $0x1e0] sm:$0xff]
    %v1968 = vld [vmem:[#allocation11 + $0x1e8] sm:$0xff]
    %v1969 = vld [vmem:[#allocation11 + $0x1f0] sm:$0xff]
    %v1970 = vld [vmem:[#allocation11 + $0x1f8] sm:$0xff]
    %v1971 = vld [vmem:[#allocation11 + $0x200] sm:$0xff]
    %v1972 = vld [vmem:[#allocation11 + $0x208] sm:$0xff]
    %v1973 = vld [vmem:[#allocation11 + $0x210] sm:$0xff]
    %v1974 = vld [vmem:[#allocation11 + $0x218] sm:$0xff]
    %v1975 = vld [vmem:[#allocation11 + $0x220] sm:$0xff]
    %v1976 = vld [vmem:[#allocation11 + $0x228] sm:$0xff]
    %v1977 = vld [vmem:[#allocation11 + $0x230] sm:$0xff]
    %v1978 = vld [vmem:[#allocation11 + $0x238] sm:$0xff]
    %v1979 = vld [vmem:[#allocation11 + $0x240] sm:$0xff]
    %v1980 = vld [vmem:[#allocation11 + $0x248] sm:$0xff]
    %v1981 = vld [vmem:[#allocation11 + $0x250] sm:$0xff]
    %v1982 = vld [vmem:[#allocation11 + $0x258] sm:$0xff]
    %v1983 = vld [vmem:[#allocation11 + $0x260] sm:$0xff]
    %v1984 = vld [vmem:[#allocation11 + $0x268] sm:$0xff]
    %v1985 = vld [vmem:[#allocation11 + $0x270] sm:$0xff]
    %v1986 = vld [vmem:[#allocation11 + $0x278] sm:$0xff]
    %v1987 = vld [vmem:[#allocation11 + $0x280] sm:$0xff]
    %v1988 = vld [vmem:[#allocation11 + $0x288] sm:$0xff]
    %v1989 = vld [vmem:[#allocation11 + $0x290] sm:$0xff]
    %v1990 = vld [vmem:[#allocation11 + $0x298] sm:$0xff]
    %v1991 = vld [vmem:[#allocation11 + $0x2a0] sm:$0xff]
    %v1992 = vld [vmem:[#allocation11 + $0x2a8] sm:$0xff]
    %v1993 = vld [vmem:[#allocation11 + $0x2b0] sm:$0xff]
    %v1994 = vld [vmem:[#allocation11 + $0x2b8] sm:$0xff]
    %v1995 = vld [vmem:[#allocation11 + $0x2c0] sm:$0xff]
    %v1996 = vld [vmem:[#allocation11 + $0x2c8] sm:$0xff]
    %v1997 = vld [vmem:[#allocation11 + $0x2d0] sm:$0xff]
    %v1998 = vld [vmem:[#allocation11 + $0x2d8] sm:$0xff]
    %v1999 = vld [vmem:[#allocation11 + $0x2e0] sm:$0xff]
    %v2000 = vld [vmem:[#allocation11 + $0x2e8] sm:$0xff]
    %v2001 = vld [vmem:[#allocation11 + $0x2f0] sm:$0xff]
    %v2002 = vld [vmem:[#allocation11 + $0x2f8] sm:$0xff]
    %v2003 = vld [vmem:[#allocation11 + $0x300] sm:$0xff]
    %v2004 = vld [vmem:[#allocation11 + $0x308] sm:$0xff]
    %v2005 = vld [vmem:[#allocation11 + $0x310] sm:$0xff]
    %v2006 = vld [vmem:[#allocation11 + $0x318] sm:$0xff]
    %v2007 = vld [vmem:[#allocation11 + $0x320] sm:$0xff]
    %v2008 = vld [vmem:[#allocation11 + $0x328] sm:$0xff]
    %v2009 = vld [vmem:[#allocation11 + $0x330] sm:$0xff]
    %v2010 = vld [vmem:[#allocation11 + $0x338] sm:$0xff]
    %v2011 = vld [vmem:[#allocation11 + $0x340] sm:$0xff]
    %v2012 = vld [vmem:[#allocation11 + $0x348] sm:$0xff]
    %v2013 = vld [vmem:[#allocation11 + $0x350] sm:$0xff]
    %v2014 = vld [vmem:[#allocation11 + $0x358] sm:$0xff]
    %v2015 = vld [vmem:[#allocation11 + $0x360] sm:$0xff]
    %v2016 = vld [vmem:[#allocation11 + $0x368] sm:$0xff]
    %v2017 = vld [vmem:[#allocation11 + $0x370] sm:$0xff]
    %v2018 = vld [vmem:[#allocation11 + $0x378] sm:$0xff]
    %v2019 = vld [vmem:[#allocation11 + $0x380] sm:$0xff]
    %v2020 = vld [vmem:[#allocation11 + $0x388] sm:$0xff]
    %v2021 = vld [vmem:[#allocation11 + $0x390] sm:$0xff]
    %v2022 = vld [vmem:[#allocation11 + $0x398] sm:$0xff]
    %v2023 = vld [vmem:[#allocation11 + $0x3a0] sm:$0xff]
    %v2024 = vld [vmem:[#allocation11 + $0x3a8] sm:$0xff]
    %v2025 = vld [vmem:[#allocation11 + $0x3b0] sm:$0xff]
    %v2026 = vld [vmem:[#allocation11 + $0x3b8] sm:$0xff]
    %v2027 = vld [vmem:[#allocation11 + $0x3c0] sm:$0xff]
    %v2028 = vld [vmem:[#allocation11 + $0x3c8] sm:$0xff]
    %v2029 = vld [vmem:[#allocation11 + $0x3d0] sm:$0xff]
    %v2030 = vld [vmem:[#allocation11 + $0x3d8] sm:$0xff]
    %v2031 = vld [vmem:[#allocation11 + $0x3e0] sm:$0xff]
    %v2032 = vld [vmem:[#allocation11 + $0x3e8] sm:$0xff]
    %v2033 = vld [vmem:[#allocation11 + $0x3f0] sm:$0xff]
    %v2034 = vld [vmem:[#allocation11 + $0x3f8] sm:$0xff]
    %v2035 = vld [vmem:[%s6] sm:$0xf]
    %v2037 = vperm.slane %v2035, 0
    %v2038 = vperm.slane %v2035, 1
    %v2039 = vperm.slane %v2035, 2
    %v2040 = vperm.slane %v2035, 3
    %v2173 = vunpack.c.l.b16 %v1907
    %v2174 = vunpack.c.h.b16 %v1907
    %v2175 = vunpack.c.l.b16 %v1908
    %v2176 = vunpack.c.h.b16 %v1908
    %v2177 = vunpack.c.l.b16 %v1909
    %v2178 = vunpack.c.h.b16 %v1909
    %v2179 = vunpack.c.l.b16 %v1910
    %v2180 = vunpack.c.h.b16 %v1910
    %v2181 = vunpack.c.l.b16 %v1911
    %v2182 = vunpack.c.h.b16 %v1911
    %v2183 = vunpack.c.l.b16 %v1912
    %v2184 = vunpack.c.h.b16 %v1912
    %v2185 = vunpack.c.l.b16 %v1913
    %v2186 = vunpack.c.h.b16 %v1913
    %v2187 = vunpack.c.l.b16 %v1914
    %v2188 = vunpack.c.h.b16 %v1914
    %v2189 = vunpack.c.l.b16 %v1915
    %v2190 = vunpack.c.h.b16 %v1915
    %v2191 = vunpack.c.l.b16 %v1916
    %v2192 = vunpack.c.h.b16 %v1916
    %v2193 = vunpack.c.l.b16 %v1917
    %v2194 = vunpack.c.h.b16 %v1917
    %v2195 = vunpack.c.l.b16 %v1918
    %v2196 = vunpack.c.h.b16 %v1918
    %v2197 = vunpack.c.l.b16 %v1919
    %v2198 = vunpack.c.h.b16 %v1919
    %v2199 = vunpack.c.l.b16 %v1920
    %v2200 = vunpack.c.h.b16 %v1920
    %v2201 = vunpack.c.l.b16 %v1921
    %v2202 = vunpack.c.h.b16 %v1921
    %v2203 = vunpack.c.l.b16 %v1922
    %v2204 = vunpack.c.h.b16 %v1922
    %v2205 = vunpack.c.l.b16 %v1923
    %v2206 = vunpack.c.h.b16 %v1923
    %v2207 = vunpack.c.l.b16 %v1924
    %v2208 = vunpack.c.h.b16 %v1924
    %v2209 = vunpack.c.l.b16 %v1925
    %v2210 = vunpack.c.h.b16 %v1925
    %v2211 = vunpack.c.l.b16 %v1926
    %v2212 = vunpack.c.h.b16 %v1926
    %v2213 = vunpack.c.l.b16 %v1927
    %v2214 = vunpack.c.h.b16 %v1927
    %v2215 = vunpack.c.l.b16 %v1928
    %v2216 = vunpack.c.h.b16 %v1928
    %v2217 = vunpack.c.l.b16 %v1929
    %v2218 = vunpack.c.h.b16 %v1929
    %v2219 = vunpack.c.l.b16 %v1930
    %v2220 = vunpack.c.h.b16 %v1930
    %v2221 = vunpack.c.l.b16 %v1931
    %v2222 = vunpack.c.h.b16 %v1931
    %v2223 = vunpack.c.l.b16 %v1932
    %v2224 = vunpack.c.h.b16 %v1932
    %v2225 = vunpack.c.l.b16 %v1933
    %v2226 = vunpack.c.h.b16 %v1933
    %v2227 = vunpack.c.l.b16 %v1934
    %v2228 = vunpack.c.h.b16 %v1934
    %v2229 = vunpack.c.l.b16 %v1935
    %v2230 = vunpack.c.h.b16 %v1935
    %v2231 = vunpack.c.l.b16 %v1936
    %v2232 = vunpack.c.h.b16 %v1936
    %v2233 = vunpack.c.l.b16 %v1937
    %v2234 = vunpack.c.h.b16 %v1937
    %v2235 = vunpack.c.l.b16 %v1938
    %v2236 = vunpack.c.h.b16 %v1938
    %v2237 = vunpack.c.l.b16 %v1939
    %v2238 = vunpack.c.h.b16 %v1939
    %v2239 = vunpack.c.l.b16 %v1940
    %v2240 = vunpack.c.h.b16 %v1940
    %v2241 = vunpack.c.l.b16 %v1941
    %v2242 = vunpack.c.h.b16 %v1941
    %v2243 = vunpack.c.l.b16 %v1942
    %v2244 = vunpack.c.h.b16 %v1942
    %v2245 = vunpack.c.l.b16 %v1943
    %v2246 = vunpack.c.h.b16 %v1943
    %v2247 = vunpack.c.l.b16 %v1944
    %v2248 = vunpack.c.h.b16 %v1944
    %v2249 = vunpack.c.l.b16 %v1945
    %v2250 = vunpack.c.h.b16 %v1945
    %v2251 = vunpack.c.l.b16 %v1946
    %v2252 = vunpack.c.h.b16 %v1946
    %v2253 = vunpack.c.l.b16 %v1947
    %v2254 = vunpack.c.h.b16 %v1947
    %v2255 = vunpack.c.l.b16 %v1948
    %v2256 = vunpack.c.h.b16 %v1948
    %v2257 = vunpack.c.l.b16 %v1949
    %v2258 = vunpack.c.h.b16 %v1949
    %v2259 = vunpack.c.l.b16 %v1950
    %v2260 = vunpack.c.h.b16 %v1950
    %v2261 = vunpack.c.l.b16 %v1951
    %v2262 = vunpack.c.h.b16 %v1951
    %v2263 = vunpack.c.l.b16 %v1952
    %v2264 = vunpack.c.h.b16 %v1952
    %v2265 = vunpack.c.l.b16 %v1953
    %v2266 = vunpack.c.h.b16 %v1953
    %v2267 = vunpack.c.l.b16 %v1954
    %v2268 = vunpack.c.h.b16 %v1954
    %v2269 = vunpack.c.l.b16 %v1955
    %v2270 = vunpack.c.h.b16 %v1955
    %v2271 = vunpack.c.l.b16 %v1956
    %v2272 = vunpack.c.h.b16 %v1956
    %v2273 = vunpack.c.l.b16 %v1957
    %v2274 = vunpack.c.h.b16 %v1957
    %v2275 = vunpack.c.l.b16 %v1958
    %v2276 = vunpack.c.h.b16 %v1958
    %v2277 = vunpack.c.l.b16 %v1959
    %v2278 = vunpack.c.h.b16 %v1959
    %v2279 = vunpack.c.l.b16 %v1960
    %v2280 = vunpack.c.h.b16 %v1960
    %v2281 = vunpack.c.l.b16 %v1961
    %v2282 = vunpack.c.h.b16 %v1961
    %v2283 = vunpack.c.l.b16 %v1962
    %v2284 = vunpack.c.h.b16 %v1962
    %v2285 = vunpack.c.l.b16 %v1963
    %v2286 = vunpack.c.h.b16 %v1963
    %v2287 = vunpack.c.l.b16 %v1964
    %v2288 = vunpack.c.h.b16 %v1964
    %v2289 = vunpack.c.l.b16 %v1965
    %v2290 = vunpack.c.h.b16 %v1965
    %v2291 = vunpack.c.l.b16 %v1966
    %v2292 = vunpack.c.h.b16 %v1966
    %v2293 = vunpack.c.l.b16 %v1967
    %v2294 = vunpack.c.h.b16 %v1967
    %v2295 = vunpack.c.l.b16 %v1968
    %v2296 = vunpack.c.h.b16 %v1968
    %v2297 = vunpack.c.l.b16 %v1969
    %v2298 = vunpack.c.h.b16 %v1969
    %v2299 = vunpack.c.l.b16 %v1970
    %v2300 = vunpack.c.h.b16 %v1970
    %v2301 = vunpack.c.l.b16 %v1971
    %v2302 = vunpack.c.h.b16 %v1971
    %v2303 = vunpack.c.l.b16 %v1972
    %v2304 = vunpack.c.h.b16 %v1972
    %v2305 = vunpack.c.l.b16 %v1973
    %v2306 = vunpack.c.h.b16 %v1973
    %v2307 = vunpack.c.l.b16 %v1974
    %v2308 = vunpack.c.h.b16 %v1974
    %v2309 = vunpack.c.l.b16 %v1975
    %v2310 = vunpack.c.h.b16 %v1975
    %v2311 = vunpack.c.l.b16 %v1976
    %v2312 = vunpack.c.h.b16 %v1976
    %v2313 = vunpack.c.l.b16 %v1977
    %v2314 = vunpack.c.h.b16 %v1977
    %v2315 = vunpack.c.l.b16 %v1978
    %v2316 = vunpack.c.h.b16 %v1978
    %v2317 = vunpack.c.l.b16 %v1979
    %v2318 = vunpack.c.h.b16 %v1979
    %v2319 = vunpack.c.l.b16 %v1980
    %v2320 = vunpack.c.h.b16 %v1980
    %v2321 = vunpack.c.l.b16 %v1981
    %v2322 = vunpack.c.h.b16 %v1981
    %v2323 = vunpack.c.l.b16 %v1982
    %v2324 = vunpack.c.h.b16 %v1982
    %v2325 = vunpack.c.l.b16 %v1983
    %v2326 = vunpack.c.h.b16 %v1983
    %v2327 = vunpack.c.l.b16 %v1984
    %v2328 = vunpack.c.h.b16 %v1984
    %v2329 = vunpack.c.l.b16 %v1985
    %v2330 = vunpack.c.h.b16 %v1985
    %v2331 = vunpack.c.l.b16 %v1986
    %v2332 = vunpack.c.h.b16 %v1986
    %v2333 = vunpack.c.l.b16 %v1987
    %v2334 = vunpack.c.h.b16 %v1987
    %v2335 = vunpack.c.l.b16 %v1988
    %v2336 = vunpack.c.h.b16 %v1988
    %v2337 = vunpack.c.l.b16 %v1989
    %v2338 = vunpack.c.h.b16 %v1989
    %v2339 = vunpack.c.l.b16 %v1990
    %v2340 = vunpack.c.h.b16 %v1990
    %v2341 = vunpack.c.l.b16 %v1991
    %v2342 = vunpack.c.h.b16 %v1991
    %v2343 = vunpack.c.l.b16 %v1992
    %v2344 = vunpack.c.h.b16 %v1992
    %v2345 = vunpack.c.l.b16 %v1993
    %v2346 = vunpack.c.h.b16 %v1993
    %v2347 = vunpack.c.l.b16 %v1994
    %v2348 = vunpack.c.h.b16 %v1994
    %v2349 = vunpack.c.l.b16 %v1995
    %v2350 = vunpack.c.h.b16 %v1995
    %v2351 = vunpack.c.l.b16 %v1996
    %v2352 = vunpack.c.h.b16 %v1996
    %v2353 = vunpack.c.l.b16 %v1997
    %v2354 = vunpack.c.h.b16 %v1997
    %v2355 = vunpack.c.l.b16 %v1998
    %v2356 = vunpack.c.h.b16 %v1998
    %v2357 = vunpack.c.l.b16 %v1999
    %v2358 = vunpack.c.h.b16 %v1999
    %v2359 = vunpack.c.l.b16 %v2000
    %v2360 = vunpack.c.h.b16 %v2000
    %v2361 = vunpack.c.l.b16 %v2001
    %v2362 = vunpack.c.h.b16 %v2001
    %v2363 = vunpack.c.l.b16 %v2002
    %v2364 = vunpack.c.h.b16 %v2002
    %v2365 = vunpack.c.l.b16 %v2003
    %v2366 = vunpack.c.h.b16 %v2003
    %v2367 = vunpack.c.l.b16 %v2004
    %v2368 = vunpack.c.h.b16 %v2004
    %v2369 = vunpack.c.l.b16 %v2005
    %v2370 = vunpack.c.h.b16 %v2005
    %v2371 = vunpack.c.l.b16 %v2006
    %v2372 = vunpack.c.h.b16 %v2006
    %v2373 = vunpack.c.l.b16 %v2007
    %v2374 = vunpack.c.h.b16 %v2007
    %v2375 = vunpack.c.l.b16 %v2008
    %v2376 = vunpack.c.h.b16 %v2008
    %v2377 = vunpack.c.l.b16 %v2009
    %v2378 = vunpack.c.h.b16 %v2009
    %v2379 = vunpack.c.l.b16 %v2010
    %v2380 = vunpack.c.h.b16 %v2010
    %v2381 = vunpack.c.l.b16 %v2011
    %v2382 = vunpack.c.h.b16 %v2011
    %v2383 = vunpack.c.l.b16 %v2012
    %v2384 = vunpack.c.h.b16 %v2012
    %v2385 = vunpack.c.l.b16 %v2013
    %v2386 = vunpack.c.h.b16 %v2013
    %v2387 = vunpack.c.l.b16 %v2014
    %v2388 = vunpack.c.h.b16 %v2014
    %v2389 = vunpack.c.l.b16 %v2015
    %v2390 = vunpack.c.h.b16 %v2015
    %v2391 = vunpack.c.l.b16 %v2016
    %v2392 = vunpack.c.h.b16 %v2016
    %v2393 = vunpack.c.l.b16 %v2017
    %v2394 = vunpack.c.h.b16 %v2017
    %v2395 = vunpack.c.l.b16 %v2018
    %v2396 = vunpack.c.h.b16 %v2018
    %v2397 = vunpack.c.l.b16 %v2019
    %v2398 = vunpack.c.h.b16 %v2019
    %v2399 = vunpack.c.l.b16 %v2020
    %v2400 = vunpack.c.h.b16 %v2020
    %v2401 = vunpack.c.l.b16 %v2021
    %v2402 = vunpack.c.h.b16 %v2021
    %v2403 = vunpack.c.l.b16 %v2022
    %v2404 = vunpack.c.h.b16 %v2022
    %v2405 = vunpack.c.l.b16 %v2023
    %v2406 = vunpack.c.h.b16 %v2023
    %v2407 = vunpack.c.l.b16 %v2024
    %v2408 = vunpack.c.h.b16 %v2024
    %v2409 = vunpack.c.l.b16 %v2025
    %v2410 = vunpack.c.h.b16 %v2025
    %v2411 = vunpack.c.l.b16 %v2026
    %v2412 = vunpack.c.h.b16 %v2026
    %v2413 = vunpack.c.l.b16 %v2027
    %v2414 = vunpack.c.h.b16 %v2027
    %v2415 = vunpack.c.l.b16 %v2028
    %v2416 = vunpack.c.h.b16 %v2028
    %v2417 = vunpack.c.l.b16 %v2029
    %v2418 = vunpack.c.h.b16 %v2029
    %v2419 = vunpack.c.l.b16 %v2030
    %v2420 = vunpack.c.h.b16 %v2030
    %v2421 = vunpack.c.l.b16 %v2031
    %v2422 = vunpack.c.h.b16 %v2031
    %v2423 = vunpack.c.l.b16 %v2032
    %v2424 = vunpack.c.h.b16 %v2032
    %v2425 = vunpack.c.l.b16 %v2033
    %v2426 = vunpack.c.h.b16 %v2033
    %v2427 = vunpack.c.l.b16 %v2034
    %v2428 = vunpack.c.h.b16 %v2034
    %v2429 = vpack.c.b16 %v2177, %v2173
    %v2430 = vpack.c.b16 %v2178, %v2174
    %v2431 = vpack.c.b16 %v2179, %v2175
    %v2432 = vpack.c.b16 %v2180, %v2176
    %v2433 = vpack.c.b16 %v2185, %v2181
    %v2434 = vpack.c.b16 %v2186, %v2182
    %v2435 = vpack.c.b16 %v2187, %v2183
    %v2436 = vpack.c.b16 %v2188, %v2184
    %v2437 = vpack.c.b16 %v2193, %v2189
    %v2438 = vpack.c.b16 %v2194, %v2190
    %v2439 = vpack.c.b16 %v2195, %v2191
    %v2440 = vpack.c.b16 %v2196, %v2192
    %v2441 = vpack.c.b16 %v2201, %v2197
    %v2442 = vpack.c.b16 %v2202, %v2198
    %v2443 = vpack.c.b16 %v2203, %v2199
    %v2444 = vpack.c.b16 %v2204, %v2200
    %v2445 = vpack.c.b16 %v2209, %v2205
    %v2446 = vpack.c.b16 %v2210, %v2206
    %v2447 = vpack.c.b16 %v2211, %v2207
    %v2448 = vpack.c.b16 %v2212, %v2208
    %v2449 = vpack.c.b16 %v2217, %v2213
    %v2450 = vpack.c.b16 %v2218, %v2214
    %v2451 = vpack.c.b16 %v2219, %v2215
    %v2452 = vpack.c.b16 %v2220, %v2216
    %v2453 = vpack.c.b16 %v2225, %v2221
    %v2454 = vpack.c.b16 %v2226, %v2222
    %v2455 = vpack.c.b16 %v2227, %v2223
    %v2456 = vpack.c.b16 %v2228, %v2224
    %v2457 = vpack.c.b16 %v2233, %v2229
    %v2458 = vpack.c.b16 %v2234, %v2230
    %v2459 = vpack.c.b16 %v2235, %v2231
    %v2460 = vpack.c.b16 %v2236, %v2232
    %v2461 = vpack.c.b16 %v2241, %v2237
    %v2462 = vpack.c.b16 %v2242, %v2238
    %v2463 = vpack.c.b16 %v2243, %v2239
    %v2464 = vpack.c.b16 %v2244, %v2240
    %v2465 = vpack.c.b16 %v2249, %v2245
    %v2466 = vpack.c.b16 %v2250, %v2246
    %v2467 = vpack.c.b16 %v2251, %v2247
    %v2468 = vpack.c.b16 %v2252, %v2248
    %v2469 = vpack.c.b16 %v2257, %v2253
    %v2470 = vpack.c.b16 %v2258, %v2254
    %v2471 = vpack.c.b16 %v2259, %v2255
    %v2472 = vpack.c.b16 %v2260, %v2256
    %v2473 = vpack.c.b16 %v2265, %v2261
    %v2474 = vpack.c.b16 %v2266, %v2262
    %v2475 = vpack.c.b16 %v2267, %v2263
    %v2476 = vpack.c.b16 %v2268, %v2264
    %v2477 = vpack.c.b16 %v2273, %v2269
    %v2478 = vpack.c.b16 %v2274, %v2270
    %v2479 = vpack.c.b16 %v2275, %v2271
    %v2480 = vpack.c.b16 %v2276, %v2272
    %v2481 = vpack.c.b16 %v2281, %v2277
    %v2482 = vpack.c.b16 %v2282, %v2278
    %v2483 = vpack.c.b16 %v2283, %v2279
    %v2484 = vpack.c.b16 %v2284, %v2280
    %v2485 = vpack.c.b16 %v2289, %v2285
    %v2486 = vpack.c.b16 %v2290, %v2286
    %v2487 = vpack.c.b16 %v2291, %v2287
    %v2488 = vpack.c.b16 %v2292, %v2288
    %v2489 = vpack.c.b16 %v2297, %v2293
    %v2490 = vpack.c.b16 %v2298, %v2294
    %v2491 = vpack.c.b16 %v2299, %v2295
    %v2492 = vpack.c.b16 %v2300, %v2296
    %v2493 = vpack.c.b16 %v2305, %v2301
    %v2494 = vpack.c.b16 %v2306, %v2302
    %v2495 = vpack.c.b16 %v2307, %v2303
    %v2496 = vpack.c.b16 %v2308, %v2304
    %v2497 = vpack.c.b16 %v2313, %v2309
    %v2498 = vpack.c.b16 %v2314, %v2310
    %v2499 = vpack.c.b16 %v2315, %v2311
    %v2500 = vpack.c.b16 %v2316, %v2312
    %v2501 = vpack.c.b16 %v2321, %v2317
    %v2502 = vpack.c.b16 %v2322, %v2318
    %v2503 = vpack.c.b16 %v2323, %v2319
    %v2504 = vpack.c.b16 %v2324, %v2320
    %v2505 = vpack.c.b16 %v2329, %v2325
    %v2506 = vpack.c.b16 %v2330, %v2326
    %v2507 = vpack.c.b16 %v2331, %v2327
    %v2508 = vpack.c.b16 %v2332, %v2328
    %v2509 = vpack.c.b16 %v2337, %v2333
    %v2510 = vpack.c.b16 %v2338, %v2334
    %v2511 = vpack.c.b16 %v2339, %v2335
    %v2512 = vpack.c.b16 %v2340, %v2336
    %v2513 = vpack.c.b16 %v2345, %v2341
    %v2514 = vpack.c.b16 %v2346, %v2342
    %v2515 = vpack.c.b16 %v2347, %v2343
    %v2516 = vpack.c.b16 %v2348, %v2344
    %v2517 = vpack.c.b16 %v2353, %v2349
    %v2518 = vpack.c.b16 %v2354, %v2350
    %v2519 = vpack.c.b16 %v2355, %v2351
    %v2520 = vpack.c.b16 %v2356, %v2352
    %v2521 = vpack.c.b16 %v2361, %v2357
    %v2522 = vpack.c.b16 %v2362, %v2358
    %v2523 = vpack.c.b16 %v2363, %v2359
    %v2524 = vpack.c.b16 %v2364, %v2360
    %v2525 = vpack.c.b16 %v2369, %v2365
    %v2526 = vpack.c.b16 %v2370, %v2366
    %v2527 = vpack.c.b16 %v2371, %v2367
    %v2528 = vpack.c.b16 %v2372, %v2368
    %v2529 = vpack.c.b16 %v2377, %v2373
    %v2530 = vpack.c.b16 %v2378, %v2374
    %v2531 = vpack.c.b16 %v2379, %v2375
    %v2532 = vpack.c.b16 %v2380, %v2376
    %v2533 = vpack.c.b16 %v2385, %v2381
    %v2534 = vpack.c.b16 %v2386, %v2382
    %v2535 = vpack.c.b16 %v2387, %v2383
    %v2536 = vpack.c.b16 %v2388, %v2384
    %v2537 = vpack.c.b16 %v2393, %v2389
    %v2538 = vpack.c.b16 %v2394, %v2390
    %v2539 = vpack.c.b16 %v2395, %v2391
    %v2540 = vpack.c.b16 %v2396, %v2392
    %v2541 = vpack.c.b16 %v2401, %v2397
    %v2542 = vpack.c.b16 %v2402, %v2398
    %v2543 = vpack.c.b16 %v2403, %v2399
    %v2544 = vpack.c.b16 %v2404, %v2400
    %v2545 = vpack.c.b16 %v2409, %v2405
    %v2546 = vpack.c.b16 %v2410, %v2406
    %v2547 = vpack.c.b16 %v2411, %v2407
    %v2548 = vpack.c.b16 %v2412, %v2408
    %v2549 = vpack.c.b16 %v2417, %v2413
    %v2550 = vpack.c.b16 %v2418, %v2414
    %v2551 = vpack.c.b16 %v2419, %v2415
    %v2552 = vpack.c.b16 %v2420, %v2416
    %v2553 = vpack.c.b16 %v2425, %v2421
    %v2554 = vpack.c.b16 %v2426, %v2422
    %v2555 = vpack.c.b16 %v2427, %v2423
    %v2556 = vpack.c.b16 %v2428, %v2424
    %2685 = vmatpush.bf16.msra.mxu0 %v2457
    %2686 = vmatpush.bf16.msra.mxu0 %v2453
    %2687 = vmatpush.bf16.msra.mxu0 %v2449
    %2688 = vmatpush.bf16.msra.mxu0 %v2445
    %2689 = vmatpush.bf16.msra.mxu0 %v2441
    %2690 = vmatpush.bf16.msra.mxu0 %v2437
    %2691 = vmatpush.bf16.msra.mxu0 %v2433
    %2692 = vmatpush.bf16.msra.mxu0 %v2429
    %2693 = vmatmul.bf16.gmra.mxu0 %v1903
    %v2694 = vpop.f32.mrf.mxu0
    %v2695 = vadd.f32 %v2037, %v2694
    %v2696 = vpop.f32.mrf.mxu0
    %v2697 = vadd.f32 %v2037, %v2696
    %2698 = vdwg.mxu0
    %2699 = vmatpush.bf16.msra.mxu0 %v2489
    %2700 = vmatpush.bf16.msra.mxu0 %v2485
    %2701 = vmatpush.bf16.msra.mxu0 %v2481
    %2702 = vmatpush.bf16.msra.mxu0 %v2477
    %2703 = vmatpush.bf16.msra.mxu0 %v2473
    %2704 = vmatpush.bf16.msra.mxu0 %v2469
    %2705 = vmatpush.bf16.msra.mxu0 %v2465
    %2706 = vmatpush.bf16.msra.mxu0 %v2461
    %2707 = vmatmul.bf16.gmra.mxu0 %v1904
    %v2708 = vpop.f32.mrf.mxu0
    %v2709 = vadd.f32 %v2695, %v2708
    %v2710 = vpop.f32.mrf.mxu0
    %v2711 = vadd.f32 %v2697, %v2710
    %2712 = vdwg.mxu0
    %2713 = vmatpush.bf16.msra.mxu0 %v2521
    %2714 = vmatpush.bf16.msra.mxu0 %v2517
    %2715 = vmatpush.bf16.msra.mxu0 %v2513
    %2716 = vmatpush.bf16.msra.mxu0 %v2509
    %2717 = vmatpush.bf16.msra.mxu0 %v2505
    %2718 = vmatpush.bf16.msra.mxu0 %v2501
    %2719 = vmatpush.bf16.msra.mxu0 %v2497
    %2720 = vmatpush.bf16.msra.mxu0 %v2493
    %2721 = vmatmul.bf16.gmra.mxu0 %v1905
    %v2722 = vpop.f32.mrf.mxu0
    %v2723 = vadd.f32 %v2709, %v2722
    %v2724 = vpop.f32.mrf.mxu0
    %v2725 = vadd.f32 %v2711, %v2724
    %2726 = vdwg.mxu0
    %2727 = vmatpush.bf16.msra.mxu0 %v2553
    %2728 = vmatpush.bf16.msra.mxu0 %v2549
    %2729 = vmatpush.bf16.msra.mxu0 %v2545
    %2730 = vmatpush.bf16.msra.mxu0 %v2541
    %2731 = vmatpush.bf16.msra.mxu0 %v2537
    %2732 = vmatpush.bf16.msra.mxu0 %v2533
    %2733 = vmatpush.bf16.msra.mxu0 %v2529
    %2734 = vmatpush.bf16.msra.mxu0 %v2525
    %2735 = vmatmul.bf16.gmra.mxu0 %v1906
    %v2736 = vpop.f32.mrf.mxu0
    %v2737 = vadd.f32 %v2723, %v2736
    %v2738 = vpop.f32.mrf.mxu0
    %v2739 = vadd.f32 %v2725, %v2738
    %2740 = vdwg.mxu0
    %2741 = vmatpush.bf16.msra.mxu0 %v2458
    %2742 = vmatpush.bf16.msra.mxu0 %v2454
    %2743 = vmatpush.bf16.msra.mxu0 %v2450
    %2744 = vmatpush.bf16.msra.mxu0 %v2446
    %2745 = vmatpush.bf16.msra.mxu0 %v2442
    %2746 = vmatpush.bf16.msra.mxu0 %v2438
    %2747 = vmatpush.bf16.msra.mxu0 %v2434
    %2748 = vmatpush.bf16.msra.mxu0 %v2430
    %2749 = vmatmul.bf16.gmra.mxu0 %v1903
    %v2750 = vpop.f32.mrf.mxu0
    %v2751 = vadd.f32 %v2038, %v2750
    %v2752 = vpop.f32.mrf.mxu0
    %v2753 = vadd.f32 %v2038, %v2752
    %2754 = vdwg.mxu0
    %2755 = vmatpush.bf16.msra.mxu0 %v2490
    %2756 = vmatpush.bf16.msra.mxu0 %v2486
    %2757 = vmatpush.bf16.msra.mxu0 %v2482
    %2758 = vmatpush.bf16.msra.mxu0 %v2478
    %2759 = vmatpush.bf16.msra.mxu0 %v2474
    %2760 = vmatpush.bf16.msra.mxu0 %v2470
    %2761 = vmatpush.bf16.msra.mxu0 %v2466
    %2762 = vmatpush.bf16.msra.mxu0 %v2462
    %2763 = vmatmul.bf16.gmra.mxu0 %v1904
    %v2764 = vpop.f32.mrf.mxu0
    %v2765 = vadd.f32 %v2751, %v2764
    %v2766 = vpop.f32.mrf.mxu0
    %v2767 = vadd.f32 %v2753, %v2766
    %2768 = vdwg.mxu0
    %2769 = vmatpush.bf16.msra.mxu0 %v2522
    %2770 = vmatpush.bf16.msra.mxu0 %v2518
    %2771 = vmatpush.bf16.msra.mxu0 %v2514
    %2772 = vmatpush.bf16.msra.mxu0 %v2510
    %2773 = vmatpush.bf16.msra.mxu0 %v2506
    %2774 = vmatpush.bf16.msra.mxu0 %v2502
    %2775 = vmatpush.bf16.msra.mxu0 %v2498
    %2776 = vmatpush.bf16.msra.mxu0 %v2494
    %2777 = vmatmul.bf16.gmra.mxu0 %v1905
    %v2778 = vpop.f32.mrf.mxu0
    %v2779 = vadd.f32 %v2765, %v2778
    %v2780 = vpop.f32.mrf.mxu0
    %v2781 = vadd.f32 %v2767, %v2780
    %2782 = vdwg.mxu0
    %2783 = vmatpush.bf16.msra.mxu0 %v2554
    %2784 = vmatpush.bf16.msra.mxu0 %v2550
    %2785 = vmatpush.bf16.msra.mxu0 %v2546
    %2786 = vmatpush.bf16.msra.mxu0 %v2542
    %2787 = vmatpush.bf16.msra.mxu0 %v2538
    %2788 = vmatpush.bf16.msra.mxu0 %v2534
    %2789 = vmatpush.bf16.msra.mxu0 %v2530
    %2790 = vmatpush.bf16.msra.mxu0 %v2526
    %2791 = vmatmul.bf16.gmra.mxu0 %v1906
    %v2792 = vpop.f32.mrf.mxu0
    %v2793 = vadd.f32 %v2779, %v2792
    %v2794 = vpop.f32.mrf.mxu0
    %v2795 = vadd.f32 %v2781, %v2794
    %2796 = vdwg.mxu0
    %2797 = vmatpush.bf16.msra.mxu0 %v2459
    %2798 = vmatpush.bf16.msra.mxu0 %v2455
    %2799 = vmatpush.bf16.msra.mxu0 %v2451
    %2800 = vmatpush.bf16.msra.mxu0 %v2447
    %2801 = vmatpush.bf16.msra.mxu0 %v2443
    %2802 = vmatpush.bf16.msra.mxu0 %v2439
    %2803 = vmatpush.bf16.msra.mxu0 %v2435
    %2804 = vmatpush.bf16.msra.mxu0 %v2431
    %2805 = vmatmul.bf16.gmra.mxu0 %v1903
    %v2806 = vpop.f32.mrf.mxu0
    %v2807 = vadd.f32 %v2039, %v2806
    %v2808 = vpop.f32.mrf.mxu0
    %v2809 = vadd.f32 %v2039, %v2808
    %2810 = vdwg.mxu0
    %2811 = vmatpush.bf16.msra.mxu0 %v2491
    %2812 = vmatpush.bf16.msra.mxu0 %v2487
    %2813 = vmatpush.bf16.msra.mxu0 %v2483
    %2814 = vmatpush.bf16.msra.mxu0 %v2479
    %2815 = vmatpush.bf16.msra.mxu0 %v2475
    %2816 = vmatpush.bf16.msra.mxu0 %v2471
    %2817 = vmatpush.bf16.msra.mxu0 %v2467
    %2818 = vmatpush.bf16.msra.mxu0 %v2463
    %2819 = vmatmul.bf16.gmra.mxu0 %v1904
    %v2820 = vpop.f32.mrf.mxu0
    %v2821 = vadd.f32 %v2807, %v2820
    %v2822 = vpop.f32.mrf.mxu0
    %v2823 = vadd.f32 %v2809, %v2822
    %2824 = vdwg.mxu0
    %2825 = vmatpush.bf16.msra.mxu0 %v2523
    %2826 = vmatpush.bf16.msra.mxu0 %v2519
    %2827 = vmatpush.bf16.msra.mxu0 %v2515
    %2828 = vmatpush.bf16.msra.mxu0 %v2511
    %2829 = vmatpush.bf16.msra.mxu0 %v2507
    %2830 = vmatpush.bf16.msra.mxu0 %v2503
    %2831 = vmatpush.bf16.msra.mxu0 %v2499
    %2832 = vmatpush.bf16.msra.mxu0 %v2495
    %2833 = vmatmul.bf16.gmra.mxu0 %v1905
    %v2834 = vpop.f32.mrf.mxu0
    %v2835 = vadd.f32 %v2821, %v2834
    %v2836 = vpop.f32.mrf.mxu0
    %v2837 = vadd.f32 %v2823, %v2836
    %2838 = vdwg.mxu0
    %2839 = vmatpush.bf16.msra.mxu0 %v2555
    %2840 = vmatpush.bf16.msra.mxu0 %v2551
    %2841 = vmatpush.bf16.msra.mxu0 %v2547
    %2842 = vmatpush.bf16.msra.mxu0 %v2543
    %2843 = vmatpush.bf16.msra.mxu0 %v2539
    %2844 = vmatpush.bf16.msra.mxu0 %v2535
    %2845 = vmatpush.bf16.msra.mxu0 %v2531
    %2846 = vmatpush.bf16.msra.mxu0 %v2527
    %2847 = vmatmul.bf16.gmra.mxu0 %v1906
    %v2848 = vpop.f32.mrf.mxu0
    %v2849 = vadd.f32 %v2835, %v2848
    %v2850 = vpop.f32.mrf.mxu0
    %v2851 = vadd.f32 %v2837, %v2850
    %2852 = vdwg.mxu0
    %2853 = vmatpush.bf16.msra.mxu0 %v2460
    %2854 = vmatpush.bf16.msra.mxu0 %v2456
    %2855 = vmatpush.bf16.msra.mxu0 %v2452
    %2856 = vmatpush.bf16.msra.mxu0 %v2448
    %2857 = vmatpush.bf16.msra.mxu0 %v2444
    %2858 = vmatpush.bf16.msra.mxu0 %v2440
    %2859 = vmatpush.bf16.msra.mxu0 %v2436
    %2860 = vmatpush.bf16.msra.mxu0 %v2432
    %2861 = vmatmul.bf16.gmra.mxu0 %v1903
    %v2862 = vpop.f32.mrf.mxu0
    %v2863 = vadd.f32 %v2040, %v2862
    %v2864 = vpop.f32.mrf.mxu0
    %v2865 = vadd.f32 %v2040, %v2864
    %2866 = vdwg.mxu0
    %2867 = vmatpush.bf16.msra.mxu0 %v2492
    %2868 = vmatpush.bf16.msra.mxu0 %v2488
    %2869 = vmatpush.bf16.msra.mxu0 %v2484
    %2870 = vmatpush.bf16.msra.mxu0 %v2480
    %2871 = vmatpush.bf16.msra.mxu0 %v2476
    %2872 = vmatpush.bf16.msra.mxu0 %v2472
    %2873 = vmatpush.bf16.msra.mxu0 %v2468
    %2874 = vmatpush.bf16.msra.mxu0 %v2464
    %2875 = vmatmul.bf16.gmra.mxu0 %v1904
    %v2876 = vpop.f32.mrf.mxu0
    %v2877 = vadd.f32 %v2863, %v2876
    %v2878 = vpop.f32.mrf.mxu0
    %v2879 = vadd.f32 %v2865, %v2878
    %2880 = vdwg.mxu0
    %2881 = vmatpush.bf16.msra.mxu0 %v2524
    %2882 = vmatpush.bf16.msra.mxu0 %v2520
    %2883 = vmatpush.bf16.msra.mxu0 %v2516
    %2884 = vmatpush.bf16.msra.mxu0 %v2512
    %2885 = vmatpush.bf16.msra.mxu0 %v2508
    %2886 = vmatpush.bf16.msra.mxu0 %v2504
    %2887 = vmatpush.bf16.msra.mxu0 %v2500
    %2888 = vmatpush.bf16.msra.mxu0 %v2496
    %2889 = vmatmul.bf16.gmra.mxu0 %v1905
    %v2890 = vpop.f32.mrf.mxu0
    %v2891 = vadd.f32 %v2877, %v2890
    %v2892 = vpop.f32.mrf.mxu0
    %v2893 = vadd.f32 %v2879, %v2892
    %2894 = vdwg.mxu0
    %2895 = vmatpush.bf16.msra.mxu0 %v2556
    %2896 = vmatpush.bf16.msra.mxu0 %v2552
    %2897 = vmatpush.bf16.msra.mxu0 %v2548
    %2898 = vmatpush.bf16.msra.mxu0 %v2544
    %2899 = vmatpush.bf16.msra.mxu0 %v2540
    %2900 = vmatpush.bf16.msra.mxu0 %v2536
    %2901 = vmatpush.bf16.msra.mxu0 %v2532
    %2902 = vmatpush.bf16.msra.mxu0 %v2528
    %2903 = vmatmul.bf16.gmra.mxu0 %v1906
    %v2904 = vpop.f32.mrf.mxu0
    %v2905 = vadd.f32 %v2891, %v2904
    %v2906 = vpop.f32.mrf.mxu0
    %v2907 = vadd.f32 %v2893, %v2906
    %2908 = vdwg.mxu0
    %v2909 = vmax.f32 %v2737, 0.0
    %v2910 = vmax.f32 %v2793, 0.0
    %v2911 = vmax.f32 %v2849, 0.0
    %v2912 = vmax.f32 %v2905, 0.0
    %v2913 = vmax.f32 %v2739, 0.0
    %v2914 = vmax.f32 %v2795, 0.0
    %v2915 = vmax.f32 %v2851, 0.0
    %v2916 = vmax.f32 %v2907, 0.0
    %v2917 = vpack.c.bf16 %v2913, %v2909
    %v2918 = vpack.c.bf16 %v2914, %v2910
    %v2919 = vpack.c.bf16 %v2915, %v2911
    %v2920 = vpack.c.bf16 %v2916, %v2912
    %v2921 = vld [vmem:[#allocation13] sm:$0xff]
    %v2922 = vld [vmem:[#allocation13 + $0x8] sm:$0xff]
    %v2923 = vld [vmem:[#allocation13 + $0x10] sm:$0xff]
    %v2924 = vld [vmem:[#allocation13 + $0x18] sm:$0xff]
    %v2925 = vld [vmem:[#allocation13 + $0x20] sm:$0xff]
    %v2926 = vld [vmem:[#allocation13 + $0x28] sm:$0xff]
    %v2927 = vld [vmem:[#allocation13 + $0x30] sm:$0xff]
    %v2928 = vld [vmem:[#allocation13 + $0x38] sm:$0xff]
    %v2929 = vld [vmem:[#allocation13 + $0x40] sm:$0xff]
    %v2930 = vld [vmem:[#allocation13 + $0x48] sm:$0xff]
    %v2931 = vld [vmem:[#allocation13 + $0x50] sm:$0xff]
    %v2932 = vld [vmem:[#allocation13 + $0x58] sm:$0xff]
    %v2933 = vld [vmem:[#allocation13 + $0x60] sm:$0xff]
    %v2934 = vld [vmem:[#allocation13 + $0x68] sm:$0xff]
    %v2935 = vld [vmem:[#allocation13 + $0x70] sm:$0xff]
    %v2936 = vld [vmem:[#allocation13 + $0x78] sm:$0xff]
    %v2937 = vld [vmem:[#allocation13 + $0x80] sm:$0xff]
    %v2938 = vld [vmem:[#allocation13 + $0x88] sm:$0xff]
    %v2939 = vld [vmem:[#allocation13 + $0x90] sm:$0xff]
    %v2940 = vld [vmem:[#allocation13 + $0x98] sm:$0xff]
    %v2941 = vld [vmem:[#allocation13 + $0xa0] sm:$0xff]
    %v2942 = vld [vmem:[#allocation13 + $0xa8] sm:$0xff]
    %v2943 = vld [vmem:[#allocation13 + $0xb0] sm:$0xff]
    %v2944 = vld [vmem:[#allocation13 + $0xb8] sm:$0xff]
    %v2945 = vld [vmem:[#allocation13 + $0xc0] sm:$0xff]
    %v2946 = vld [vmem:[#allocation13 + $0xc8] sm:$0xff]
    %v2947 = vld [vmem:[#allocation13 + $0xd0] sm:$0xff]
    %v2948 = vld [vmem:[#allocation13 + $0xd8] sm:$0xff]
    %v2949 = vld [vmem:[#allocation13 + $0xe0] sm:$0xff]
    %v2950 = vld [vmem:[#allocation13 + $0xe8] sm:$0xff]
    %v2951 = vld [vmem:[#allocation13 + $0xf0] sm:$0xff]
    %v2952 = vld [vmem:[#allocation13 + $0xf8] sm:$0xff]
    %v2953 = vld [vmem:[#allocation13 + $0x100] sm:$0xff]
    %v2954 = vld [vmem:[#allocation13 + $0x108] sm:$0xff]
    %v2955 = vld [vmem:[#allocation13 + $0x110] sm:$0xff]
    %v2956 = vld [vmem:[#allocation13 + $0x118] sm:$0xff]
    %v2957 = vld [vmem:[#allocation13 + $0x120] sm:$0xff]
    %v2958 = vld [vmem:[#allocation13 + $0x128] sm:$0xff]
    %v2959 = vld [vmem:[#allocation13 + $0x130] sm:$0xff]
    %v2960 = vld [vmem:[#allocation13 + $0x138] sm:$0xff]
    %v2961 = vld [vmem:[#allocation13 + $0x140] sm:$0xff]
    %v2962 = vld [vmem:[#allocation13 + $0x148] sm:$0xff]
    %v2963 = vld [vmem:[#allocation13 + $0x150] sm:$0xff]
    %v2964 = vld [vmem:[#allocation13 + $0x158] sm:$0xff]
    %v2965 = vld [vmem:[#allocation13 + $0x160] sm:$0xff]
    %v2966 = vld [vmem:[#allocation13 + $0x168] sm:$0xff]
    %v2967 = vld [vmem:[#allocation13 + $0x170] sm:$0xff]
    %v2968 = vld [vmem:[#allocation13 + $0x178] sm:$0xff]
    %v2969 = vld [vmem:[#allocation13 + $0x180] sm:$0xff]
    %v2970 = vld [vmem:[#allocation13 + $0x188] sm:$0xff]
    %v2971 = vld [vmem:[#allocation13 + $0x190] sm:$0xff]
    %v2972 = vld [vmem:[#allocation13 + $0x198] sm:$0xff]
    %v2973 = vld [vmem:[#allocation13 + $0x1a0] sm:$0xff]
    %v2974 = vld [vmem:[#allocation13 + $0x1a8] sm:$0xff]
    %v2975 = vld [vmem:[#allocation13 + $0x1b0] sm:$0xff]
    %v2976 = vld [vmem:[#allocation13 + $0x1b8] sm:$0xff]
    %v2977 = vld [vmem:[#allocation13 + $0x1c0] sm:$0xff]
    %v2978 = vld [vmem:[#allocation13 + $0x1c8] sm:$0xff]
    %v2979 = vld [vmem:[#allocation13 + $0x1d0] sm:$0xff]
    %v2980 = vld [vmem:[#allocation13 + $0x1d8] sm:$0xff]
    %v2981 = vld [vmem:[#allocation13 + $0x1e0] sm:$0xff]
    %v2982 = vld [vmem:[#allocation13 + $0x1e8] sm:$0xff]
    %v2983 = vld [vmem:[#allocation13 + $0x1f0] sm:$0xff]
    %v2984 = vld [vmem:[#allocation13 + $0x1f8] sm:$0xff]
    %v2985 = vld [vmem:[#allocation13 + $0x200] sm:$0xff]
    %v2986 = vld [vmem:[#allocation13 + $0x208] sm:$0xff]
    %v2987 = vld [vmem:[#allocation13 + $0x210] sm:$0xff]
    %v2988 = vld [vmem:[#allocation13 + $0x218] sm:$0xff]
    %v2989 = vld [vmem:[#allocation13 + $0x220] sm:$0xff]
    %v2990 = vld [vmem:[#allocation13 + $0x228] sm:$0xff]
    %v2991 = vld [vmem:[#allocation13 + $0x230] sm:$0xff]
    %v2992 = vld [vmem:[#allocation13 + $0x238] sm:$0xff]
    %v2993 = vld [vmem:[#allocation13 + $0x240] sm:$0xff]
    %v2994 = vld [vmem:[#allocation13 + $0x248] sm:$0xff]
    %v2995 = vld [vmem:[#allocation13 + $0x250] sm:$0xff]
    %v2996 = vld [vmem:[#allocation13 + $0x258] sm:$0xff]
    %v2997 = vld [vmem:[#allocation13 + $0x260] sm:$0xff]
    %v2998 = vld [vmem:[#allocation13 + $0x268] sm:$0xff]
    %v2999 = vld [vmem:[#allocation13 + $0x270] sm:$0xff]
    %v3000 = vld [vmem:[#allocation13 + $0x278] sm:$0xff]
    %v3001 = vld [vmem:[#allocation13 + $0x280] sm:$0xff]
    %v3002 = vld [vmem:[#allocation13 + $0x288] sm:$0xff]
    %v3003 = vld [vmem:[#allocation13 + $0x290] sm:$0xff]
    %v3004 = vld [vmem:[#allocation13 + $0x298] sm:$0xff]
    %v3005 = vld [vmem:[#allocation13 + $0x2a0] sm:$0xff]
    %v3006 = vld [vmem:[#allocation13 + $0x2a8] sm:$0xff]
    %v3007 = vld [vmem:[#allocation13 + $0x2b0] sm:$0xff]
    %v3008 = vld [vmem:[#allocation13 + $0x2b8] sm:$0xff]
    %v3009 = vld [vmem:[#allocation13 + $0x2c0] sm:$0xff]
    %v3010 = vld [vmem:[#allocation13 + $0x2c8] sm:$0xff]
    %v3011 = vld [vmem:[#allocation13 + $0x2d0] sm:$0xff]
    %v3012 = vld [vmem:[#allocation13 + $0x2d8] sm:$0xff]
    %v3013 = vld [vmem:[#allocation13 + $0x2e0] sm:$0xff]
    %v3014 = vld [vmem:[#allocation13 + $0x2e8] sm:$0xff]
    %v3015 = vld [vmem:[#allocation13 + $0x2f0] sm:$0xff]
    %v3016 = vld [vmem:[#allocation13 + $0x2f8] sm:$0xff]
    %v3017 = vld [vmem:[#allocation13 + $0x300] sm:$0xff]
    %v3018 = vld [vmem:[#allocation13 + $0x308] sm:$0xff]
    %v3019 = vld [vmem:[#allocation13 + $0x310] sm:$0xff]
    %v3020 = vld [vmem:[#allocation13 + $0x318] sm:$0xff]
    %v3021 = vld [vmem:[#allocation13 + $0x320] sm:$0xff]
    %v3022 = vld [vmem:[#allocation13 + $0x328] sm:$0xff]
    %v3023 = vld [vmem:[#allocation13 + $0x330] sm:$0xff]
    %v3024 = vld [vmem:[#allocation13 + $0x338] sm:$0xff]
    %v3025 = vld [vmem:[#allocation13 + $0x340] sm:$0xff]
    %v3026 = vld [vmem:[#allocation13 + $0x348] sm:$0xff]
    %v3027 = vld [vmem:[#allocation13 + $0x350] sm:$0xff]
    %v3028 = vld [vmem:[#allocation13 + $0x358] sm:$0xff]
    %v3029 = vld [vmem:[#allocation13 + $0x360] sm:$0xff]
    %v3030 = vld [vmem:[#allocation13 + $0x368] sm:$0xff]
    %v3031 = vld [vmem:[#allocation13 + $0x370] sm:$0xff]
    %v3032 = vld [vmem:[#allocation13 + $0x378] sm:$0xff]
    %v3033 = vld [vmem:[#allocation13 + $0x380] sm:$0xff]
    %v3034 = vld [vmem:[#allocation13 + $0x388] sm:$0xff]
    %v3035 = vld [vmem:[#allocation13 + $0x390] sm:$0xff]
    %v3036 = vld [vmem:[#allocation13 + $0x398] sm:$0xff]
    %v3037 = vld [vmem:[#allocation13 + $0x3a0] sm:$0xff]
    %v3038 = vld [vmem:[#allocation13 + $0x3a8] sm:$0xff]
    %v3039 = vld [vmem:[#allocation13 + $0x3b0] sm:$0xff]
    %v3040 = vld [vmem:[#allocation13 + $0x3b8] sm:$0xff]
    %v3041 = vld [vmem:[#allocation13 + $0x3c0] sm:$0xff]
    %v3042 = vld [vmem:[#allocation13 + $0x3c8] sm:$0xff]
    %v3043 = vld [vmem:[#allocation13 + $0x3d0] sm:$0xff]
    %v3044 = vld [vmem:[#allocation13 + $0x3d8] sm:$0xff]
    %v3045 = vld [vmem:[#allocation13 + $0x3e0] sm:$0xff]
    %v3046 = vld [vmem:[#allocation13 + $0x3e8] sm:$0xff]
    %v3047 = vld [vmem:[#allocation13 + $0x3f0] sm:$0xff]
    %v3048 = vld [vmem:[#allocation13 + $0x3f8] sm:$0xff]
    %v3049 = vld [vmem:[#allocation14] sm:$0xf]
    %v3051 = vperm.slane %v3049, 0
    %v3052 = vperm.slane %v3049, 1
    %v3053 = vperm.slane %v3049, 2
    %v3054 = vperm.slane %v3049, 3
    %v3187 = vunpack.c.l.b16 %v2921
    %v3188 = vunpack.c.h.b16 %v2921
    %v3189 = vunpack.c.l.b16 %v2922
    %v3190 = vunpack.c.h.b16 %v2922
    %v3191 = vunpack.c.l.b16 %v2923
    %v3192 = vunpack.c.h.b16 %v2923
    %v3193 = vunpack.c.l.b16 %v2924
    %v3194 = vunpack.c.h.b16 %v2924
    %v3195 = vunpack.c.l.b16 %v2925
    %v3196 = vunpack.c.h.b16 %v2925
    %v3197 = vunpack.c.l.b16 %v2926
    %v3198 = vunpack.c.h.b16 %v2926
    %v3199 = vunpack.c.l.b16 %v2927
    %v3200 = vunpack.c.h.b16 %v2927
    %v3201 = vunpack.c.l.b16 %v2928
    %v3202 = vunpack.c.h.b16 %v2928
    %v3203 = vunpack.c.l.b16 %v2929
    %v3204 = vunpack.c.h.b16 %v2929
    %v3205 = vunpack.c.l.b16 %v2930
    %v3206 = vunpack.c.h.b16 %v2930
    %v3207 = vunpack.c.l.b16 %v2931
    %v3208 = vunpack.c.h.b16 %v2931
    %v3209 = vunpack.c.l.b16 %v2932
    %v3210 = vunpack.c.h.b16 %v2932
    %v3211 = vunpack.c.l.b16 %v2933
    %v3212 = vunpack.c.h.b16 %v2933
    %v3213 = vunpack.c.l.b16 %v2934
    %v3214 = vunpack.c.h.b16 %v2934
    %v3215 = vunpack.c.l.b16 %v2935
    %v3216 = vunpack.c.h.b16 %v2935
    %v3217 = vunpack.c.l.b16 %v2936
    %v3218 = vunpack.c.h.b16 %v2936
    %v3219 = vunpack.c.l.b16 %v2937
    %v3220 = vunpack.c.h.b16 %v2937
    %v3221 = vunpack.c.l.b16 %v2938
    %v3222 = vunpack.c.h.b16 %v2938
    %v3223 = vunpack.c.l.b16 %v2939
    %v3224 = vunpack.c.h.b16 %v2939
    %v3225 = vunpack.c.l.b16 %v2940
    %v3226 = vunpack.c.h.b16 %v2940
    %v3227 = vunpack.c.l.b16 %v2941
    %v3228 = vunpack.c.h.b16 %v2941
    %v3229 = vunpack.c.l.b16 %v2942
    %v3230 = vunpack.c.h.b16 %v2942
    %v3231 = vunpack.c.l.b16 %v2943
    %v3232 = vunpack.c.h.b16 %v2943
    %v3233 = vunpack.c.l.b16 %v2944
    %v3234 = vunpack.c.h.b16 %v2944
    %v3235 = vunpack.c.l.b16 %v2945
    %v3236 = vunpack.c.h.b16 %v2945
    %v3237 = vunpack.c.l.b16 %v2946
    %v3238 = vunpack.c.h.b16 %v2946
    %v3239 = vunpack.c.l.b16 %v2947
    %v3240 = vunpack.c.h.b16 %v2947
    %v3241 = vunpack.c.l.b16 %v2948
    %v3242 = vunpack.c.h.b16 %v2948
    %v3243 = vunpack.c.l.b16 %v2949
    %v3244 = vunpack.c.h.b16 %v2949
    %v3245 = vunpack.c.l.b16 %v2950
    %v3246 = vunpack.c.h.b16 %v2950
    %v3247 = vunpack.c.l.b16 %v2951
    %v3248 = vunpack.c.h.b16 %v2951
    %v3249 = vunpack.c.l.b16 %v2952
    %v3250 = vunpack.c.h.b16 %v2952
    %v3251 = vunpack.c.l.b16 %v2953
    %v3252 = vunpack.c.h.b16 %v2953
    %v3253 = vunpack.c.l.b16 %v2954
    %v3254 = vunpack.c.h.b16 %v2954
    %v3255 = vunpack.c.l.b16 %v2955
    %v3256 = vunpack.c.h.b16 %v2955
    %v3257 = vunpack.c.l.b16 %v2956
    %v3258 = vunpack.c.h.b16 %v2956
    %v3259 = vunpack.c.l.b16 %v2957
    %v3260 = vunpack.c.h.b16 %v2957
    %v3261 = vunpack.c.l.b16 %v2958
    %v3262 = vunpack.c.h.b16 %v2958
    %v3263 = vunpack.c.l.b16 %v2959
    %v3264 = vunpack.c.h.b16 %v2959
    %v3265 = vunpack.c.l.b16 %v2960
    %v3266 = vunpack.c.h.b16 %v2960
    %v3267 = vunpack.c.l.b16 %v2961
    %v3268 = vunpack.c.h.b16 %v2961
    %v3269 = vunpack.c.l.b16 %v2962
    %v3270 = vunpack.c.h.b16 %v2962
    %v3271 = vunpack.c.l.b16 %v2963
    %v3272 = vunpack.c.h.b16 %v2963
    %v3273 = vunpack.c.l.b16 %v2964
    %v3274 = vunpack.c.h.b16 %v2964
    %v3275 = vunpack.c.l.b16 %v2965
    %v3276 = vunpack.c.h.b16 %v2965
    %v3277 = vunpack.c.l.b16 %v2966
    %v3278 = vunpack.c.h.b16 %v2966
    %v3279 = vunpack.c.l.b16 %v2967
    %v3280 = vunpack.c.h.b16 %v2967
    %v3281 = vunpack.c.l.b16 %v2968
    %v3282 = vunpack.c.h.b16 %v2968
    %v3283 = vunpack.c.l.b16 %v2969
    %v3284 = vunpack.c.h.b16 %v2969
    %v3285 = vunpack.c.l.b16 %v2970
    %v3286 = vunpack.c.h.b16 %v2970
    %v3287 = vunpack.c.l.b16 %v2971
    %v3288 = vunpack.c.h.b16 %v2971
    %v3289 = vunpack.c.l.b16 %v2972
    %v3290 = vunpack.c.h.b16 %v2972
    %v3291 = vunpack.c.l.b16 %v2973
    %v3292 = vunpack.c.h.b16 %v2973
    %v3293 = vunpack.c.l.b16 %v2974
    %v3294 = vunpack.c.h.b16 %v2974
    %v3295 = vunpack.c.l.b16 %v2975
    %v3296 = vunpack.c.h.b16 %v2975
    %v3297 = vunpack.c.l.b16 %v2976
    %v3298 = vunpack.c.h.b16 %v2976
    %v3299 = vunpack.c.l.b16 %v2977
    %v3300 = vunpack.c.h.b16 %v2977
    %v3301 = vunpack.c.l.b16 %v2978
    %v3302 = vunpack.c.h.b16 %v2978
    %v3303 = vunpack.c.l.b16 %v2979
    %v3304 = vunpack.c.h.b16 %v2979
    %v3305 = vunpack.c.l.b16 %v2980
    %v3306 = vunpack.c.h.b16 %v2980
    %v3307 = vunpack.c.l.b16 %v2981
    %v3308 = vunpack.c.h.b16 %v2981
    %v3309 = vunpack.c.l.b16 %v2982
    %v3310 = vunpack.c.h.b16 %v2982
    %v3311 = vunpack.c.l.b16 %v2983
    %v3312 = vunpack.c.h.b16 %v2983
    %v3313 = vunpack.c.l.b16 %v2984
    %v3314 = vunpack.c.h.b16 %v2984
    %v3315 = vunpack.c.l.b16 %v2985
    %v3316 = vunpack.c.h.b16 %v2985
    %v3317 = vunpack.c.l.b16 %v2986
    %v3318 = vunpack.c.h.b16 %v2986
    %v3319 = vunpack.c.l.b16 %v2987
    %v3320 = vunpack.c.h.b16 %v2987
    %v3321 = vunpack.c.l.b16 %v2988
    %v3322 = vunpack.c.h.b16 %v2988
    %v3323 = vunpack.c.l.b16 %v2989
    %v3324 = vunpack.c.h.b16 %v2989
    %v3325 = vunpack.c.l.b16 %v2990
    %v3326 = vunpack.c.h.b16 %v2990
    %v3327 = vunpack.c.l.b16 %v2991
    %v3328 = vunpack.c.h.b16 %v2991
    %v3329 = vunpack.c.l.b16 %v2992
    %v3330 = vunpack.c.h.b16 %v2992
    %v3331 = vunpack.c.l.b16 %v2993
    %v3332 = vunpack.c.h.b16 %v2993
    %v3333 = vunpack.c.l.b16 %v2994
    %v3334 = vunpack.c.h.b16 %v2994
    %v3335 = vunpack.c.l.b16 %v2995
    %v3336 = vunpack.c.h.b16 %v2995
    %v3337 = vunpack.c.l.b16 %v2996
    %v3338 = vunpack.c.h.b16 %v2996
    %v3339 = vunpack.c.l.b16 %v2997
    %v3340 = vunpack.c.h.b16 %v2997
    %v3341 = vunpack.c.l.b16 %v2998
    %v3342 = vunpack.c.h.b16 %v2998
    %v3343 = vunpack.c.l.b16 %v2999
    %v3344 = vunpack.c.h.b16 %v2999
    %v3345 = vunpack.c.l.b16 %v3000
    %v3346 = vunpack.c.h.b16 %v3000
    %v3347 = vunpack.c.l.b16 %v3001
    %v3348 = vunpack.c.h.b16 %v3001
    %v3349 = vunpack.c.l.b16 %v3002
    %v3350 = vunpack.c.h.b16 %v3002
    %v3351 = vunpack.c.l.b16 %v3003
    %v3352 = vunpack.c.h.b16 %v3003
    %v3353 = vunpack.c.l.b16 %v3004
    %v3354 = vunpack.c.h.b16 %v3004
    %v3355 = vunpack.c.l.b16 %v3005
    %v3356 = vunpack.c.h.b16 %v3005
    %v3357 = vunpack.c.l.b16 %v3006
    %v3358 = vunpack.c.h.b16 %v3006
    %v3359 = vunpack.c.l.b16 %v3007
    %v3360 = vunpack.c.h.b16 %v3007
    %v3361 = vunpack.c.l.b16 %v3008
    %v3362 = vunpack.c.h.b16 %v3008
    %v3363 = vunpack.c.l.b16 %v3009
    %v3364 = vunpack.c.h.b16 %v3009
    %v3365 = vunpack.c.l.b16 %v3010
    %v3366 = vunpack.c.h.b16 %v3010
    %v3367 = vunpack.c.l.b16 %v3011
    %v3368 = vunpack.c.h.b16 %v3011
    %v3369 = vunpack.c.l.b16 %v3012
    %v3370 = vunpack.c.h.b16 %v3012
    %v3371 = vunpack.c.l.b16 %v3013
    %v3372 = vunpack.c.h.b16 %v3013
    %v3373 = vunpack.c.l.b16 %v3014
    %v3374 = vunpack.c.h.b16 %v3014
    %v3375 = vunpack.c.l.b16 %v3015
    %v3376 = vunpack.c.h.b16 %v3015
    %v3377 = vunpack.c.l.b16 %v3016
    %v3378 = vunpack.c.h.b16 %v3016
    %v3379 = vunpack.c.l.b16 %v3017
    %v3380 = vunpack.c.h.b16 %v3017
    %v3381 = vunpack.c.l.b16 %v3018
    %v3382 = vunpack.c.h.b16 %v3018
    %v3383 = vunpack.c.l.b16 %v3019
    %v3384 = vunpack.c.h.b16 %v3019
    %v3385 = vunpack.c.l.b16 %v3020
    %v3386 = vunpack.c.h.b16 %v3020
    %v3387 = vunpack.c.l.b16 %v3021
    %v3388 = vunpack.c.h.b16 %v3021
    %v3389 = vunpack.c.l.b16 %v3022
    %v3390 = vunpack.c.h.b16 %v3022
    %v3391 = vunpack.c.l.b16 %v3023
    %v3392 = vunpack.c.h.b16 %v3023
    %v3393 = vunpack.c.l.b16 %v3024
    %v3394 = vunpack.c.h.b16 %v3024
    %v3395 = vunpack.c.l.b16 %v3025
    %v3396 = vunpack.c.h.b16 %v3025
    %v3397 = vunpack.c.l.b16 %v3026
    %v3398 = vunpack.c.h.b16 %v3026
    %v3399 = vunpack.c.l.b16 %v3027
    %v3400 = vunpack.c.h.b16 %v3027
    %v3401 = vunpack.c.l.b16 %v3028
    %v3402 = vunpack.c.h.b16 %v3028
    %v3403 = vunpack.c.l.b16 %v3029
    %v3404 = vunpack.c.h.b16 %v3029
    %v3405 = vunpack.c.l.b16 %v3030
    %v3406 = vunpack.c.h.b16 %v3030
    %v3407 = vunpack.c.l.b16 %v3031
    %v3408 = vunpack.c.h.b16 %v3031
    %v3409 = vunpack.c.l.b16 %v3032
    %v3410 = vunpack.c.h.b16 %v3032
    %v3411 = vunpack.c.l.b16 %v3033
    %v3412 = vunpack.c.h.b16 %v3033
    %v3413 = vunpack.c.l.b16 %v3034
    %v3414 = vunpack.c.h.b16 %v3034
    %v3415 = vunpack.c.l.b16 %v3035
    %v3416 = vunpack.c.h.b16 %v3035
    %v3417 = vunpack.c.l.b16 %v3036
    %v3418 = vunpack.c.h.b16 %v3036
    %v3419 = vunpack.c.l.b16 %v3037
    %v3420 = vunpack.c.h.b16 %v3037
    %v3421 = vunpack.c.l.b16 %v3038
    %v3422 = vunpack.c.h.b16 %v3038
    %v3423 = vunpack.c.l.b16 %v3039
    %v3424 = vunpack.c.h.b16 %v3039
    %v3425 = vunpack.c.l.b16 %v3040
    %v3426 = vunpack.c.h.b16 %v3040
    %v3427 = vunpack.c.l.b16 %v3041
    %v3428 = vunpack.c.h.b16 %v3041
    %v3429 = vunpack.c.l.b16 %v3042
    %v3430 = vunpack.c.h.b16 %v3042
    %v3431 = vunpack.c.l.b16 %v3043
    %v3432 = vunpack.c.h.b16 %v3043
    %v3433 = vunpack.c.l.b16 %v3044
    %v3434 = vunpack.c.h.b16 %v3044
    %v3435 = vunpack.c.l.b16 %v3045
    %v3436 = vunpack.c.h.b16 %v3045
    %v3437 = vunpack.c.l.b16 %v3046
    %v3438 = vunpack.c.h.b16 %v3046
    %v3439 = vunpack.c.l.b16 %v3047
    %v3440 = vunpack.c.h.b16 %v3047
    %v3441 = vunpack.c.l.b16 %v3048
    %v3442 = vunpack.c.h.b16 %v3048
    %v3443 = vpack.c.b16 %v3191, %v3187
    %v3444 = vpack.c.b16 %v3192, %v3188
    %v3445 = vpack.c.b16 %v3193, %v3189
    %v3446 = vpack.c.b16 %v3194, %v3190
    %v3447 = vpack.c.b16 %v3199, %v3195
    %v3448 = vpack.c.b16 %v3200, %v3196
    %v3449 = vpack.c.b16 %v3201, %v3197
    %v3450 = vpack.c.b16 %v3202, %v3198
    %v3451 = vpack.c.b16 %v3207, %v3203
    %v3452 = vpack.c.b16 %v3208, %v3204
    %v3453 = vpack.c.b16 %v3209, %v3205
    %v3454 = vpack.c.b16 %v3210, %v3206
    %v3455 = vpack.c.b16 %v3215, %v3211
    %v3456 = vpack.c.b16 %v3216, %v3212
    %v3457 = vpack.c.b16 %v3217, %v3213
    %v3458 = vpack.c.b16 %v3218, %v3214
    %v3459 = vpack.c.b16 %v3223, %v3219
    %v3460 = vpack.c.b16 %v3224, %v3220
    %v3461 = vpack.c.b16 %v3225, %v3221
    %v3462 = vpack.c.b16 %v3226, %v3222
    %v3463 = vpack.c.b16 %v3231, %v3227
    %v3464 = vpack.c.b16 %v3232, %v3228
    %v3465 = vpack.c.b16 %v3233, %v3229
    %v3466 = vpack.c.b16 %v3234, %v3230
    %v3467 = vpack.c.b16 %v3239, %v3235
    %v3468 = vpack.c.b16 %v3240, %v3236
    %v3469 = vpack.c.b16 %v3241, %v3237
    %v3470 = vpack.c.b16 %v3242, %v3238
    %v3471 = vpack.c.b16 %v3247, %v3243
    %v3472 = vpack.c.b16 %v3248, %v3244
    %v3473 = vpack.c.b16 %v3249, %v3245
    %v3474 = vpack.c.b16 %v3250, %v3246
    %v3475 = vpack.c.b16 %v3255, %v3251
    %v3476 = vpack.c.b16 %v3256, %v3252
    %v3477 = vpack.c.b16 %v3257, %v3253
    %v3478 = vpack.c.b16 %v3258, %v3254
    %v3479 = vpack.c.b16 %v3263, %v3259
    %v3480 = vpack.c.b16 %v3264, %v3260
    %v3481 = vpack.c.b16 %v3265, %v3261
    %v3482 = vpack.c.b16 %v3266, %v3262
    %v3483 = vpack.c.b16 %v3271, %v3267
    %v3484 = vpack.c.b16 %v3272, %v3268
    %v3485 = vpack.c.b16 %v3273, %v3269
    %v3486 = vpack.c.b16 %v3274, %v3270
    %v3487 = vpack.c.b16 %v3279, %v3275
    %v3488 = vpack.c.b16 %v3280, %v3276
    %v3489 = vpack.c.b16 %v3281, %v3277
    %v3490 = vpack.c.b16 %v3282, %v3278
    %v3491 = vpack.c.b16 %v3287, %v3283
    %v3492 = vpack.c.b16 %v3288, %v3284
    %v3493 = vpack.c.b16 %v3289, %v3285
    %v3494 = vpack.c.b16 %v3290, %v3286
    %v3495 = vpack.c.b16 %v3295, %v3291
    %v3496 = vpack.c.b16 %v3296, %v3292
    %v3497 = vpack.c.b16 %v3297, %v3293
    %v3498 = vpack.c.b16 %v3298, %v3294
    %v3499 = vpack.c.b16 %v3303, %v3299
    %v3500 = vpack.c.b16 %v3304, %v3300
    %v3501 = vpack.c.b16 %v3305, %v3301
    %v3502 = vpack.c.b16 %v3306, %v3302
    %v3503 = vpack.c.b16 %v3311, %v3307
    %v3504 = vpack.c.b16 %v3312, %v3308
    %v3505 = vpack.c.b16 %v3313, %v3309
    %v3506 = vpack.c.b16 %v3314, %v3310
    %v3507 = vpack.c.b16 %v3319, %v3315
    %v3508 = vpack.c.b16 %v3320, %v3316
    %v3509 = vpack.c.b16 %v3321, %v3317
    %v3510 = vpack.c.b16 %v3322, %v3318
    %v3511 = vpack.c.b16 %v3327, %v3323
    %v3512 = vpack.c.b16 %v3328, %v3324
    %v3513 = vpack.c.b16 %v3329, %v3325
    %v3514 = vpack.c.b16 %v3330, %v3326
    %v3515 = vpack.c.b16 %v3335, %v3331
    %v3516 = vpack.c.b16 %v3336, %v3332
    %v3517 = vpack.c.b16 %v3337, %v3333
    %v3518 = vpack.c.b16 %v3338, %v3334
    %v3519 = vpack.c.b16 %v3343, %v3339
    %v3520 = vpack.c.b16 %v3344, %v3340
    %v3521 = vpack.c.b16 %v3345, %v3341
    %v3522 = vpack.c.b16 %v3346, %v3342
    %v3523 = vpack.c.b16 %v3351, %v3347
    %v3524 = vpack.c.b16 %v3352, %v3348
    %v3525 = vpack.c.b16 %v3353, %v3349
    %v3526 = vpack.c.b16 %v3354, %v3350
    %v3527 = vpack.c.b16 %v3359, %v3355
    %v3528 = vpack.c.b16 %v3360, %v3356
    %v3529 = vpack.c.b16 %v3361, %v3357
    %v3530 = vpack.c.b16 %v3362, %v3358
    %v3531 = vpack.c.b16 %v3367, %v3363
    %v3532 = vpack.c.b16 %v3368, %v3364
    %v3533 = vpack.c.b16 %v3369, %v3365
    %v3534 = vpack.c.b16 %v3370, %v3366
    %v3535 = vpack.c.b16 %v3375, %v3371
    %v3536 = vpack.c.b16 %v3376, %v3372
    %v3537 = vpack.c.b16 %v3377, %v3373
    %v3538 = vpack.c.b16 %v3378, %v3374
    %v3539 = vpack.c.b16 %v3383, %v3379
    %v3540 = vpack.c.b16 %v3384, %v3380
    %v3541 = vpack.c.b16 %v3385, %v3381
    %v3542 = vpack.c.b16 %v3386, %v3382
    %v3543 = vpack.c.b16 %v3391, %v3387
    %v3544 = vpack.c.b16 %v3392, %v3388
    %v3545 = vpack.c.b16 %v3393, %v3389
    %v3546 = vpack.c.b16 %v3394, %v3390
    %v3547 = vpack.c.b16 %v3399, %v3395
    %v3548 = vpack.c.b16 %v3400, %v3396
    %v3549 = vpack.c.b16 %v3401, %v3397
    %v3550 = vpack.c.b16 %v3402, %v3398
    %v3551 = vpack.c.b16 %v3407, %v3403
    %v3552 = vpack.c.b16 %v3408, %v3404
    %v3553 = vpack.c.b16 %v3409, %v3405
    %v3554 = vpack.c.b16 %v3410, %v3406
    %v3555 = vpack.c.b16 %v3415, %v3411
    %v3556 = vpack.c.b16 %v3416, %v3412
    %v3557 = vpack.c.b16 %v3417, %v3413
    %v3558 = vpack.c.b16 %v3418, %v3414
    %v3559 = vpack.c.b16 %v3423, %v3419
    %v3560 = vpack.c.b16 %v3424, %v3420
    %v3561 = vpack.c.b16 %v3425, %v3421
    %v3562 = vpack.c.b16 %v3426, %v3422
    %v3563 = vpack.c.b16 %v3431, %v3427
    %v3564 = vpack.c.b16 %v3432, %v3428
    %v3565 = vpack.c.b16 %v3433, %v3429
    %v3566 = vpack.c.b16 %v3434, %v3430
    %v3567 = vpack.c.b16 %v3439, %v3435
    %v3568 = vpack.c.b16 %v3440, %v3436
    %v3569 = vpack.c.b16 %v3441, %v3437
    %v3570 = vpack.c.b16 %v3442, %v3438
    %3699 = vmatpush.bf16.msra.mxu0 %v3471
    %3700 = vmatpush.bf16.msra.mxu0 %v3467
    %3701 = vmatpush.bf16.msra.mxu0 %v3463
    %3702 = vmatpush.bf16.msra.mxu0 %v3459
    %3703 = vmatpush.bf16.msra.mxu0 %v3455
    %3704 = vmatpush.bf16.msra.mxu0 %v3451
    %3705 = vmatpush.bf16.msra.mxu0 %v3447
    %3706 = vmatpush.bf16.msra.mxu0 %v3443
    %3707 = vmatmul.bf16.gmra.mxu0 %v2917
    %v3708 = vpop.f32.mrf.mxu0
    %v3709 = vadd.f32 %v3051, %v3708
    %v3710 = vpop.f32.mrf.mxu0
    %v3711 = vadd.f32 %v3051, %v3710
    %3712 = vdwg.mxu0
    %3713 = vmatpush.bf16.msra.mxu0 %v3503
    %3714 = vmatpush.bf16.msra.mxu0 %v3499
    %3715 = vmatpush.bf16.msra.mxu0 %v3495
    %3716 = vmatpush.bf16.msra.mxu0 %v3491
    %3717 = vmatpush.bf16.msra.mxu0 %v3487
    %3718 = vmatpush.bf16.msra.mxu0 %v3483
    %3719 = vmatpush.bf16.msra.mxu0 %v3479
    %3720 = vmatpush.bf16.msra.mxu0 %v3475
    %3721 = vmatmul.bf16.gmra.mxu0 %v2918
    %v3722 = vpop.f32.mrf.mxu0
    %v3723 = vadd.f32 %v3709, %v3722
    %v3724 = vpop.f32.mrf.mxu0
    %v3725 = vadd.f32 %v3711, %v3724
    %3726 = vdwg.mxu0
    %3727 = vmatpush.bf16.msra.mxu0 %v3535
    %3728 = vmatpush.bf16.msra.mxu0 %v3531
    %3729 = vmatpush.bf16.msra.mxu0 %v3527
    %3730 = vmatpush.bf16.msra.mxu0 %v3523
    %3731 = vmatpush.bf16.msra.mxu0 %v3519
    %3732 = vmatpush.bf16.msra.mxu0 %v3515
    %3733 = vmatpush.bf16.msra.mxu0 %v3511
    %3734 = vmatpush.bf16.msra.mxu0 %v3507
    %3735 = vmatmul.bf16.gmra.mxu0 %v2919
    %v3736 = vpop.f32.mrf.mxu0
    %v3737 = vadd.f32 %v3723, %v3736
    %v3738 = vpop.f32.mrf.mxu0
    %v3739 = vadd.f32 %v3725, %v3738
    %3740 = vdwg.mxu0
    %3741 = vmatpush.bf16.msra.mxu0 %v3567
    %3742 = vmatpush.bf16.msra.mxu0 %v3563
    %3743 = vmatpush.bf16.msra.mxu0 %v3559
    %3744 = vmatpush.bf16.msra.mxu0 %v3555
    %3745 = vmatpush.bf16.msra.mxu0 %v3551
    %3746 = vmatpush.bf16.msra.mxu0 %v3547
    %3747 = vmatpush.bf16.msra.mxu0 %v3543
    %3748 = vmatpush.bf16.msra.mxu0 %v3539
    %3749 = vmatmul.bf16.gmra.mxu0 %v2920
    %v3750 = vpop.f32.mrf.mxu0
    %v3751 = vadd.f32 %v3737, %v3750
    %v3752 = vpop.f32.mrf.mxu0
    %v3753 = vadd.f32 %v3739, %v3752
    %3754 = vdwg.mxu0
    %3755 = vmatpush.bf16.msra.mxu0 %v3472
    %3756 = vmatpush.bf16.msra.mxu0 %v3468
    %3757 = vmatpush.bf16.msra.mxu0 %v3464
    %3758 = vmatpush.bf16.msra.mxu0 %v3460
    %3759 = vmatpush.bf16.msra.mxu0 %v3456
    %3760 = vmatpush.bf16.msra.mxu0 %v3452
    %3761 = vmatpush.bf16.msra.mxu0 %v3448
    %3762 = vmatpush.bf16.msra.mxu0 %v3444
    %3763 = vmatmul.bf16.gmra.mxu0 %v2917
    %v3764 = vpop.f32.mrf.mxu0
    %v3765 = vadd.f32 %v3052, %v3764
    %v3766 = vpop.f32.mrf.mxu0
    %v3767 = vadd.f32 %v3052, %v3766
    %3768 = vdwg.mxu0
    %3769 = vmatpush.bf16.msra.mxu0 %v3504
    %3770 = vmatpush.bf16.msra.mxu0 %v3500
    %3771 = vmatpush.bf16.msra.mxu0 %v3496
    %3772 = vmatpush.bf16.msra.mxu0 %v3492
    %3773 = vmatpush.bf16.msra.mxu0 %v3488
    %3774 = vmatpush.bf16.msra.mxu0 %v3484
    %3775 = vmatpush.bf16.msra.mxu0 %v3480
    %3776 = vmatpush.bf16.msra.mxu0 %v3476
    %3777 = vmatmul.bf16.gmra.mxu0 %v2918
    %v3778 = vpop.f32.mrf.mxu0
    %v3779 = vadd.f32 %v3765, %v3778
    %v3780 = vpop.f32.mrf.mxu0
    %v3781 = vadd.f32 %v3767, %v3780
    %3782 = vdwg.mxu0
    %3783 = vmatpush.bf16.msra.mxu0 %v3536
    %3784 = vmatpush.bf16.msra.mxu0 %v3532
    %3785 = vmatpush.bf16.msra.mxu0 %v3528
    %3786 = vmatpush.bf16.msra.mxu0 %v3524
    %3787 = vmatpush.bf16.msra.mxu0 %v3520
    %3788 = vmatpush.bf16.msra.mxu0 %v3516
    %3789 = vmatpush.bf16.msra.mxu0 %v3512
    %3790 = vmatpush.bf16.msra.mxu0 %v3508
    %3791 = vmatmul.bf16.gmra.mxu0 %v2919
    %v3792 = vpop.f32.mrf.mxu0
    %v3793 = vadd.f32 %v3779, %v3792
    %v3794 = vpop.f32.mrf.mxu0
    %v3795 = vadd.f32 %v3781, %v3794
    %3796 = vdwg.mxu0
    %3797 = vmatpush.bf16.msra.mxu0 %v3568
    %3798 = vmatpush.bf16.msra.mxu0 %v3564
    %3799 = vmatpush.bf16.msra.mxu0 %v3560
    %3800 = vmatpush.bf16.msra.mxu0 %v3556
    %3801 = vmatpush.bf16.msra.mxu0 %v3552
    %3802 = vmatpush.bf16.msra.mxu0 %v3548
    %3803 = vmatpush.bf16.msra.mxu0 %v3544
    %3804 = vmatpush.bf16.msra.mxu0 %v3540
    %3805 = vmatmul.bf16.gmra.mxu0 %v2920
    %v3806 = vpop.f32.mrf.mxu0
    %v3807 = vadd.f32 %v3793, %v3806
    %v3808 = vpop.f32.mrf.mxu0
    %v3809 = vadd.f32 %v3795, %v3808
    %3810 = vdwg.mxu0
    %3811 = vmatpush.bf16.msra.mxu0 %v3473
    %3812 = vmatpush.bf16.msra.mxu0 %v3469
    %3813 = vmatpush.bf16.msra.mxu0 %v3465
    %3814 = vmatpush.bf16.msra.mxu0 %v3461
    %3815 = vmatpush.bf16.msra.mxu0 %v3457
    %3816 = vmatpush.bf16.msra.mxu0 %v3453
    %3817 = vmatpush.bf16.msra.mxu0 %v3449
    %3818 = vmatpush.bf16.msra.mxu0 %v3445
    %3819 = vmatmul.bf16.gmra.mxu0 %v2917
    %v3820 = vpop.f32.mrf.mxu0
    %v3821 = vadd.f32 %v3053, %v3820
    %v3822 = vpop.f32.mrf.mxu0
    %v3823 = vadd.f32 %v3053, %v3822
    %3824 = vdwg.mxu0
    %3825 = vmatpush.bf16.msra.mxu0 %v3505
    %3826 = vmatpush.bf16.msra.mxu0 %v3501
    %3827 = vmatpush.bf16.msra.mxu0 %v3497
    %3828 = vmatpush.bf16.msra.mxu0 %v3493
    %3829 = vmatpush.bf16.msra.mxu0 %v3489
    %3830 = vmatpush.bf16.msra.mxu0 %v3485
    %3831 = vmatpush.bf16.msra.mxu0 %v3481
    %3832 = vmatpush.bf16.msra.mxu0 %v3477
    %3833 = vmatmul.bf16.gmra.mxu0 %v2918
    %v3834 = vpop.f32.mrf.mxu0
    %v3835 = vadd.f32 %v3821, %v3834
    %v3836 = vpop.f32.mrf.mxu0
    %v3837 = vadd.f32 %v3823, %v3836
    %3838 = vdwg.mxu0
    %3839 = vmatpush.bf16.msra.mxu0 %v3537
    %3840 = vmatpush.bf16.msra.mxu0 %v3533
    %3841 = vmatpush.bf16.msra.mxu0 %v3529
    %3842 = vmatpush.bf16.msra.mxu0 %v3525
    %3843 = vmatpush.bf16.msra.mxu0 %v3521
    %3844 = vmatpush.bf16.msra.mxu0 %v3517
    %3845 = vmatpush.bf16.msra.mxu0 %v3513
    %3846 = vmatpush.bf16.msra.mxu0 %v3509
    %3847 = vmatmul.bf16.gmra.mxu0 %v2919
    %v3848 = vpop.f32.mrf.mxu0
    %v3849 = vadd.f32 %v3835, %v3848
    %v3850 = vpop.f32.mrf.mxu0
    %v3851 = vadd.f32 %v3837, %v3850
    %3852 = vdwg.mxu0
    %3853 = vmatpush.bf16.msra.mxu0 %v3569
    %3854 = vmatpush.bf16.msra.mxu0 %v3565
    %3855 = vmatpush.bf16.msra.mxu0 %v3561
    %3856 = vmatpush.bf16.msra.mxu0 %v3557
    %3857 = vmatpush.bf16.msra.mxu0 %v3553
    %3858 = vmatpush.bf16.msra.mxu0 %v3549
    %3859 = vmatpush.bf16.msra.mxu0 %v3545
    %3860 = vmatpush.bf16.msra.mxu0 %v3541
    %3861 = vmatmul.bf16.gmra.mxu0 %v2920
    %v3862 = vpop.f32.mrf.mxu0
    %v3863 = vadd.f32 %v3849, %v3862
    %v3864 = vpop.f32.mrf.mxu0
    %v3865 = vadd.f32 %v3851, %v3864
    %3866 = vdwg.mxu0
    %3867 = vmatpush.bf16.msra.mxu0 %v3474
    %3868 = vmatpush.bf16.msra.mxu0 %v3470
    %3869 = vmatpush.bf16.msra.mxu0 %v3466
    %3870 = vmatpush.bf16.msra.mxu0 %v3462
    %3871 = vmatpush.bf16.msra.mxu0 %v3458
    %3872 = vmatpush.bf16.msra.mxu0 %v3454
    %3873 = vmatpush.bf16.msra.mxu0 %v3450
    %3874 = vmatpush.bf16.msra.mxu0 %v3446
    %3875 = vmatmul.bf16.gmra.mxu0 %v2917
    %v3876 = vpop.f32.mrf.mxu0
    %v3877 = vadd.f32 %v3054, %v3876
    %v3878 = vpop.f32.mrf.mxu0
    %v3879 = vadd.f32 %v3054, %v3878
    %3880 = vdwg.mxu0
    %3881 = vmatpush.bf16.msra.mxu0 %v3506
    %3882 = vmatpush.bf16.msra.mxu0 %v3502
    %3883 = vmatpush.bf16.msra.mxu0 %v3498
    %3884 = vmatpush.bf16.msra.mxu0 %v3494
    %3885 = vmatpush.bf16.msra.mxu0 %v3490
    %3886 = vmatpush.bf16.msra.mxu0 %v3486
    %3887 = vmatpush.bf16.msra.mxu0 %v3482
    %3888 = vmatpush.bf16.msra.mxu0 %v3478
    %3889 = vmatmul.bf16.gmra.mxu0 %v2918
    %v3890 = vpop.f32.mrf.mxu0
    %v3891 = vadd.f32 %v3877, %v3890
    %v3892 = vpop.f32.mrf.mxu0
    %v3893 = vadd.f32 %v3879, %v3892
    %3894 = vdwg.mxu0
    %3895 = vmatpush.bf16.msra.mxu0 %v3538
    %3896 = vmatpush.bf16.msra.mxu0 %v3534
    %3897 = vmatpush.bf16.msra.mxu0 %v3530
    %3898 = vmatpush.bf16.msra.mxu0 %v3526
    %3899 = vmatpush.bf16.msra.mxu0 %v3522
    %3900 = vmatpush.bf16.msra.mxu0 %v3518
    %3901 = vmatpush.bf16.msra.mxu0 %v3514
    %3902 = vmatpush.bf16.msra.mxu0 %v3510
    %3903 = vmatmul.bf16.gmra.mxu0 %v2919
    %v3904 = vpop.f32.mrf.mxu0
    %v3905 = vadd.f32 %v3891, %v3904
    %v3906 = vpop.f32.mrf.mxu0
    %v3907 = vadd.f32 %v3893, %v3906
    %3908 = vdwg.mxu0
    %3909 = vmatpush.bf16.msra.mxu0 %v3570
    %3910 = vmatpush.bf16.msra.mxu0 %v3566
    %3911 = vmatpush.bf16.msra.mxu0 %v3562
    %3912 = vmatpush.bf16.msra.mxu0 %v3558
    %3913 = vmatpush.bf16.msra.mxu0 %v3554
    %3914 = vmatpush.bf16.msra.mxu0 %v3550
    %3915 = vmatpush.bf16.msra.mxu0 %v3546
    %3916 = vmatpush.bf16.msra.mxu0 %v3542
    %3917 = vmatmul.bf16.gmra.mxu0 %v2920
    %v3918 = vpop.f32.mrf.mxu0
    %v3919 = vadd.f32 %v3905, %v3918
    %v3920 = vpop.f32.mrf.mxu0
    %v3921 = vadd.f32 %v3907, %v3920
    %3922 = vdwg.mxu0
    %v3923 = vmax.f32 %v3751, 0.0
    %v3924 = vmax.f32 %v3807, 0.0
    %v3925 = vmax.f32 %v3863, 0.0
    %v3926 = vmax.f32 %v3919, 0.0
    %v3927 = vmax.f32 %v3753, 0.0
    %v3928 = vmax.f32 %v3809, 0.0
    %v3929 = vmax.f32 %v3865, 0.0
    %v3930 = vmax.f32 %v3921, 0.0
    %v3931 = vpack.c.bf16 %v3927, %v3923
    %v3932 = vpack.c.bf16 %v3928, %v3924
    %v3933 = vpack.c.bf16 %v3929, %v3925
    %v3934 = vpack.c.bf16 %v3930, %v3926
    %v3935 = vld [vmem:[#allocation16] sm:$0xf]
    %v3936 = vld [vmem:[#allocation16 + $0x4] sm:$0xf]
    %v3937 = vld [vmem:[#allocation16 + $0x8] sm:$0xf]
    %v3938 = vld [vmem:[#allocation16 + $0xc] sm:$0xf]
    %v3939 = vld [vmem:[#allocation16 + $0x10] sm:$0xf]
    %v3940 = vld [vmem:[#allocation16 + $0x14] sm:$0xf]
    %v3941 = vld [vmem:[#allocation16 + $0x18] sm:$0xf]
    %v3942 = vld [vmem:[#allocation16 + $0x1c] sm:$0xf]
    %v3943 = vld [vmem:[#allocation16 + $0x20] sm:$0xf]
    %v3944 = vld [vmem:[#allocation16 + $0x24] sm:$0xf]
    %v3945 = vld [vmem:[#allocation16 + $0x28] sm:$0xf]
    %v3946 = vld [vmem:[#allocation16 + $0x2c] sm:$0xf]
    %v3947 = vld [vmem:[#allocation16 + $0x30] sm:$0xf]
    %v3948 = vld [vmem:[#allocation16 + $0x34] sm:$0xf]
    %v3949 = vld [vmem:[#allocation16 + $0x38] sm:$0xf]
    %v3950 = vld [vmem:[#allocation16 + $0x3c] sm:$0xf]
    %v3951 = vld [vmem:[#allocation16 + $0x40] sm:$0xf]
    %v3952 = vld [vmem:[#allocation16 + $0x44] sm:$0xf]
    %v3953 = vld [vmem:[#allocation16 + $0x48] sm:$0xf]
    %v3954 = vld [vmem:[#allocation16 + $0x4c] sm:$0xf]
    %v3955 = vld [vmem:[#allocation16 + $0x50] sm:$0xf]
    %v3956 = vld [vmem:[#allocation16 + $0x54] sm:$0xf]
    %v3957 = vld [vmem:[#allocation16 + $0x58] sm:$0xf]
    %v3958 = vld [vmem:[#allocation16 + $0x5c] sm:$0xf]
    %v3959 = vld [vmem:[#allocation16 + $0x60] sm:$0xf]
    %v3960 = vld [vmem:[#allocation16 + $0x64] sm:$0xf]
    %v3961 = vld [vmem:[#allocation16 + $0x68] sm:$0xf]
    %v3962 = vld [vmem:[#allocation16 + $0x6c] sm:$0xf]
    %v3963 = vld [vmem:[#allocation16 + $0x70] sm:$0xf]
    %v3964 = vld [vmem:[#allocation16 + $0x74] sm:$0xf]
    %v3965 = vld [vmem:[#allocation16 + $0x78] sm:$0xf]
    %v3966 = vld [vmem:[#allocation16 + $0x7c] sm:$0xf]
    %v3967 = vld [vmem:[#allocation16 + $0x80] sm:$0xf]
    %v3968 = vld [vmem:[#allocation16 + $0x84] sm:$0xf]
    %v3969 = vld [vmem:[#allocation16 + $0x88] sm:$0xf]
    %v3970 = vld [vmem:[#allocation16 + $0x8c] sm:$0xf]
    %v3971 = vld [vmem:[#allocation16 + $0x90] sm:$0xf]
    %v3972 = vld [vmem:[#allocation16 + $0x94] sm:$0xf]
    %v3973 = vld [vmem:[#allocation16 + $0x98] sm:$0xf]
    %v3974 = vld [vmem:[#allocation16 + $0x9c] sm:$0xf]
    %v3975 = vld [vmem:[#allocation16 + $0xa0] sm:$0xf]
    %v3976 = vld [vmem:[#allocation16 + $0xa4] sm:$0xf]
    %v3977 = vld [vmem:[#allocation16 + $0xa8] sm:$0xf]
    %v3978 = vld [vmem:[#allocation16 + $0xac] sm:$0xf]
    %v3979 = vld [vmem:[#allocation16 + $0xb0] sm:$0xf]
    %v3980 = vld [vmem:[#allocation16 + $0xb4] sm:$0xf]
    %v3981 = vld [vmem:[#allocation16 + $0xb8] sm:$0xf]
    %v3982 = vld [vmem:[#allocation16 + $0xbc] sm:$0xf]
    %v3983 = vld [vmem:[#allocation16 + $0xc0] sm:$0xf]
    %v3984 = vld [vmem:[#allocation16 + $0xc4] sm:$0xf]
    %v3985 = vld [vmem:[#allocation16 + $0xc8] sm:$0xf]
    %v3986 = vld [vmem:[#allocation16 + $0xcc] sm:$0xf]
    %v3987 = vld [vmem:[#allocation16 + $0xd0] sm:$0xf]
    %v3988 = vld [vmem:[#allocation16 + $0xd4] sm:$0xf]
    %v3989 = vld [vmem:[#allocation16 + $0xd8] sm:$0xf]
    %v3990 = vld [vmem:[#allocation16 + $0xdc] sm:$0xf]
    %v3991 = vld [vmem:[#allocation16 + $0xe0] sm:$0xf]
    %v3992 = vld [vmem:[#allocation16 + $0xe4] sm:$0xf]
    %v3993 = vld [vmem:[#allocation16 + $0xe8] sm:$0xf]
    %v3994 = vld [vmem:[#allocation16 + $0xec] sm:$0xf]
    %v3995 = vld [vmem:[#allocation16 + $0xf0] sm:$0xf]
    %v3996 = vld [vmem:[#allocation16 + $0xf4] sm:$0xf]
    %v3997 = vld [vmem:[#allocation16 + $0xf8] sm:$0xf]
    %v3998 = vld [vmem:[#allocation16 + $0xfc] sm:$0xf]
    %v3999 = vld [vmem:[%s10] sm:$0x1]
    %v4001 = vperm.slane %v3999, 0
    %v4067 = vunpack.c.l.b16 %v3935
    %v4068 = vunpack.c.l.b16 %v3936
    %v4069 = vunpack.c.l.b16 %v3937
    %v4070 = vunpack.c.l.b16 %v3938
    %v4071 = vunpack.c.l.b16 %v3939
    %v4072 = vunpack.c.l.b16 %v3940
    %v4073 = vunpack.c.l.b16 %v3941
    %v4074 = vunpack.c.l.b16 %v3942
    %v4075 = vunpack.c.l.b16 %v3943
    %v4076 = vunpack.c.l.b16 %v3944
    %v4077 = vunpack.c.l.b16 %v3945
    %v4078 = vunpack.c.l.b16 %v3946
    %v4079 = vunpack.c.l.b16 %v3947
    %v4080 = vunpack.c.l.b16 %v3948
    %v4081 = vunpack.c.l.b16 %v3949
    %v4082 = vunpack.c.l.b16 %v3950
    %v4083 = vunpack.c.l.b16 %v3951
    %v4084 = vunpack.c.l.b16 %v3952
    %v4085 = vunpack.c.l.b16 %v3953
    %v4086 = vunpack.c.l.b16 %v3954
    %v4087 = vunpack.c.l.b16 %v3955
    %v4088 = vunpack.c.l.b16 %v3956
    %v4089 = vunpack.c.l.b16 %v3957
    %v4090 = vunpack.c.l.b16 %v3958
    %v4091 = vunpack.c.l.b16 %v3959
    %v4092 = vunpack.c.l.b16 %v3960
    %v4093 = vunpack.c.l.b16 %v3961
    %v4094 = vunpack.c.l.b16 %v3962
    %v4095 = vunpack.c.l.b16 %v3963
    %v4096 = vunpack.c.l.b16 %v3964
    %v4097 = vunpack.c.l.b16 %v3965
    %v4098 = vunpack.c.l.b16 %v3966
    %v4099 = vunpack.c.l.b16 %v3967
    %v4100 = vunpack.c.l.b16 %v3968
    %v4101 = vunpack.c.l.b16 %v3969
    %v4102 = vunpack.c.l.b16 %v3970
    %v4103 = vunpack.c.l.b16 %v3971
    %v4104 = vunpack.c.l.b16 %v3972
    %v4105 = vunpack.c.l.b16 %v3973
    %v4106 = vunpack.c.l.b16 %v3974
    %v4107 = vunpack.c.l.b16 %v3975
    %v4108 = vunpack.c.l.b16 %v3976
    %v4109 = vunpack.c.l.b16 %v3977
    %v4110 = vunpack.c.l.b16 %v3978
    %v4111 = vunpack.c.l.b16 %v3979
    %v4112 = vunpack.c.l.b16 %v3980
    %v4113 = vunpack.c.l.b16 %v3981
    %v4114 = vunpack.c.l.b16 %v3982
    %v4115 = vunpack.c.l.b16 %v3983
    %v4116 = vunpack.c.l.b16 %v3984
    %v4117 = vunpack.c.l.b16 %v3985
    %v4118 = vunpack.c.l.b16 %v3986
    %v4119 = vunpack.c.l.b16 %v3987
    %v4120 = vunpack.c.l.b16 %v3988
    %v4121 = vunpack.c.l.b16 %v3989
    %v4122 = vunpack.c.l.b16 %v3990
    %v4123 = vunpack.c.l.b16 %v3991
    %v4124 = vunpack.c.l.b16 %v3992
    %v4125 = vunpack.c.l.b16 %v3993
    %v4126 = vunpack.c.l.b16 %v3994
    %v4127 = vunpack.c.l.b16 %v3995
    %v4128 = vunpack.c.l.b16 %v3996
    %v4129 = vunpack.c.l.b16 %v3997
    %v4130 = vunpack.c.l.b16 %v3998
    %v4131 = vpack.c.b16 %v4068, %v4067
    %v4132 = vpack.c.b16 %v4070, %v4069
    %v4133 = vpack.c.b16 %v4072, %v4071
    %v4134 = vpack.c.b16 %v4074, %v4073
    %v4135 = vpack.c.b16 %v4076, %v4075
    %v4136 = vpack.c.b16 %v4078, %v4077
    %v4137 = vpack.c.b16 %v4080, %v4079
    %v4138 = vpack.c.b16 %v4082, %v4081
    %v4139 = vpack.c.b16 %v4084, %v4083
    %v4140 = vpack.c.b16 %v4086, %v4085
    %v4141 = vpack.c.b16 %v4088, %v4087
    %v4142 = vpack.c.b16 %v4090, %v4089
    %v4143 = vpack.c.b16 %v4092, %v4091
    %v4144 = vpack.c.b16 %v4094, %v4093
    %v4145 = vpack.c.b16 %v4096, %v4095
    %v4146 = vpack.c.b16 %v4098, %v4097
    %v4147 = vpack.c.b16 %v4100, %v4099
    %v4148 = vpack.c.b16 %v4102, %v4101
    %v4149 = vpack.c.b16 %v4104, %v4103
    %v4150 = vpack.c.b16 %v4106, %v4105
    %v4151 = vpack.c.b16 %v4108, %v4107
    %v4152 = vpack.c.b16 %v4110, %v4109
    %v4153 = vpack.c.b16 %v4112, %v4111
    %v4154 = vpack.c.b16 %v4114, %v4113
    %v4155 = vpack.c.b16 %v4116, %v4115
    %v4156 = vpack.c.b16 %v4118, %v4117
    %v4157 = vpack.c.b16 %v4120, %v4119
    %v4158 = vpack.c.b16 %v4122, %v4121
    %v4159 = vpack.c.b16 %v4124, %v4123
    %v4160 = vpack.c.b16 %v4126, %v4125
    %v4161 = vpack.c.b16 %v4128, %v4127
    %v4162 = vpack.c.b16 %v4130, %v4129
    %4195 = vmatpush.bf16.msra.mxu0 %v4138
    %4196 = vmatpush.bf16.msra.mxu0 %v4137
    %4197 = vmatpush.bf16.msra.mxu0 %v4136
    %4198 = vmatpush.bf16.msra.mxu0 %v4135
    %4199 = vmatpush.bf16.msra.mxu0 %v4134
    %4200 = vmatpush.bf16.msra.mxu0 %v4133
    %4201 = vmatpush.bf16.msra.mxu0 %v4132
    %4202 = vmatpush.bf16.msra.mxu0 %v4131
    %4203 = vmatmul.bf16.gmra.mxu0 %v3931
    %v4204 = vpop.f32.mrf.mxu0
    %v4205 = vadd.f32 %v4001, %v4204
    %v4206 = vpop.f32.mrf.mxu0
    %v4207 = vadd.f32 %v4001, %v4206
    %4208 = vdwg.mxu0
    %4209 = vmatpush.bf16.msra.mxu0 %v4146
    %4210 = vmatpush.bf16.msra.mxu0 %v4145
    %4211 = vmatpush.bf16.msra.mxu0 %v4144
    %4212 = vmatpush.bf16.msra.mxu0 %v4143
    %4213 = vmatpush.bf16.msra.mxu0 %v4142
    %4214 = vmatpush.bf16.msra.mxu0 %v4141
    %4215 = vmatpush.bf16.msra.mxu0 %v4140
    %4216 = vmatpush.bf16.msra.mxu0 %v4139
    %4217 = vmatmul.bf16.gmra.mxu0 %v3932
    %v4218 = vpop.f32.mrf.mxu0
    %v4219 = vadd.f32 %v4205, %v4218
    %v4220 = vpop.f32.mrf.mxu0
    %v4221 = vadd.f32 %v4207, %v4220
    %4222 = vdwg.mxu0
    %4223 = vmatpush.bf16.msra.mxu0 %v4154
    %4224 = vmatpush.bf16.msra.mxu0 %v4153
    %4225 = vmatpush.bf16.msra.mxu0 %v4152
    %4226 = vmatpush.bf16.msra.mxu0 %v4151
    %4227 = vmatpush.bf16.msra.mxu0 %v4150
    %4228 = vmatpush.bf16.msra.mxu0 %v4149
    %4229 = vmatpush.bf16.msra.mxu0 %v4148
    %4230 = vmatpush.bf16.msra.mxu0 %v4147
    %4231 = vmatmul.bf16.gmra.mxu0 %v3933
    %v4232 = vpop.f32.mrf.mxu0
    %v4233 = vadd.f32 %v4219, %v4232
    %v4234 = vpop.f32.mrf.mxu0
    %v4235 = vadd.f32 %v4221, %v4234
    %4236 = vdwg.mxu0
    %4237 = vmatpush.bf16.msra.mxu0 %v4162
    %4238 = vmatpush.bf16.msra.mxu0 %v4161
    %4239 = vmatpush.bf16.msra.mxu0 %v4160
    %4240 = vmatpush.bf16.msra.mxu0 %v4159
    %4241 = vmatpush.bf16.msra.mxu0 %v4158
    %4242 = vmatpush.bf16.msra.mxu0 %v4157
    %4243 = vmatpush.bf16.msra.mxu0 %v4156
    %4244 = vmatpush.bf16.msra.mxu0 %v4155
    %4245 = vmatmul.bf16.gmra.mxu0 %v3934
    %v4246 = vpop.f32.mrf.mxu0
    %v4247 = vadd.f32 %v4233, %v4246
    %v4248 = vpop.f32.mrf.mxu0
    %v4249 = vadd.f32 %v4235, %v4248
    %4250 = vdwg.mxu0
    %v4251 = vpack.c.bf16 %v4247, %v4247
    %v4252 = vpack.c.bf16 %v4249, %v4249
    %4253 = vst [vmem:[#allocation17] sm:$0xf] %v4251
    %4254 = vst [vmem:[#allocation17 + $0x4] sm:$0xf] %v4252
    // Predicated region
    $region82: #{neural_network_forward.1} parent=1 // pred_check
      _
    $region83: #{neural_network_forward.1} parent=1 // pred_check_branch
      %4256 = sbr.rel (0) target = $region85
    $region84: #{neural_network_forward.1} parent=1 // pred_region
      %4258 = vsyncadd [#allocation4], 0
      %s4259 = sshll.u32 [#allocation17], 4
      %s4260 = int_to_ptr.vmem [resolvable:$true] %s4259
      %s4261 = sshll.u32 %s11, 4
      %s4262 = int_to_ptr.hbm [resolvable:$true] %s4261
      %4267 = dma.vmem_to_hbm [thread:$0]  %s4260, 128, %s4262, [#allocation4], 64, 64, 4
    $region85: #{neural_network_forward.1} parent=1 // pred_fallthru
      _
    // Predicated region
    $region86: #{neural_network_forward.1} parent=1 // pred_check
      _
    $region87: #{neural_network_forward.1} parent=1 // pred_check_branch
      %4269 = sbr.rel (0) target = $region89
    $region88: #{neural_network_forward.1} parent=1 // pred_region
      %4271 = dma.done [#allocation4], 128
    $region89: #{neural_network_forward.1} parent=1 // pred_fallthru
      _
    %4272 = vsyncpa [#allocation3], 1
    %4273 = vsyncpa [#allocation6], 1
    %4274 = vsyncpa [#allocation9], 1
    %4275 = vsyncpa [#allocation12], 1
    %4276 = vsyncpa [#allocation15], 1
    %4277 = vsyncpa [#allocation4], 1

</llo_original>
